<compile_context>
chip_gen: v5e
topology: v5e:2x2
jax: 0.10.0
libtpu: 0.0.40
codegen_flags: <defaults>
</compile_context>

<pallas_src>
import functools

import jax
import jax.numpy as jnp
from jax import lax
from jax.experimental import pallas as pl
from jax.experimental.pallas import tpu as pltpu


# ----------------------------------------------------------------------------
# Per-block constant names (order matters: wrapper and kernel share it)
# ----------------------------------------------------------------------------
_CONST_NAMES = (
    "u1u2", "u3rep", "Ve", "be",                 # temporal attention
    "W1row", "w2rep", "w3rep", "rep01", "bsT", "VsT",   # spatial attention
    "cheb_catT", "theta_cat",                    # Chebyshev conv
    "wtime", "wres", "bias", "gamma", "beta", "meanmat", "bcast",  # conv + LN
)


def _sigmoid(z):
    return 1.0 / (1.0 + jnp.exp(-z))


# ----------------------------------------------------------------------------
# One ASTGCN block on a single batch element (pure function of VMEM values)
# ----------------------------------------------------------------------------
def _astgcn_block(x_flat, c, meta):
    """x_flat: (N, F*T), columns ordered (feature, time).  Returns (N, Ft*T_out),
    columns ordered (out_filter, out_time)."""
    N, F, T, Fc, Ft, K, T_out = (meta[k] for k in ("N", "F", "T", "Fc", "Ft", "K", "T_out"))
    f32 = jnp.float32
    dot = functools.partial(jnp.dot, preferred_element_type=f32)

    # ---- temporal attention: E = softmax_dim1(Ve @ sigmoid(lhs @ rhs + be)) ----
    # merged lhs: stack the F contiguous feature slices along sublanes -> one matmul
    x_stacked = jnp.concatenate(
        [x_flat[:, f * T:(f + 1) * T] for f in range(F)], axis=0)      # (F*N, T)
    lhs_tT = dot(c["u1u2"][...], x_stacked)                            # (N, T) == lhs^T
    rhs_t = dot(x_flat, c["u3rep"][...])                               # (N, T)
    prod_t = lax.dot_general(lhs_tT, rhs_t, (((0,), (0,)), ((), ())),
                             preferred_element_type=f32)               # (T, T)
    e = dot(c["Ve"][...], _sigmoid(prod_t + c["be"][...]))             # (T, T)
    e = jnp.exp(e - jnp.max(e, axis=0, keepdims=True))                 # softmax dim=1
    e_norm = e / jnp.sum(e, axis=0, keepdims=True)

    # ---- spatial attention on x_TAt = x @ E, with x_TAt folded away ----------
    # ew[tau] = sum_t E[tau, t] * W1[t]   (replicated to (F*T, 1) via a 0/1 matmul)
    e_rep = dot(c["rep01"][...], e_norm)                               # (F*T, T)
    ew_rep = jnp.sum(e_rep * c["W1row"][...], axis=1, keepdims=True)   # (F*T, 1)
    lhs_s = dot(x_flat, c["w2rep"][...] * ew_rep)                      # (N, T)
    rhs_s = dot(dot(x_flat, c["w3rep"][...]), e_norm)                  # (N, T)
    # produce product^T directly (no explicit (N,N) transpose), lane-axis softmax
    prod_sT = lax.dot_general(rhs_s, lhs_s, (((1,), (1,)), ((), ())),
                              preferred_element_type=f32)              # (N, N)
    sT = dot(_sigmoid(prod_sT + c["bsT"][...]), c["VsT"][...])         # (N, N) == S^T
    sT = jnp.exp(sT - jnp.max(sT, axis=1, keepdims=True))
    saT = sT / jnp.sum(sT, axis=1, keepdims=True)                      # softmax(S,dim=1)^T

    # ---- K-order Chebyshev conv with SAt, merged over k ----------------------
    z = dot(x_flat, c["theta_cat"][...])                               # (N, K*Fc*T)
    zs = jnp.concatenate(
        [z[:, k * Fc * T:(k + 1) * Fc * T] for k in range(K)], axis=0)  # (K*N, Fc*T)
    ca = c["cheb_catT"][...] * jnp.concatenate([saT] * K, axis=1)       # (N, K*N)
    sg = jnp.maximum(dot(ca, zs), 0.0)                                  # (N, Fc*T)

    # ---- time conv (1x3, stride) + residual 1x1 + ReLU + LayerNorm(Ft) -------
    y = dot(sg, c["wtime"][...]) + dot(x_flat, c["wres"][...]) + c["bias"][...]
    y = jnp.maximum(y, 0.0)                                             # (N, Ft*T_out)
    mu = dot(y, c["meanmat"][...])                                      # (N, T_out)
    d = y - dot(mu, c["bcast"][...])
    var = dot(d * d, c["meanmat"][...])                                 # (N, T_out)
    inv = lax.rsqrt(var + 1e-5)
    yn = d * dot(inv, c["bcast"][...]) * c["gamma"][...] + c["beta"][...]
    return yn                                                            # (N, Ft*T_out)


# ----------------------------------------------------------------------------
# Fused kernel: all blocks + final projection, one batch element per grid step
# ----------------------------------------------------------------------------
def _astgcn_kernel(*refs, metas):
    n_const = len(_CONST_NAMES)
    nblk = len(metas)
    x_ref = refs[0]
    wf_ref = refs[1 + nblk * n_const]
    fb_ref = refs[2 + nblk * n_const]
    o_ref = refs[-1]

    x = x_ref[0]                                                        # (N, F*T)
    for i, meta in enumerate(metas):
        base = 1 + i * n_const
        c = {name: refs[base + j] for j, name in enumerate(_CONST_NAMES)}
        x = _astgcn_block(x, c, meta)

    # final (1 x Ft) conv, produced lane-dense as (P, N)
    out = lax.dot_general(wf_ref[...], x, (((1,), (1,)), ((), ())),
                          preferred_element_type=jnp.float32)
    o_ref[0] = (out + fb_ref[...]).astype(o_ref.dtype)


# ----------------------------------------------------------------------------
# Wrapper-side constant construction (pure layout plumbing, runs once in XLA)
# ----------------------------------------------------------------------------
def _block_constants(p, N):
    f32 = jnp.float32
    K, F, Fc = (int(d) for d in p["theta"].shape)
    T = int(p["Ve"].shape[0])
    Ft = int(p["time_w"].shape[0])
    ts = int(p["time_strides"])
    T_out = (T - 1) // ts + 1
    eyeT = jnp.eye(T, dtype=f32)
    eyeTo = jnp.eye(T_out, dtype=f32)

    c = {}
    # temporal attention: merged (N, F*N) weight;  u3 as block-diagonal matrix
    c["u1u2"] = (p["U2"].T[:, :, None] * p["U1"][None, None, :]).reshape(N, F * N)
    c["u3rep"] = (p["U3"][:, None, None] * eyeT[None, :, :]).reshape(F * T, T)
    c["Ve"] = p["Ve"].astype(f32)
    c["be"] = p["be"][0].astype(f32)
    # spatial attention
    c["W1row"] = p["W1"][None, :]
    c["w2rep"] = jnp.repeat(p["W2"], T, axis=0)                          # (F*T, T)
    c["w3rep"] = (p["W3"][:, None, None] * eyeT[None, :, :]).reshape(F * T, T)
    c["rep01"] = jnp.tile(eyeT, (F, 1))                                  # (F*T, T)
    c["bsT"] = p["bs"][0].T
    c["VsT"] = p["Vs"].T
    # Chebyshev conv, merged over k
    c["cheb_catT"] = jnp.concatenate([p["cheb"][k].T for k in range(K)], axis=1)
    c["theta_cat"] = jnp.einsum("kfc,ab->fakcb", p["theta"],
                                eyeT).reshape(F * T, K * Fc * T)
    # time conv (1x3, stride ts, pad 1) and residual (1x1, stride ts) as block
    # matrices acting on the (channel, time)-flattened activations
    wt = p["time_w"][:, :, 0, :]                                         # (Ft, Fc, 3)
    wr = p["res_w"][:, :, 0, 0]                                          # (Ft, F)
    wtime = jnp.zeros((Fc * T, Ft * T_out), f32)
    wres = jnp.zeros((F * T, Ft * T_out), f32)
    for to in range(T_out):
        for s in range(3):
            tau = ts * to - 1 + s
            if 0 <= tau < T:
                wtime = wtime.at[tau::T, to::T_out].set(wt[:, :, s].T)
        wres = wres.at[ts * to::T, to::T_out].set(wr.T)
    c["wtime"] = wtime
    c["wres"] = wres
    c["bias"] = jnp.repeat(p["time_b"] + p["res_b"], T_out)[None, :]
    c["gamma"] = jnp.repeat(p["ln_g"], T_out)[None, :]
    c["beta"] = jnp.repeat(p["ln_b"], T_out)[None, :]
    # thin LayerNorm stats + 0/1 broadcast-back
    c["meanmat"] = jnp.tile(eyeTo, (Ft, 1)) / float(Ft)                  # (Ft*T_out, T_out)
    c["bcast"] = jnp.tile(eyeTo, (1, Ft))                                # (T_out, Ft*T_out)

    meta = dict(N=N, F=F, T=T, Fc=Fc, Ft=Ft, K=K, T_out=T_out)
    return c, meta


def _const_spec(arr):
    shape = tuple(int(d) for d in arr.shape)
    zeros = (0,) * len(shape)
    return pl.BlockSpec(shape, lambda b, _z=zeros: _z)


# ----------------------------------------------------------------------------
# Model forward: one pallas_call for the whole network
# ----------------------------------------------------------------------------
def astgcn_forward(x, params):
    """x: (B, T, N, C) -> (B, num_for_predict, N, 1), same as the PyTorch module."""
    B, T, N, C = (int(d) for d in x.shape)
    f32 = jnp.float32
    # (f, t)-ordered flat layout: x_flat[b, n, f*T + t] = x[b, t, n, f]
    x_flat = jnp.transpose(x, (0, 2, 3, 1)).reshape(B, N, C * T).astype(f32)

    consts, metas = [], []
    for blk in params["blocks"]:
        cdict, meta = _block_constants(blk, N)
        consts.append(cdict)
        metas.append(meta)

    # final (1 x Ft) conv folded into the kernel, lane-dense (P, N) output
    W = params["final_w"]                                                # (P, T2, 1, Ft)
    P, T2, _, Ftw = (int(d) for d in W.shape)
    wf = jnp.transpose(W[:, :, 0, :], (0, 2, 1)).reshape(P, Ftw * T2)    # cols (f, t)
    fb = params["final_b"][:, None]                                      # (P, 1)

    inputs = [x_flat]
    in_specs = [pl.BlockSpec((1, N, C * T), lambda b: (b, 0, 0))]
    for cdict in consts:
        for name in _CONST_NAMES:
            arr = cdict[name]
            inputs.append(arr)
            in_specs.append(_const_spec(arr))
    inputs += [wf, fb]
    in_specs += [_const_spec(wf), _const_spec(fb)]

    out_shape = jax.ShapeDtypeStruct((B, P, N), f32)
    out_spec = pl.BlockSpec((1, P, N), lambda b: (b, 0, 0))

    kernel = functools.partial(_astgcn_kernel, metas=tuple(metas))
    out = pl.pallas_call(
        kernel,
        out_shape=out_shape,
        grid=(B,),
        in_specs=in_specs,
        out_specs=out_spec,
        compiler_params=pltpu.CompilerParams(
            dimension_semantics=("parallel",),
            vmem_limit_bytes=48 * 1024 * 1024),
    )(*inputs)
    return out[..., None]                                                # (B, P, N, 1)


# ----------------------------------------------------------------------------
# Deterministic parameter construction (mirrors the PyTorch module's shapes)
# ----------------------------------------------------------------------------
def init_params(key, *, N, C_in, T, K, nb_chev, nb_time, ts, P, nb_block=2):
    keys = list(jax.random.split(key, 256))
    ki = iter(keys)

    def u(shape, scale=0.1):
        return jax.random.uniform(next(ki), shape, jnp.float32, -scale, scale)

    # synthetic Chebyshev polynomials from a bounded symmetric matrix
    A = u((N, N), 1.0)
    A = (A + A.T) / 2.0
    L = A / (jnp.max(jnp.abs(A)) + 1.0)
    cheb_list = [jnp.eye(N, dtype=jnp.float32), L]
    for _ in range(2, K):
        cheb_list.append(2.0 * L @ cheb_list[-1] - cheb_list[-2])
    cheb = jnp.stack(cheb_list[:K], axis=0)                              # (K, N, N)

    blocks = []
    in_c, tlen, stride = C_in, T, ts
    for _ in range(nb_block):
        blocks.append(dict(
            # Temporal attention
            U1=u((N,)), U2=u((in_c, N)), U3=u((in_c,)),
            be=u((1, tlen, tlen)), Ve=u((tlen, tlen)),
            # Spatial attention
            W1=u((tlen,)), W2=u((in_c, tlen)), W3=u((in_c,)),
            bs=u((1, N, N)), Vs=u((N, N)),
            # Chebyshev conv
            theta=u((K, in_c, nb_chev)),
            cheb=cheb,
            # time conv / residual conv / layer norm
            time_w=u((nb_time, nb_chev, 1, 3)), time_b=u((nb_time,)),
            res_w=u((nb_time, in_c, 1, 1)), res_b=u((nb_time,)),
            ln_g=jnp.ones((nb_time,), jnp.float32),
            ln_b=jnp.zeros((nb_time,), jnp.float32),
            time_strides=stride,
        ))
        in_c, tlen, stride = nb_time, T // ts, 1

    final_w = u((P, T // ts, 1, nb_time))
    final_b = u((P,))
    return dict(blocks=blocks, final_w=final_w, final_b=final_b)


# ----------------------------------------------------------------------------
if __name__ == "__main__":
    B, T, N, C = 2, 8, 16, 2            # (batch, len_input, num_vertices, in_channels)
    K = 3
    nb_chev_filter = 8
    nb_time_filter = 8
    time_strides = 2
    num_for_predict = 4

    key = jax.random.PRNGKey(0)
    k_x, k_p = jax.random.split(key)
    x = jax.random.normal(k_x, (B, T, N, C), jnp.float32)

    params = init_params(k_p, N=N, C_in=C, T=T, K=K,
                         nb_chev=nb_chev_filter, nb_time=nb_time_filter,
                         ts=time_strides, P=num_for_predict, nb_block=2)

    out = astgcn_forward(x, params)
    out = jax.block_until_ready(out)
    assert out.shape == (B, num_for_predict, N, 1), out.shape
    assert bool(jnp.all(jnp.isfinite(out)))
    print("KERNEL_OK")
</pallas_src>

<mosaic_0001>
module attributes {stable_mosaic.version = 11 : i64} {
  func.func @_astgcn_kernel(%arg0: i32, %arg1: memref<1x16x16xf32, #tpu.memory_space<vmem>>, %arg2: memref<16x32xf32, #tpu.memory_space<vmem>>, %arg3: memref<16x8xf32, #tpu.memory_space<vmem>>, %arg4: memref<8x8xf32, #tpu.memory_space<vmem>>, %arg5: memref<8x8xf32, #tpu.memory_space<vmem>>, %arg6: memref<1x8xf32, #tpu.memory_space<vmem>>, %arg7: memref<16x8xf32, #tpu.memory_space<vmem>>, %arg8: memref<16x8xf32, #tpu.memory_space<vmem>>, %arg9: memref<16x8xf32, #tpu.memory_space<vmem>>, %arg10: memref<16x16xf32, #tpu.memory_space<vmem>>, %arg11: memref<16x16xf32, #tpu.memory_space<vmem>>, %arg12: memref<16x48xf32, #tpu.memory_space<vmem>>, %arg13: memref<16x192xf32, #tpu.memory_space<vmem>>, %arg14: memref<64x32xf32, #tpu.memory_space<vmem>>, %arg15: memref<16x32xf32, #tpu.memory_space<vmem>>, %arg16: memref<1x32xf32, #tpu.memory_space<vmem>>, %arg17: memref<1x32xf32, #tpu.memory_space<vmem>>, %arg18: memref<1x32xf32, #tpu.memory_space<vmem>>, %arg19: memref<32x4xf32, #tpu.memory_space<vmem>>, %arg20: memref<4x32xf32, #tpu.memory_space<vmem>>, %arg21: memref<16x128xf32, #tpu.memory_space<vmem>>, %arg22: memref<32x4xf32, #tpu.memory_space<vmem>>, %arg23: memref<4x4xf32, #tpu.memory_space<vmem>>, %arg24: memref<4x4xf32, #tpu.memory_space<vmem>>, %arg25: memref<1x4xf32, #tpu.memory_space<vmem>>, %arg26: memref<32x4xf32, #tpu.memory_space<vmem>>, %arg27: memref<32x4xf32, #tpu.memory_space<vmem>>, %arg28: memref<32x4xf32, #tpu.memory_space<vmem>>, %arg29: memref<16x16xf32, #tpu.memory_space<vmem>>, %arg30: memref<16x16xf32, #tpu.memory_space<vmem>>, %arg31: memref<16x48xf32, #tpu.memory_space<vmem>>, %arg32: memref<32x96xf32, #tpu.memory_space<vmem>>, %arg33: memref<32x32xf32, #tpu.memory_space<vmem>>, %arg34: memref<32x32xf32, #tpu.memory_space<vmem>>, %arg35: memref<1x32xf32, #tpu.memory_space<vmem>>, %arg36: memref<1x32xf32, #tpu.memory_space<vmem>>, %arg37: memref<1x32xf32, #tpu.memory_space<vmem>>, %arg38: memref<32x4xf32, #tpu.memory_space<vmem>>, %arg39: memref<4x32xf32, #tpu.memory_space<vmem>>, %arg40: memref<4x32xf32, #tpu.memory_space<vmem>>, %arg41: memref<4x1xf32, #tpu.memory_space<vmem>>, %arg42: memref<1x4x16xf32, #tpu.memory_space<vmem>>) attributes {dimension_semantics = [#tpu.dimension_semantics<parallel>], iteration_bounds = array<i64: 2>, scalar_prefetch = 0 : i64, scratch_operands = 0 : i64, tpu.core_type = #tpu.core_type<tc>, window_params = [{transform_indices = @transform_0, window_bounds = array<i64: 1, 16, 16>}, {pipeline_mode = #tpu.pipeline_mode<synchronous>, transform_indices = @transform_1, window_bounds = array<i64: 16, 32>}, {pipeline_mode = #tpu.pipeline_mode<synchronous>, transform_indices = @transform_2, window_bounds = array<i64: 16, 8>}, {pipeline_mode = #tpu.pipeline_mode<synchronous>, transform_indices = @transform_3, window_bounds = array<i64: 8, 8>}, {pipeline_mode = #tpu.pipeline_mode<synchronous>, transform_indices = @transform_4, window_bounds = array<i64: 8, 8>}, {pipeline_mode = #tpu.pipeline_mode<synchronous>, transform_indices = @transform_5, window_bounds = array<i64: 1, 8>}, {pipeline_mode = #tpu.pipeline_mode<synchronous>, transform_indices = @transform_6, window_bounds = array<i64: 16, 8>}, {pipeline_mode = #tpu.pipeline_mode<synchronous>, transform_indices = @transform_7, window_bounds = array<i64: 16, 8>}, {pipeline_mode = #tpu.pipeline_mode<synchronous>, transform_indices = @transform_8, window_bounds = array<i64: 16, 8>}, {pipeline_mode = #tpu.pipeline_mode<synchronous>, transform_indices = @transform_9, window_bounds = array<i64: 16, 16>}, {pipeline_mode = #tpu.pipeline_mode<synchronous>, transform_indices = @transform_10, window_bounds = array<i64: 16, 16>}, {pipeline_mode = #tpu.pipeline_mode<synchronous>, transform_indices = @transform_11, window_bounds = array<i64: 16, 48>}, {pipeline_mode = #tpu.pipeline_mode<synchronous>, transform_indices = @transform_12, window_bounds = array<i64: 16, 192>}, {pipeline_mode = #tpu.pipeline_mode<synchronous>, transform_indices = @transform_13, window_bounds = array<i64: 64, 32>}, {pipeline_mode = #tpu.pipeline_mode<synchronous>, transform_indices = @transform_14, window_bounds = array<i64: 16, 32>}, {pipeline_mode = #tpu.pipeline_mode<synchronous>, transform_indices = @transform_15, window_bounds = array<i64: 1, 32>}, {pipeline_mode = #tpu.pipeline_mode<synchronous>, transform_indices = @transform_16, window_bounds = array<i64: 1, 32>}, {pipeline_mode = #tpu.pipeline_mode<synchronous>, transform_indices = @transform_17, window_bounds = array<i64: 1, 32>}, {pipeline_mode = #tpu.pipeline_mode<synchronous>, transform_indices = @transform_18, window_bounds = array<i64: 32, 4>}, {pipeline_mode = #tpu.pipeline_mode<synchronous>, transform_indices = @transform_19, window_bounds = array<i64: 4, 32>}, {pipeline_mode = #tpu.pipeline_mode<synchronous>, transform_indices = @transform_20, window_bounds = array<i64: 16, 128>}, {pipeline_mode = #tpu.pipeline_mode<synchronous>, transform_indices = @transform_21, window_bounds = array<i64: 32, 4>}, {pipeline_mode = #tpu.pipeline_mode<synchronous>, transform_indices = @transform_22, window_bounds = array<i64: 4, 4>}, {pipeline_mode = #tpu.pipeline_mode<synchronous>, transform_indices = @transform_23, window_bounds = array<i64: 4, 4>}, {pipeline_mode = #tpu.pipeline_mode<synchronous>, transform_indices = @transform_24, window_bounds = array<i64: 1, 4>}, {pipeline_mode = #tpu.pipeline_mode<synchronous>, transform_indices = @transform_25, window_bounds = array<i64: 32, 4>}, {pipeline_mode = #tpu.pipeline_mode<synchronous>, transform_indices = @transform_26, window_bounds = array<i64: 32, 4>}, {pipeline_mode = #tpu.pipeline_mode<synchronous>, transform_indices = @transform_27, window_bounds = array<i64: 32, 4>}, {pipeline_mode = #tpu.pipeline_mode<synchronous>, transform_indices = @transform_28, window_bounds = array<i64: 16, 16>}, {pipeline_mode = #tpu.pipeline_mode<synchronous>, transform_indices = @transform_29, window_bounds = array<i64: 16, 16>}, {pipeline_mode = #tpu.pipeline_mode<synchronous>, transform_indices = @transform_30, window_bounds = array<i64: 16, 48>}, {pipeline_mode = #tpu.pipeline_mode<synchronous>, transform_indices = @transform_31, window_bounds = array<i64: 32, 96>}, {pipeline_mode = #tpu.pipeline_mode<synchronous>, transform_indices = @transform_32, window_bounds = array<i64: 32, 32>}, {pipeline_mode = #tpu.pipeline_mode<synchronous>, transform_indices = @transform_33, window_bounds = array<i64: 32, 32>}, {pipeline_mode = #tpu.pipeline_mode<synchronous>, transform_indices = @transform_34, window_bounds = array<i64: 1, 32>}, {pipeline_mode = #tpu.pipeline_mode<synchronous>, transform_indices = @transform_35, window_bounds = array<i64: 1, 32>}, {pipeline_mode = #tpu.pipeline_mode<synchronous>, transform_indices = @transform_36, window_bounds = array<i64: 1, 32>}, {pipeline_mode = #tpu.pipeline_mode<synchronous>, transform_indices = @transform_37, window_bounds = array<i64: 32, 4>}, {pipeline_mode = #tpu.pipeline_mode<synchronous>, transform_indices = @transform_38, window_bounds = array<i64: 4, 32>}, {pipeline_mode = #tpu.pipeline_mode<synchronous>, transform_indices = @transform_39, window_bounds = array<i64: 4, 32>}, {pipeline_mode = #tpu.pipeline_mode<synchronous>, transform_indices = @transform_40, window_bounds = array<i64: 4, 1>}, {transform_indices = @transform_41, window_bounds = array<i64: 1, 4, 16>}]} {
    %c0 = arith.constant 0 : index
    %c0_0 = arith.constant 0 : index
    %c0_1 = arith.constant 0 : index
    %0 = vector.load %arg1[%c0, %c0_0, %c0_1] : memref<1x16x16xf32, #tpu.memory_space<vmem>>, vector<1x16x16xf32>
    %1 = vector.shape_cast %0 : vector<1x16x16xf32> to vector<16x16xf32>
    %2 = vector.extract_strided_slice %1 {offsets = [0, 0], sizes = [16, 8], strides = [1, 1]} : vector<16x16xf32> to vector<16x8xf32>
    %3 = vector.extract_strided_slice %1 {offsets = [0, 8], sizes = [16, 8], strides = [1, 1]} : vector<16x16xf32> to vector<16x8xf32>
    %4 = tpu.concatenate %2, %3 in 0 : vector<16x8xf32>, vector<16x8xf32> -> vector<32x8xf32>
    %c0_2 = arith.constant 0 : index
    %c0_3 = arith.constant 0 : index
    %5 = vector.load %arg2[%c0_2, %c0_3] : memref<16x32xf32, #tpu.memory_space<vmem>>, vector<16x32xf32>
    %cst = arith.constant dense<0.000000e+00> : vector<16x8xf32>
    %6 = tpu.matmul %5, %4, %cst {dimension_numbers = #tpu.dot_dimension_numbers<[1], [0], [0], [1], [0, 0, 1, 1], [], []>} : vector<16x32xf32>, vector<32x8xf32>, vector<16x8xf32> -> vector<16x8xf32>
    %c0_4 = arith.constant 0 : index
    %c0_5 = arith.constant 0 : index
    %7 = vector.load %arg3[%c0_4, %c0_5] : memref<16x8xf32, #tpu.memory_space<vmem>>, vector<16x8xf32>
    %cst_6 = arith.constant dense<0.000000e+00> : vector<16x8xf32>
    %8 = tpu.matmul %1, %7, %cst_6 {dimension_numbers = #tpu.dot_dimension_numbers<[1], [0], [0], [1], [0, 0, 1, 1], [], []>} : vector<16x16xf32>, vector<16x8xf32>, vector<16x8xf32> -> vector<16x8xf32>
    %cst_7 = arith.constant dense<0.000000e+00> : vector<8x8xf32>
    %9 = tpu.matmul %6, %8, %cst_7 {dimension_numbers = #tpu.dot_dimension_numbers<[0], [0], [1], [1], [0, 1, 1, 1], [], []>} : vector<16x8xf32>, vector<16x8xf32>, vector<8x8xf32> -> vector<8x8xf32>
    %c0_8 = arith.constant 0 : index
    %c0_9 = arith.constant 0 : index
    %10 = vector.load %arg4[%c0_8, %c0_9] : memref<8x8xf32, #tpu.memory_space<vmem>>, vector<8x8xf32>
    %c0_10 = arith.constant 0 : index
    %c0_11 = arith.constant 0 : index
    %11 = vector.load %arg5[%c0_10, %c0_11] : memref<8x8xf32, #tpu.memory_space<vmem>>, vector<8x8xf32>
    %12 = arith.addf %9, %11 : vector<8x8xf32>
    %cst_12 = arith.constant 0.000000e+00 : f32
    %13 = vector.broadcast %cst_12 : f32 to vector<8x8xf32>
    %14 = arith.subf %13, %12 : vector<8x8xf32>
    %15 = math.exp %14 : vector<8x8xf32>
    %cst_13 = arith.constant 1.000000e+00 : f32
    %16 = vector.broadcast %cst_13 : f32 to vector<8x8xf32>
    %17 = arith.addf %16, %15 : vector<8x8xf32>
    %cst_14 = arith.constant 1.000000e+00 : f32
    %18 = vector.broadcast %cst_14 : f32 to vector<8x8xf32>
    %19 = arith.divf %18, %17 : vector<8x8xf32>
    %cst_15 = arith.constant dense<0.000000e+00> : vector<8x8xf32>
    %20 = tpu.matmul %10, %19, %cst_15 {dimension_numbers = #tpu.dot_dimension_numbers<[1], [0], [0], [1], [0, 0, 1, 1], [], []>} : vector<8x8xf32>, vector<8x8xf32>, vector<8x8xf32> -> vector<8x8xf32>
    %cst_16 = arith.constant dense<0xFF800000> : vector<8xf32>
    %21 = vector.multi_reduction <maximumf>, %20, %cst_16 [0] : vector<8x8xf32> to vector<8xf32>
    %22 = vector.shape_cast %21 : vector<8xf32> to vector<1x8xf32>
    %23 = vector.broadcast %22 : vector<1x8xf32> to vector<8x8xf32>
    %24 = arith.subf %20, %23 : vector<8x8xf32>
    %25 = math.exp %24 : vector<8x8xf32>
    %cst_17 = arith.constant dense<0.000000e+00> : vector<8xf32>
    %26 = vector.multi_reduction <add>, %25, %cst_17 [0] : vector<8x8xf32> to vector<8xf32>
    %27 = vector.shape_cast %26 : vector<8xf32> to vector<1x8xf32>
    %28 = vector.broadcast %27 : vector<1x8xf32> to vector<8x8xf32>
    %29 = arith.divf %25, %28 : vector<8x8xf32>
    %c0_18 = arith.constant 0 : index
    %c0_19 = arith.constant 0 : index
    %30 = vector.load %arg9[%c0_18, %c0_19] : memref<16x8xf32, #tpu.memory_space<vmem>>, vector<16x8xf32>
    %cst_20 = arith.constant dense<0.000000e+00> : vector<16x8xf32>
    %31 = tpu.matmul %30, %29, %cst_20 {dimension_numbers = #tpu.dot_dimension_numbers<[1], [0], [0], [1], [0, 0, 1, 1], [], []>} : vector<16x8xf32>, vector<8x8xf32>, vector<16x8xf32> -> vector<16x8xf32>
    %c0_21 = arith.constant 0 : index
    %c0_22 = arith.constant 0 : index
    %32 = vector.load %arg6[%c0_21, %c0_22] : memref<1x8xf32, #tpu.memory_space<vmem>>, vector<1x8xf32>
    %33 = vector.broadcast %32 : vector<1x8xf32> to vector<16x8xf32>
    %34 = arith.mulf %31, %33 : vector<16x8xf32>
    %cst_23 = arith.constant dense<0.000000e+00> : vector<16xf32>
    %35 = vector.multi_reduction <add>, %34, %cst_23 [1] : vector<16x8xf32> to vector<16xf32>
    %36 = vector.shape_cast %35 : vector<16xf32> to vector<16x1xf32>
    %c0_24 = arith.constant 0 : index
    %c0_25 = arith.constant 0 : index
    %37 = vector.load %arg7[%c0_24, %c0_25] : memref<16x8xf32, #tpu.memory_space<vmem>>, vector<16x8xf32>
    %38 = vector.broadcast %36 : vector<16x1xf32> to vector<16x8xf32>
    %39 = arith.mulf %37, %38 : vector<16x8xf32>
    %cst_26 = arith.constant dense<0.000000e+00> : vector<16x8xf32>
    %40 = tpu.matmul %1, %39, %cst_26 {dimension_numbers = #tpu.dot_dimension_numbers<[1], [0], [0], [1], [0, 0, 1, 1], [], []>} : vector<16x16xf32>, vector<16x8xf32>, vector<16x8xf32> -> vector<16x8xf32>
    %c0_27 = arith.constant 0 : index
    %c0_28 = arith.constant 0 : index
    %41 = vector.load %arg8[%c0_27, %c0_28] : memref<16x8xf32, #tpu.memory_space<vmem>>, vector<16x8xf32>
    %cst_29 = arith.constant dense<0.000000e+00> : vector<16x8xf32>
    %42 = tpu.matmul %1, %41, %cst_29 {dimension_numbers = #tpu.dot_dimension_numbers<[1], [0], [0], [1], [0, 0, 1, 1], [], []>} : vector<16x16xf32>, vector<16x8xf32>, vector<16x8xf32> -> vector<16x8xf32>
    %cst_30 = arith.constant dense<0.000000e+00> : vector<16x8xf32>
    %43 = tpu.matmul %42, %29, %cst_30 {dimension_numbers = #tpu.dot_dimension_numbers<[1], [0], [0], [1], [0, 0, 1, 1], [], []>} : vector<16x8xf32>, vector<8x8xf32>, vector<16x8xf32> -> vector<16x8xf32>
    %cst_31 = arith.constant dense<0.000000e+00> : vector<16x16xf32>
    %44 = tpu.matmul %43, %40, %cst_31 {dimension_numbers = #tpu.dot_dimension_numbers<[1], [1], [0], [0], [0, 0, 1, 0], [], []>} : vector<16x8xf32>, vector<16x8xf32>, vector<16x16xf32> -> vector<16x16xf32>
    %c0_32 = arith.constant 0 : index
    %c0_33 = arith.constant 0 : index
    %45 = vector.load %arg10[%c0_32, %c0_33] : memref<16x16xf32, #tpu.memory_space<vmem>>, vector<16x16xf32>
    %46 = arith.addf %44, %45 : vector<16x16xf32>
    %cst_34 = arith.constant 0.000000e+00 : f32
    %47 = vector.broadcast %cst_34 : f32 to vector<16x16xf32>
    %48 = arith.subf %47, %46 : vector<16x16xf32>
    %49 = math.exp %48 : vector<16x16xf32>
    %cst_35 = arith.constant 1.000000e+00 : f32
    %50 = vector.broadcast %cst_35 : f32 to vector<16x16xf32>
    %51 = arith.addf %50, %49 : vector<16x16xf32>
    %cst_36 = arith.constant 1.000000e+00 : f32
    %52 = vector.broadcast %cst_36 : f32 to vector<16x16xf32>
    %53 = arith.divf %52, %51 : vector<16x16xf32>
    %c0_37 = arith.constant 0 : index
    %c0_38 = arith.constant 0 : index
    %54 = vector.load %arg11[%c0_37, %c0_38] : memref<16x16xf32, #tpu.memory_space<vmem>>, vector<16x16xf32>
    %cst_39 = arith.constant dense<0.000000e+00> : vector<16x16xf32>
    %55 = tpu.matmul %53, %54, %cst_39 {dimension_numbers = #tpu.dot_dimension_numbers<[1], [0], [0], [1], [0, 0, 1, 1], [], []>} : vector<16x16xf32>, vector<16x16xf32>, vector<16x16xf32> -> vector<16x16xf32>
    %cst_40 = arith.constant dense<0xFF800000> : vector<16xf32>
    %56 = vector.multi_reduction <maximumf>, %55, %cst_40 [1] : vector<16x16xf32> to vector<16xf32>
    %57 = vector.shape_cast %56 : vector<16xf32> to vector<16x1xf32>
    %58 = vector.broadcast %57 : vector<16x1xf32> to vector<16x16xf32>
    %59 = arith.subf %55, %58 : vector<16x16xf32>
    %60 = math.exp %59 : vector<16x16xf32>
    %cst_41 = arith.constant dense<0.000000e+00> : vector<16xf32>
    %61 = vector.multi_reduction <add>, %60, %cst_41 [1] : vector<16x16xf32> to vector<16xf32>
    %62 = vector.shape_cast %61 : vector<16xf32> to vector<16x1xf32>
    %63 = vector.broadcast %62 : vector<16x1xf32> to vector<16x16xf32>
    %64 = arith.divf %60, %63 : vector<16x16xf32>
    %c0_42 = arith.constant 0 : index
    %c0_43 = arith.constant 0 : index
    %65 = vector.load %arg13[%c0_42, %c0_43] : memref<16x192xf32, #tpu.memory_space<vmem>>, vector<16x192xf32>
    %cst_44 = arith.constant dense<0.000000e+00> : vector<16x192xf32>
    %66 = tpu.matmul %1, %65, %cst_44 {dimension_numbers = #tpu.dot_dimension_numbers<[1], [0], [0], [1], [0, 0, 1, 1], [], []>} : vector<16x16xf32>, vector<16x192xf32>, vector<16x192xf32> -> vector<16x192xf32>
    %67 = vector.extract_strided_slice %66 {offsets = [0, 0], sizes = [16, 64], strides = [1, 1]} : vector<16x192xf32> to vector<16x64xf32>
    %68 = vector.extract_strided_slice %66 {offsets = [0, 64], sizes = [16, 64], strides = [1, 1]} : vector<16x192xf32> to vector<16x64xf32>
    %69 = vector.extract_strided_slice %66 {offsets = [0, 128], sizes = [16, 64], strides = [1, 1]} : vector<16x192xf32> to vector<16x64xf32>
    %70 = tpu.concatenate %67, %68, %69 in 0 : vector<16x64xf32>, vector<16x64xf32>, vector<16x64xf32> -> vector<48x64xf32>
    %c0_45 = arith.constant 0 : index
    %c0_46 = arith.constant 0 : index
    %71 = vector.load %arg12[%c0_45, %c0_46] : memref<16x48xf32, #tpu.memory_space<vmem>>, vector<16x48xf32>
    %72 = tpu.concatenate %64, %64, %64 in 1 : vector<16x16xf32>, vector<16x16xf32>, vector<16x16xf32> -> vector<16x48xf32>
    %73 = arith.mulf %71, %72 : vector<16x48xf32>
    %cst_47 = arith.constant dense<0.000000e+00> : vector<16x64xf32>
    %74 = tpu.matmul %73, %70, %cst_47 {dimension_numbers = #tpu.dot_dimension_numbers<[1], [0], [0], [1], [0, 0, 1, 1], [], []>} : vector<16x48xf32>, vector<48x64xf32>, vector<16x64xf32> -> vector<16x64xf32>
    %cst_48 = arith.constant 0.000000e+00 : f32
    %75 = vector.broadcast %cst_48 : f32 to vector<16x64xf32>
    %76 = arith.maximumf %74, %75 : vector<16x64xf32>
    %c0_49 = arith.constant 0 : index
    %c0_50 = arith.constant 0 : index
    %77 = vector.load %arg14[%c0_49, %c0_50] : memref<64x32xf32, #tpu.memory_space<vmem>>, vector<64x32xf32>
    %cst_51 = arith.constant dense<0.000000e+00> : vector<16x32xf32>
    %78 = tpu.matmul %76, %77, %cst_51 {dimension_numbers = #tpu.dot_dimension_numbers<[1], [0], [0], [1], [0, 0, 1, 1], [], []>} : vector<16x64xf32>, vector<64x32xf32>, vector<16x32xf32> -> vector<16x32xf32>
    %c0_52 = arith.constant 0 : index
    %c0_53 = arith.constant 0 : index
    %79 = vector.load %arg15[%c0_52, %c0_53] : memref<16x32xf32, #tpu.memory_space<vmem>>, vector<16x32xf32>
    %cst_54 = arith.constant dense<0.000000e+00> : vector<16x32xf32>
    %80 = tpu.matmul %1, %79, %cst_54 {dimension_numbers = #tpu.dot_dimension_numbers<[1], [0], [0], [1], [0, 0, 1, 1], [], []>} : vector<16x16xf32>, vector<16x32xf32>, vector<16x32xf32> -> vector<16x32xf32>
    %81 = arith.addf %78, %80 : vector<16x32xf32>
    %c0_55 = arith.constant 0 : index
    %c0_56 = arith.constant 0 : index
    %82 = vector.load %arg16[%c0_55, %c0_56] : memref<1x32xf32, #tpu.memory_space<vmem>>, vector<1x32xf32>
    %83 = vector.broadcast %82 : vector<1x32xf32> to vector<16x32xf32>
    %84 = arith.addf %81, %83 : vector<16x32xf32>
    %cst_57 = arith.constant 0.000000e+00 : f32
    %85 = vector.broadcast %cst_57 : f32 to vector<16x32xf32>
    %86 = arith.maximumf %84, %85 : vector<16x32xf32>
    %c0_58 = arith.constant 0 : index
    %c0_59 = arith.constant 0 : index
    %87 = vector.load %arg19[%c0_58, %c0_59] : memref<32x4xf32, #tpu.memory_space<vmem>>, vector<32x4xf32>
    %cst_60 = arith.constant dense<0.000000e+00> : vector<16x4xf32>
    %88 = tpu.matmul %86, %87, %cst_60 {dimension_numbers = #tpu.dot_dimension_numbers<[1], [0], [0], [1], [0, 0, 1, 1], [], []>} : vector<16x32xf32>, vector<32x4xf32>, vector<16x4xf32> -> vector<16x4xf32>
    %c0_61 = arith.constant 0 : index
    %c0_62 = arith.constant 0 : index
    %89 = vector.load %arg20[%c0_61, %c0_62] : memref<4x32xf32, #tpu.memory_space<vmem>>, vector<4x32xf32>
    %cst_63 = arith.constant dense<0.000000e+00> : vector<16x32xf32>
    %90 = tpu.matmul %88, %89, %cst_63 {dimension_numbers = #tpu.dot_dimension_numbers<[1], [0], [0], [1], [0, 0, 1, 1], [], []>} : vector<16x4xf32>, vector<4x32xf32>, vector<16x32xf32> -> vector<16x32xf32>
    %91 = arith.subf %86, %90 : vector<16x32xf32>
    %92 = arith.mulf %91, %91 : vector<16x32xf32>
    %c0_64 = arith.constant 0 : index
    %c0_65 = arith.constant 0 : index
    %93 = vector.load %arg19[%c0_64, %c0_65] : memref<32x4xf32, #tpu.memory_space<vmem>>, vector<32x4xf32>
    %cst_66 = arith.constant dense<0.000000e+00> : vector<16x4xf32>
    %94 = tpu.matmul %92, %93, %cst_66 {dimension_numbers = #tpu.dot_dimension_numbers<[1], [0], [0], [1], [0, 0, 1, 1], [], []>} : vector<16x32xf32>, vector<32x4xf32>, vector<16x4xf32> -> vector<16x4xf32>
    %cst_67 = arith.constant 9.99999974E-6 : f32
    %95 = vector.broadcast %cst_67 : f32 to vector<16x4xf32>
    %96 = arith.addf %94, %95 : vector<16x4xf32>
    %97 = math.rsqrt %96 : vector<16x4xf32>
    %c0_68 = arith.constant 0 : index
    %c0_69 = arith.constant 0 : index
    %98 = vector.load %arg20[%c0_68, %c0_69] : memref<4x32xf32, #tpu.memory_space<vmem>>, vector<4x32xf32>
    %cst_70 = arith.constant dense<0.000000e+00> : vector<16x32xf32>
    %99 = tpu.matmul %97, %98, %cst_70 {dimension_numbers = #tpu.dot_dimension_numbers<[1], [0], [0], [1], [0, 0, 1, 1], [], []>} : vector<16x4xf32>, vector<4x32xf32>, vector<16x32xf32> -> vector<16x32xf32>
    %100 = arith.mulf %91, %99 : vector<16x32xf32>
    %c0_71 = arith.constant 0 : index
    %c0_72 = arith.constant 0 : index
    %101 = vector.load %arg17[%c0_71, %c0_72] : memref<1x32xf32, #tpu.memory_space<vmem>>, vector<1x32xf32>
    %102 = vector.broadcast %101 : vector<1x32xf32> to vector<16x32xf32>
    %103 = arith.mulf %100, %102 : vector<16x32xf32>
    %c0_73 = arith.constant 0 : index
    %c0_74 = arith.constant 0 : index
    %104 = vector.load %arg18[%c0_73, %c0_74] : memref<1x32xf32, #tpu.memory_space<vmem>>, vector<1x32xf32>
    %105 = vector.broadcast %104 : vector<1x32xf32> to vector<16x32xf32>
    %106 = arith.addf %103, %105 : vector<16x32xf32>
    %107 = vector.extract_strided_slice %106 {offsets = [0, 0], sizes = [16, 4], strides = [1, 1]} : vector<16x32xf32> to vector<16x4xf32>
    %108 = vector.extract_strided_slice %106 {offsets = [0, 4], sizes = [16, 4], strides = [1, 1]} : vector<16x32xf32> to vector<16x4xf32>
    %109 = vector.extract_strided_slice %106 {offsets = [0, 8], sizes = [16, 4], strides = [1, 1]} : vector<16x32xf32> to vector<16x4xf32>
    %110 = vector.extract_strided_slice %106 {offsets = [0, 12], sizes = [16, 4], strides = [1, 1]} : vector<16x32xf32> to vector<16x4xf32>
    %111 = vector.extract_strided_slice %106 {offsets = [0, 16], sizes = [16, 4], strides = [1, 1]} : vector<16x32xf32> to vector<16x4xf32>
    %112 = vector.extract_strided_slice %106 {offsets = [0, 20], sizes = [16, 4], strides = [1, 1]} : vector<16x32xf32> to vector<16x4xf32>
    %113 = vector.extract_strided_slice %106 {offsets = [0, 24], sizes = [16, 4], strides = [1, 1]} : vector<16x32xf32> to vector<16x4xf32>
    %114 = vector.extract_strided_slice %106 {offsets = [0, 28], sizes = [16, 4], strides = [1, 1]} : vector<16x32xf32> to vector<16x4xf32>
    %115 = tpu.concatenate %107, %108, %109, %110, %111, %112, %113, %114 in 0 : vector<16x4xf32>, vector<16x4xf32>, vector<16x4xf32>, vector<16x4xf32>, vector<16x4xf32>, vector<16x4xf32>, vector<16x4xf32>, vector<16x4xf32> -> vector<128x4xf32>
    %c0_75 = arith.constant 0 : index
    %c0_76 = arith.constant 0 : index
    %116 = vector.load %arg21[%c0_75, %c0_76] : memref<16x128xf32, #tpu.memory_space<vmem>>, vector<16x128xf32>
    %cst_77 = arith.constant dense<0.000000e+00> : vector<16x4xf32>
    %117 = tpu.matmul %116, %115, %cst_77 {dimension_numbers = #tpu.dot_dimension_numbers<[1], [0], [0], [1], [0, 0, 1, 1], [], []>} : vector<16x128xf32>, vector<128x4xf32>, vector<16x4xf32> -> vector<16x4xf32>
    %c0_78 = arith.constant 0 : index
    %c0_79 = arith.constant 0 : index
    %118 = vector.load %arg22[%c0_78, %c0_79] : memref<32x4xf32, #tpu.memory_space<vmem>>, vector<32x4xf32>
    %cst_80 = arith.constant dense<0.000000e+00> : vector<16x4xf32>
    %119 = tpu.matmul %106, %118, %cst_80 {dimension_numbers = #tpu.dot_dimension_numbers<[1], [0], [0], [1], [0, 0, 1, 1], [], []>} : vector<16x32xf32>, vector<32x4xf32>, vector<16x4xf32> -> vector<16x4xf32>
    %cst_81 = arith.constant dense<0.000000e+00> : vector<4x4xf32>
    %120 = tpu.matmul %117, %119, %cst_81 {dimension_numbers = #tpu.dot_dimension_numbers<[0], [0], [1], [1], [0, 1, 1, 1], [], []>} : vector<16x4xf32>, vector<16x4xf32>, vector<4x4xf32> -> vector<4x4xf32>
    %c0_82 = arith.constant 0 : index
    %c0_83 = arith.constant 0 : index
    %121 = vector.load %arg23[%c0_82, %c0_83] : memref<4x4xf32, #tpu.memory_space<vmem>>, vector<4x4xf32>
    %c0_84 = arith.constant 0 : index
    %c0_85 = arith.constant 0 : index
    %122 = vector.load %arg24[%c0_84, %c0_85] : memref<4x4xf32, #tpu.memory_space<vmem>>, vector<4x4xf32>
    %123 = arith.addf %120, %122 : vector<4x4xf32>
    %cst_86 = arith.constant 0.000000e+00 : f32
    %124 = vector.broadcast %cst_86 : f32 to vector<4x4xf32>
    %125 = arith.subf %124, %123 : vector<4x4xf32>
    %126 = math.exp %125 : vector<4x4xf32>
    %cst_87 = arith.constant 1.000000e+00 : f32
    %127 = vector.broadcast %cst_87 : f32 to vector<4x4xf32>
    %128 = arith.addf %127, %126 : vector<4x4xf32>
    %cst_88 = arith.constant 1.000000e+00 : f32
    %129 = vector.broadcast %cst_88 : f32 to vector<4x4xf32>
    %130 = arith.divf %129, %128 : vector<4x4xf32>
    %cst_89 = arith.constant dense<0.000000e+00> : vector<4x4xf32>
    %131 = tpu.matmul %121, %130, %cst_89 {dimension_numbers = #tpu.dot_dimension_numbers<[1], [0], [0], [1], [0, 0, 1, 1], [], []>} : vector<4x4xf32>, vector<4x4xf32>, vector<4x4xf32> -> vector<4x4xf32>
    %cst_90 = arith.constant dense<0xFF800000> : vector<4xf32>
    %132 = vector.multi_reduction <maximumf>, %131, %cst_90 [0] : vector<4x4xf32> to vector<4xf32>
    %133 = vector.shape_cast %132 : vector<4xf32> to vector<1x4xf32>
    %134 = vector.broadcast %133 : vector<1x4xf32> to vector<4x4xf32>
    %135 = arith.subf %131, %134 : vector<4x4xf32>
    %136 = math.exp %135 : vector<4x4xf32>
    %cst_91 = arith.constant dense<0.000000e+00> : vector<4xf32>
    %137 = vector.multi_reduction <add>, %136, %cst_91 [0] : vector<4x4xf32> to vector<4xf32>
    %138 = vector.shape_cast %137 : vector<4xf32> to vector<1x4xf32>
    %139 = vector.broadcast %138 : vector<1x4xf32> to vector<4x4xf32>
    %140 = arith.divf %136, %139 : vector<4x4xf32>
    %c0_92 = arith.constant 0 : index
    %c0_93 = arith.constant 0 : index
    %141 = vector.load %arg28[%c0_92, %c0_93] : memref<32x4xf32, #tpu.memory_space<vmem>>, vector<32x4xf32>
    %cst_94 = arith.constant dense<0.000000e+00> : vector<32x4xf32>
    %142 = tpu.matmul %141, %140, %cst_94 {dimension_numbers = #tpu.dot_dimension_numbers<[1], [0], [0], [1], [0, 0, 1, 1], [], []>} : vector<32x4xf32>, vector<4x4xf32>, vector<32x4xf32> -> vector<32x4xf32>
    %c0_95 = arith.constant 0 : index
    %c0_96 = arith.constant 0 : index
    %143 = vector.load %arg25[%c0_95, %c0_96] : memref<1x4xf32, #tpu.memory_space<vmem>>, vector<1x4xf32>
    %144 = vector.broadcast %143 : vector<1x4xf32> to vector<32x4xf32>
    %145 = arith.mulf %142, %144 : vector<32x4xf32>
    %cst_97 = arith.constant dense<0.000000e+00> : vector<32xf32>
    %146 = vector.multi_reduction <add>, %145, %cst_97 [1] : vector<32x4xf32> to vector<32xf32>
    %147 = vector.shape_cast %146 : vector<32xf32> to vector<32x1xf32>
    %c0_98 = arith.constant 0 : index
    %c0_99 = arith.constant 0 : index
    %148 = vector.load %arg26[%c0_98, %c0_99] : memref<32x4xf32, #tpu.memory_space<vmem>>, vector<32x4xf32>
    %149 = vector.broadcast %147 : vector<32x1xf32> to vector<32x4xf32>
    %150 = arith.mulf %148, %149 : vector<32x4xf32>
    %cst_100 = arith.constant dense<0.000000e+00> : vector<16x4xf32>
    %151 = tpu.matmul %106, %150, %cst_100 {dimension_numbers = #tpu.dot_dimension_numbers<[1], [0], [0], [1], [0, 0, 1, 1], [], []>} : vector<16x32xf32>, vector<32x4xf32>, vector<16x4xf32> -> vector<16x4xf32>
    %c0_101 = arith.constant 0 : index
    %c0_102 = arith.constant 0 : index
    %152 = vector.load %arg27[%c0_101, %c0_102] : memref<32x4xf32, #tpu.memory_space<vmem>>, vector<32x4xf32>
    %cst_103 = arith.constant dense<0.000000e+00> : vector<16x4xf32>
    %153 = tpu.matmul %106, %152, %cst_103 {dimension_numbers = #tpu.dot_dimension_numbers<[1], [0], [0], [1], [0, 0, 1, 1], [], []>} : vector<16x32xf32>, vector<32x4xf32>, vector<16x4xf32> -> vector<16x4xf32>
    %cst_104 = arith.constant dense<0.000000e+00> : vector<16x4xf32>
    %154 = tpu.matmul %153, %140, %cst_104 {dimension_numbers = #tpu.dot_dimension_numbers<[1], [0], [0], [1], [0, 0, 1, 1], [], []>} : vector<16x4xf32>, vector<4x4xf32>, vector<16x4xf32> -> vector<16x4xf32>
    %cst_105 = arith.constant dense<0.000000e+00> : vector<16x16xf32>
    %155 = tpu.matmul %154, %151, %cst_105 {dimension_numbers = #tpu.dot_dimension_numbers<[1], [1], [0], [0], [0, 0, 1, 0], [], []>} : vector<16x4xf32>, vector<16x4xf32>, vector<16x16xf32> -> vector<16x16xf32>
    %c0_106 = arith.constant 0 : index
    %c0_107 = arith.constant 0 : index
    %156 = vector.load %arg29[%c0_106, %c0_107] : memref<16x16xf32, #tpu.memory_space<vmem>>, vector<16x16xf32>
    %157 = arith.addf %155, %156 : vector<16x16xf32>
    %cst_108 = arith.constant 0.000000e+00 : f32
    %158 = vector.broadcast %cst_108 : f32 to vector<16x16xf32>
    %159 = arith.subf %158, %157 : vector<16x16xf32>
    %160 = math.exp %159 : vector<16x16xf32>
    %cst_109 = arith.constant 1.000000e+00 : f32
    %161 = vector.broadcast %cst_109 : f32 to vector<16x16xf32>
    %162 = arith.addf %161, %160 : vector<16x16xf32>
    %cst_110 = arith.constant 1.000000e+00 : f32
    %163 = vector.broadcast %cst_110 : f32 to vector<16x16xf32>
    %164 = arith.divf %163, %162 : vector<16x16xf32>
    %c0_111 = arith.constant 0 : index
    %c0_112 = arith.constant 0 : index
    %165 = vector.load %arg30[%c0_111, %c0_112] : memref<16x16xf32, #tpu.memory_space<vmem>>, vector<16x16xf32>
    %cst_113 = arith.constant dense<0.000000e+00> : vector<16x16xf32>
    %166 = tpu.matmul %164, %165, %cst_113 {dimension_numbers = #tpu.dot_dimension_numbers<[1], [0], [0], [1], [0, 0, 1, 1], [], []>} : vector<16x16xf32>, vector<16x16xf32>, vector<16x16xf32> -> vector<16x16xf32>
    %cst_114 = arith.constant dense<0xFF800000> : vector<16xf32>
    %167 = vector.multi_reduction <maximumf>, %166, %cst_114 [1] : vector<16x16xf32> to vector<16xf32>
    %168 = vector.shape_cast %167 : vector<16xf32> to vector<16x1xf32>
    %169 = vector.broadcast %168 : vector<16x1xf32> to vector<16x16xf32>
    %170 = arith.subf %166, %169 : vector<16x16xf32>
    %171 = math.exp %170 : vector<16x16xf32>
    %cst_115 = arith.constant dense<0.000000e+00> : vector<16xf32>
    %172 = vector.multi_reduction <add>, %171, %cst_115 [1] : vector<16x16xf32> to vector<16xf32>
    %173 = vector.shape_cast %172 : vector<16xf32> to vector<16x1xf32>
    %174 = vector.broadcast %173 : vector<16x1xf32> to vector<16x16xf32>
    %175 = arith.divf %171, %174 : vector<16x16xf32>
    %c0_116 = arith.constant 0 : index
    %c0_117 = arith.constant 0 : index
    %176 = vector.load %arg32[%c0_116, %c0_117] : memref<32x96xf32, #tpu.memory_space<vmem>>, vector<32x96xf32>
    %cst_118 = arith.constant dense<0.000000e+00> : vector<16x96xf32>
    %177 = tpu.matmul %106, %176, %cst_118 {dimension_numbers = #tpu.dot_dimension_numbers<[1], [0], [0], [1], [0, 0, 1, 1], [], []>} : vector<16x32xf32>, vector<32x96xf32>, vector<16x96xf32> -> vector<16x96xf32>
    %178 = vector.extract_strided_slice %177 {offsets = [0, 0], sizes = [16, 32], strides = [1, 1]} : vector<16x96xf32> to vector<16x32xf32>
    %179 = vector.extract_strided_slice %177 {offsets = [0, 32], sizes = [16, 32], strides = [1, 1]} : vector<16x96xf32> to vector<16x32xf32>
    %180 = vector.extract_strided_slice %177 {offsets = [0, 64], sizes = [16, 32], strides = [1, 1]} : vector<16x96xf32> to vector<16x32xf32>
    %181 = tpu.concatenate %178, %179, %180 in 0 : vector<16x32xf32>, vector<16x32xf32>, vector<16x32xf32> -> vector<48x32xf32>
    %c0_119 = arith.constant 0 : index
    %c0_120 = arith.constant 0 : index
    %182 = vector.load %arg31[%c0_119, %c0_120] : memref<16x48xf32, #tpu.memory_space<vmem>>, vector<16x48xf32>
    %183 = tpu.concatenate %175, %175, %175 in 1 : vector<16x16xf32>, vector<16x16xf32>, vector<16x16xf32> -> vector<16x48xf32>
    %184 = arith.mulf %182, %183 : vector<16x48xf32>
    %cst_121 = arith.constant dense<0.000000e+00> : vector<16x32xf32>
    %185 = tpu.matmul %184, %181, %cst_121 {dimension_numbers = #tpu.dot_dimension_numbers<[1], [0], [0], [1], [0, 0, 1, 1], [], []>} : vector<16x48xf32>, vector<48x32xf32>, vector<16x32xf32> -> vector<16x32xf32>
    %cst_122 = arith.constant 0.000000e+00 : f32
    %186 = vector.broadcast %cst_122 : f32 to vector<16x32xf32>
    %187 = arith.maximumf %185, %186 : vector<16x32xf32>
    %c0_123 = arith.constant 0 : index
    %c0_124 = arith.constant 0 : index
    %188 = vector.load %arg33[%c0_123, %c0_124] : memref<32x32xf32, #tpu.memory_space<vmem>>, vector<32x32xf32>
    %cst_125 = arith.constant dense<0.000000e+00> : vector<16x32xf32>
    %189 = tpu.matmul %187, %188, %cst_125 {dimension_numbers = #tpu.dot_dimension_numbers<[1], [0], [0], [1], [0, 0, 1, 1], [], []>} : vector<16x32xf32>, vector<32x32xf32>, vector<16x32xf32> -> vector<16x32xf32>
    %c0_126 = arith.constant 0 : index
    %c0_127 = arith.constant 0 : index
    %190 = vector.load %arg34[%c0_126, %c0_127] : memref<32x32xf32, #tpu.memory_space<vmem>>, vector<32x32xf32>
    %cst_128 = arith.constant dense<0.000000e+00> : vector<16x32xf32>
    %191 = tpu.matmul %106, %190, %cst_128 {dimension_numbers = #tpu.dot_dimension_numbers<[1], [0], [0], [1], [0, 0, 1, 1], [], []>} : vector<16x32xf32>, vector<32x32xf32>, vector<16x32xf32> -> vector<16x32xf32>
    %192 = arith.addf %189, %191 : vector<16x32xf32>
    %c0_129 = arith.constant 0 : index
    %c0_130 = arith.constant 0 : index
    %193 = vector.load %arg35[%c0_129, %c0_130] : memref<1x32xf32, #tpu.memory_space<vmem>>, vector<1x32xf32>
    %194 = vector.broadcast %193 : vector<1x32xf32> to vector<16x32xf32>
    %195 = arith.addf %192, %194 : vector<16x32xf32>
    %cst_131 = arith.constant 0.000000e+00 : f32
    %196 = vector.broadcast %cst_131 : f32 to vector<16x32xf32>
    %197 = arith.maximumf %195, %196 : vector<16x32xf32>
    %c0_132 = arith.constant 0 : index
    %c0_133 = arith.constant 0 : index
    %198 = vector.load %arg38[%c0_132, %c0_133] : memref<32x4xf32, #tpu.memory_space<vmem>>, vector<32x4xf32>
    %cst_134 = arith.constant dense<0.000000e+00> : vector<16x4xf32>
    %199 = tpu.matmul %197, %198, %cst_134 {dimension_numbers = #tpu.dot_dimension_numbers<[1], [0], [0], [1], [0, 0, 1, 1], [], []>} : vector<16x32xf32>, vector<32x4xf32>, vector<16x4xf32> -> vector<16x4xf32>
    %c0_135 = arith.constant 0 : index
    %c0_136 = arith.constant 0 : index
    %200 = vector.load %arg39[%c0_135, %c0_136] : memref<4x32xf32, #tpu.memory_space<vmem>>, vector<4x32xf32>
    %cst_137 = arith.constant dense<0.000000e+00> : vector<16x32xf32>
    %201 = tpu.matmul %199, %200, %cst_137 {dimension_numbers = #tpu.dot_dimension_numbers<[1], [0], [0], [1], [0, 0, 1, 1], [], []>} : vector<16x4xf32>, vector<4x32xf32>, vector<16x32xf32> -> vector<16x32xf32>
    %202 = arith.subf %197, %201 : vector<16x32xf32>
    %203 = arith.mulf %202, %202 : vector<16x32xf32>
    %c0_138 = arith.constant 0 : index
    %c0_139 = arith.constant 0 : index
    %204 = vector.load %arg38[%c0_138, %c0_139] : memref<32x4xf32, #tpu.memory_space<vmem>>, vector<32x4xf32>
    %cst_140 = arith.constant dense<0.000000e+00> : vector<16x4xf32>
    %205 = tpu.matmul %203, %204, %cst_140 {dimension_numbers = #tpu.dot_dimension_numbers<[1], [0], [0], [1], [0, 0, 1, 1], [], []>} : vector<16x32xf32>, vector<32x4xf32>, vector<16x4xf32> -> vector<16x4xf32>
    %cst_141 = arith.constant 9.99999974E-6 : f32
    %206 = vector.broadcast %cst_141 : f32 to vector<16x4xf32>
    %207 = arith.addf %205, %206 : vector<16x4xf32>
    %208 = math.rsqrt %207 : vector<16x4xf32>
    %c0_142 = arith.constant 0 : index
    %c0_143 = arith.constant 0 : index
    %209 = vector.load %arg39[%c0_142, %c0_143] : memref<4x32xf32, #tpu.memory_space<vmem>>, vector<4x32xf32>
    %cst_144 = arith.constant dense<0.000000e+00> : vector<16x32xf32>
    %210 = tpu.matmul %208, %209, %cst_144 {dimension_numbers = #tpu.dot_dimension_numbers<[1], [0], [0], [1], [0, 0, 1, 1], [], []>} : vector<16x4xf32>, vector<4x32xf32>, vector<16x32xf32> -> vector<16x32xf32>
    %211 = arith.mulf %202, %210 : vector<16x32xf32>
    %c0_145 = arith.constant 0 : index
    %c0_146 = arith.constant 0 : index
    %212 = vector.load %arg36[%c0_145, %c0_146] : memref<1x32xf32, #tpu.memory_space<vmem>>, vector<1x32xf32>
    %213 = vector.broadcast %212 : vector<1x32xf32> to vector<16x32xf32>
    %214 = arith.mulf %211, %213 : vector<16x32xf32>
    %c0_147 = arith.constant 0 : index
    %c0_148 = arith.constant 0 : index
    %215 = vector.load %arg37[%c0_147, %c0_148] : memref<1x32xf32, #tpu.memory_space<vmem>>, vector<1x32xf32>
    %216 = vector.broadcast %215 : vector<1x32xf32> to vector<16x32xf32>
    %217 = arith.addf %214, %216 : vector<16x32xf32>
    %c0_149 = arith.constant 0 : index
    %c0_150 = arith.constant 0 : index
    %218 = vector.load %arg40[%c0_149, %c0_150] : memref<4x32xf32, #tpu.memory_space<vmem>>, vector<4x32xf32>
    %cst_151 = arith.constant dense<0.000000e+00> : vector<4x16xf32>
    %219 = tpu.matmul %218, %217, %cst_151 {dimension_numbers = #tpu.dot_dimension_numbers<[1], [1], [0], [0], [0, 0, 1, 0], [], []>} : vector<4x32xf32>, vector<16x32xf32>, vector<4x16xf32> -> vector<4x16xf32>
    %c0_152 = arith.constant 0 : index
    %c0_153 = arith.constant 0 : index
    %220 = vector.load %arg41[%c0_152, %c0_153] : memref<4x1xf32, #tpu.memory_space<vmem>>, vector<4x1xf32>
    %221 = vector.broadcast %220 : vector<4x1xf32> to vector<4x16xf32>
    %222 = arith.addf %219, %221 : vector<4x16xf32>
    %c0_154 = arith.constant 0 : index
    %c0_155 = arith.constant 0 : index
    %c0_156 = arith.constant 0 : index
    %223 = vector.load %arg42[%c0_154, %c0_155, %c0_156] : memref<1x4x16xf32, #tpu.memory_space<vmem>>, vector<1x4x16xf32>
    %224 = vector.shape_cast %223 : vector<1x4x16xf32> to vector<4x16xf32>
    %225 = vector.shape_cast %222 : vector<4x16xf32> to vector<1x4x16xf32>
    tpu.vector_store %arg42[%c0_154, %c0_155, %c0_156], %225 {strides = array<i32>} : memref<1x4x16xf32, #tpu.memory_space<vmem>>, vector<1x4x16xf32>,
    return
  }
  func.func @transform_0(%arg0: i32) -> (i32, i32, i32) {
    %c0_i32 = arith.constant 0 : i32
    %c0_i32_0 = arith.constant 0 : i32
    %c0_i32_1 = arith.constant 0 : i32
    return %arg0, %c0_i32, %c0_i32_0 : i32, i32, i32
  }
  func.func @transform_1(%arg0: i32) -> (i32, i32) {
    %c0_i32 = arith.constant 0 : i32
    %c0_i32_0 = arith.constant 0 : i32
    %c0_i32_1 = arith.constant 0 : i32
    return %c0_i32, %c0_i32_0 : i32, i32
  }
  func.func @transform_2(%arg0: i32) -> (i32, i32) {
    %c0_i32 = arith.constant 0 : i32
    %c0_i32_0 = arith.constant 0 : i32
    %c0_i32_1 = arith.constant 0 : i32
    return %c0_i32, %c0_i32_0 : i32, i32
  }
  func.func @transform_3(%arg0: i32) -> (i32, i32) {
    %c0_i32 = arith.constant 0 : i32
    %c0_i32_0 = arith.constant 0 : i32
    %c0_i32_1 = arith.constant 0 : i32
    return %c0_i32, %c0_i32_0 : i32, i32
  }
  func.func @transform_4(%arg0: i32) -> (i32, i32) {
    %c0_i32 = arith.constant 0 : i32
    %c0_i32_0 = arith.constant 0 : i32
    %c0_i32_1 = arith.constant 0 : i32
    return %c0_i32, %c0_i32_0 : i32, i32
  }
  func.func @transform_5(%arg0: i32) -> (i32, i32) {
    %c0_i32 = arith.constant 0 : i32
    %c0_i32_0 = arith.constant 0 : i32
    %c0_i32_1 = arith.constant 0 : i32
    return %c0_i32, %c0_i32_0 : i32, i32
  }
  func.func @transform_6(%arg0: i32) -> (i32, i32) {
    %c0_i32 = arith.constant 0 : i32
    %c0_i32_0 = arith.constant 0 : i32
    %c0_i32_1 = arith.constant 0 : i32
    return %c0_i32, %c0_i32_0 : i32, i32
  }
  func.func @transform_7(%arg0: i32) -> (i32, i32) {
    %c0_i32 = arith.constant 0 : i32
    %c0_i32_0 = arith.constant 0 : i32
    %c0_i32_1 = arith.constant 0 : i32
    return %c0_i32, %c0_i32_0 : i32, i32
  }
  func.func @transform_8(%arg0: i32) -> (i32, i32) {
    %c0_i32 = arith.constant 0 : i32
    %c0_i32_0 = arith.constant 0 : i32
    %c0_i32_1 = arith.constant 0 : i32
    return %c0_i32, %c0_i32_0 : i32, i32
  }
  func.func @transform_9(%arg0: i32) -> (i32, i32) {
    %c0_i32 = arith.constant 0 : i32
    %c0_i32_0 = arith.constant 0 : i32
    %c0_i32_1 = arith.constant 0 : i32
    return %c0_i32, %c0_i32_0 : i32, i32
  }
  func.func @transform_10(%arg0: i32) -> (i32, i32) {
    %c0_i32 = arith.constant 0 : i32
    %c0_i32_0 = arith.constant 0 : i32
    %c0_i32_1 = arith.constant 0 : i32
    return %c0_i32, %c0_i32_0 : i32, i32
  }
  func.func @transform_11(%arg0: i32) -> (i32, i32) {
    %c0_i32 = arith.constant 0 : i32
    %c0_i32_0 = arith.constant 0 : i32
    %c0_i32_1 = arith.constant 0 : i32
    return %c0_i32, %c0_i32_0 : i32, i32
  }
  func.func @transform_12(%arg0: i32) -> (i32, i32) {
    %c0_i32 = arith.constant 0 : i32
    %c0_i32_0 = arith.constant 0 : i32
    %c0_i32_1 = arith.constant 0 : i32
    return %c0_i32, %c0_i32_0 : i32, i32
  }
  func.func @transform_13(%arg0: i32) -> (i32, i32) {
    %c0_i32 = arith.constant 0 : i32
    %c0_i32_0 = arith.constant 0 : i32
    %c0_i32_1 = arith.constant 0 : i32
    return %c0_i32, %c0_i32_0 : i32, i32
  }
  func.func @transform_14(%arg0: i32) -> (i32, i32) {
    %c0_i32 = arith.constant 0 : i32
    %c0_i32_0 = arith.constant 0 : i32
    %c0_i32_1 = arith.constant 0 : i32
    return %c0_i32, %c0_i32_0 : i32, i32
  }
  func.func @transform_15(%arg0: i32) -> (i32, i32) {
    %c0_i32 = arith.constant 0 : i32
    %c0_i32_0 = arith.constant 0 : i32
    %c0_i32_1 = arith.constant 0 : i32
    return %c0_i32, %c0_i32_0 : i32, i32
  }
  func.func @transform_16(%arg0: i32) -> (i32, i32) {
    %c0_i32 = arith.constant 0 : i32
    %c0_i32_0 = arith.constant 0 : i32
    %c0_i32_1 = arith.constant 0 : i32
    return %c0_i32, %c0_i32_0 : i32, i32
  }
  func.func @transform_17(%arg0: i32) -> (i32, i32) {
    %c0_i32 = arith.constant 0 : i32
    %c0_i32_0 = arith.constant 0 : i32
    %c0_i32_1 = arith.constant 0 : i32
    return %c0_i32, %c0_i32_0 : i32, i32
  }
  func.func @transform_18(%arg0: i32) -> (i32, i32) {
    %c0_i32 = arith.constant 0 : i32
    %c0_i32_0 = arith.constant 0 : i32
    %c0_i32_1 = arith.constant 0 : i32
    return %c0_i32, %c0_i32_0 : i32, i32
  }
  func.func @transform_19(%arg0: i32) -> (i32, i32) {
    %c0_i32 = arith.constant 0 : i32
    %c0_i32_0 = arith.constant 0 : i32
    %c0_i32_1 = arith.constant 0 : i32
    return %c0_i32, %c0_i32_0 : i32, i32
  }
  func.func @transform_20(%arg0: i32) -> (i32, i32) {
    %c0_i32 = arith.constant 0 : i32
    %c0_i32_0 = arith.constant 0 : i32
    %c0_i32_1 = arith.constant 0 : i32
    return %c0_i32, %c0_i32_0 : i32, i32
  }
  func.func @transform_21(%arg0: i32) -> (i32, i32) {
    %c0_i32 = arith.constant 0 : i32
    %c0_i32_0 = arith.constant 0 : i32
    %c0_i32_1 = arith.constant 0 : i32
    return %c0_i32, %c0_i32_0 : i32, i32
  }
  func.func @transform_22(%arg0: i32) -> (i32, i32) {
    %c0_i32 = arith.constant 0 : i32
    %c0_i32_0 = arith.constant 0 : i32
    %c0_i32_1 = arith.constant 0 : i32
    return %c0_i32, %c0_i32_0 : i32, i32
  }
  func.func @transform_23(%arg0: i32) -> (i32, i32) {
    %c0_i32 = arith.constant 0 : i32
    %c0_i32_0 = arith.constant 0 : i32
    %c0_i32_1 = arith.constant 0 : i32
    return %c0_i32, %c0_i32_0 : i32, i32
  }
  func.func @transform_24(%arg0: i32) -> (i32, i32) {
    %c0_i32 = arith.constant 0 : i32
    %c0_i32_0 = arith.constant 0 : i32
    %c0_i32_1 = arith.constant 0 : i32
    return %c0_i32, %c0_i32_0 : i32, i32
  }
  func.func @transform_25(%arg0: i32) -> (i32, i32) {
    %c0_i32 = arith.constant 0 : i32
    %c0_i32_0 = arith.constant 0 : i32
    %c0_i32_1 = arith.constant 0 : i32
    return %c0_i32, %c0_i32_0 : i32, i32
  }
  func.func @transform_26(%arg0: i32) -> (i32, i32) {
    %c0_i32 = arith.constant 0 : i32
    %c0_i32_0 = arith.constant 0 : i32
    %c0_i32_1 = arith.constant 0 : i32
    return %c0_i32, %c0_i32_0 : i32, i32
  }
  func.func @transform_27(%arg0: i32) -> (i32, i32) {
    %c0_i32 = arith.constant 0 : i32
    %c0_i32_0 = arith.constant 0 : i32
    %c0_i32_1 = arith.constant 0 : i32
    return %c0_i32, %c0_i32_0 : i32, i32
  }
  func.func @transform_28(%arg0: i32) -> (i32, i32) {
    %c0_i32 = arith.constant 0 : i32
    %c0_i32_0 = arith.constant 0 : i32
    %c0_i32_1 = arith.constant 0 : i32
    return %c0_i32, %c0_i32_0 : i32, i32
  }
  func.func @transform_29(%arg0: i32) -> (i32, i32) {
    %c0_i32 = arith.constant 0 : i32
    %c0_i32_0 = arith.constant 0 : i32
    %c0_i32_1 = arith.constant 0 : i32
    return %c0_i32, %c0_i32_0 : i32, i32
  }
  func.func @transform_30(%arg0: i32) -> (i32, i32) {
    %c0_i32 = arith.constant 0 : i32
    %c0_i32_0 = arith.constant 0 : i32
    %c0_i32_1 = arith.constant 0 : i32
    return %c0_i32, %c0_i32_0 : i32, i32
  }
  func.func @transform_31(%arg0: i32) -> (i32, i32) {
    %c0_i32 = arith.constant 0 : i32
    %c0_i32_0 = arith.constant 0 : i32
    %c0_i32_1 = arith.constant 0 : i32
    return %c0_i32, %c0_i32_0 : i32, i32
  }
  func.func @transform_32(%arg0: i32) -> (i32, i32) {
    %c0_i32 = arith.constant 0 : i32
    %c0_i32_0 = arith.constant 0 : i32
    %c0_i32_1 = arith.constant 0 : i32
    return %c0_i32, %c0_i32_0 : i32, i32
  }
  func.func @transform_33(%arg0: i32) -> (i32, i32) {
    %c0_i32 = arith.constant 0 : i32
    %c0_i32_0 = arith.constant 0 : i32
    %c0_i32_1 = arith.constant 0 : i32
    return %c0_i32, %c0_i32_0 : i32, i32
  }
  func.func @transform_34(%arg0: i32) -> (i32, i32) {
    %c0_i32 = arith.constant 0 : i32
    %c0_i32_0 = arith.constant 0 : i32
    %c0_i32_1 = arith.constant 0 : i32
    return %c0_i32, %c0_i32_0 : i32, i32
  }
  func.func @transform_35(%arg0: i32) -> (i32, i32) {
    %c0_i32 = arith.constant 0 : i32
    %c0_i32_0 = arith.constant 0 : i32
    %c0_i32_1 = arith.constant 0 : i32
    return %c0_i32, %c0_i32_0 : i32, i32
  }
  func.func @transform_36(%arg0: i32) -> (i32, i32) {
    %c0_i32 = arith.constant 0 : i32
    %c0_i32_0 = arith.constant 0 : i32
    %c0_i32_1 = arith.constant 0 : i32
    return %c0_i32, %c0_i32_0 : i32, i32
  }
  func.func @transform_37(%arg0: i32) -> (i32, i32) {
    %c0_i32 = arith.constant 0 : i32
    %c0_i32_0 = arith.constant 0 : i32
    %c0_i32_1 = arith.constant 0 : i32
    return %c0_i32, %c0_i32_0 : i32, i32
  }
  func.func @transform_38(%arg0: i32) -> (i32, i32) {
    %c0_i32 = arith.constant 0 : i32
    %c0_i32_0 = arith.constant 0 : i32
    %c0_i32_1 = arith.constant 0 : i32
    return %c0_i32, %c0_i32_0 : i32, i32
  }
  func.func @transform_39(%arg0: i32) -> (i32, i32) {
    %c0_i32 = arith.constant 0 : i32
    %c0_i32_0 = arith.constant 0 : i32
    %c0_i32_1 = arith.constant 0 : i32
    return %c0_i32, %c0_i32_0 : i32, i32
  }
  func.func @transform_40(%arg0: i32) -> (i32, i32) {
    %c0_i32 = arith.constant 0 : i32
    %c0_i32_0 = arith.constant 0 : i32
    %c0_i32_1 = arith.constant 0 : i32
    return %c0_i32, %c0_i32_0 : i32, i32
  }
  func.func @transform_41(%arg0: i32) -> (i32, i32, i32) {
    %c0_i32 = arith.constant 0 : i32
    %c0_i32_0 = arith.constant 0 : i32
    %c0_i32_1 = arith.constant 0 : i32
    return %arg0, %c0_i32, %c0_i32_0 : i32, i32, i32
  }
}

</mosaic_0001>

<llo_original>
// kernel: tpu_custom_call.1
$region0: #{tpu_custom_call.1}
  #allocation0 [shape = 'u32[]', space=smem, size = 0x4, offset = 0x4, fixed_abs, tag = 'smem constant byte address 0x4 - core index']
  #allocation1 [shape = 'u32[72,128]{1,0:T(1,128)}', space=vmem, size = 0x9000, scoped, tag = 'internal scratch']
  %s0 = inlined_call_operand.smem [shape: u32[42], index: -1, kind: input, shape index: {}]
  %s1 = sld [smem:[%s0]]
  %s2 = scalar_lea.smem %s0, 1
  %s3 = sld [smem:[%s2]]
  %s4 = scalar_lea.smem %s0, 2
  %s5 = sld [smem:[%s4]]
  %s6 = scalar_lea.smem %s0, 3
  %s7 = sld [smem:[%s6]]
  %s8 = scalar_lea.smem %s0, 4
  %s9 = sld [smem:[%s8]]
  %s10 = scalar_lea.smem %s0, 5
  %s11 = sld [smem:[%s10]]
  %s12 = scalar_lea.smem %s0, 6
  %s13 = sld [smem:[%s12]]
  %s14 = scalar_lea.smem %s0, 7
  %s15 = sld [smem:[%s14]]
  %s16 = scalar_lea.smem %s0, 8
  %s17 = sld [smem:[%s16]]
  %s18 = scalar_lea.smem %s0, 9
  %s19 = sld [smem:[%s18]]
  %s20 = scalar_lea.smem %s0, 10
  %s21 = sld [smem:[%s20]]
  %s22 = scalar_lea.smem %s0, 11
  %s23 = sld [smem:[%s22]]
  %s24 = scalar_lea.smem %s0, 12
  %s25 = sld [smem:[%s24]]
  %s26 = scalar_lea.smem %s0, 13
  %s27 = sld [smem:[%s26]]
  %s28 = scalar_lea.smem %s0, 14
  %s29 = sld [smem:[%s28]]
  %s30 = scalar_lea.smem %s0, 15
  %s31 = sld [smem:[%s30]]
  %s32 = scalar_lea.smem %s0, 16
  %s33 = sld [smem:[%s32]]
  %s34 = scalar_lea.smem %s0, 17
  %s35 = sld [smem:[%s34]]
  %s36 = scalar_lea.smem %s0, 18
  %s37 = sld [smem:[%s36]]
  %s38 = scalar_lea.smem %s0, 19
  %s39 = sld [smem:[%s38]]
  %s40 = scalar_lea.smem %s0, 20
  %s41 = sld [smem:[%s40]]
  %s42 = scalar_lea.smem %s0, 21
  %s43 = sld [smem:[%s42]]
  %s44 = scalar_lea.smem %s0, 22
  %s45 = sld [smem:[%s44]]
  %s46 = scalar_lea.smem %s0, 23
  %s47 = sld [smem:[%s46]]
  %s48 = scalar_lea.smem %s0, 24
  %s49 = sld [smem:[%s48]]
  %s50 = scalar_lea.smem %s0, 25
  %s51 = sld [smem:[%s50]]
  %s52 = scalar_lea.smem %s0, 26
  %s53 = sld [smem:[%s52]]
  %s54 = scalar_lea.smem %s0, 27
  %s55 = sld [smem:[%s54]]
  %s56 = scalar_lea.smem %s0, 28
  %s57 = sld [smem:[%s56]]
  %s58 = scalar_lea.smem %s0, 29
  %s59 = sld [smem:[%s58]]
  %s60 = scalar_lea.smem %s0, 30
  %s61 = sld [smem:[%s60]]
  %s62 = scalar_lea.smem %s0, 31
  %s63 = sld [smem:[%s62]]
  %s64 = scalar_lea.smem %s0, 32
  %s65 = sld [smem:[%s64]]
  %s66 = scalar_lea.smem %s0, 33
  %s67 = sld [smem:[%s66]]
  %s68 = scalar_lea.smem %s0, 34
  %s69 = sld [smem:[%s68]]
  %s70 = scalar_lea.smem %s0, 35
  %s71 = sld [smem:[%s70]]
  %s72 = scalar_lea.smem %s0, 36
  %s73 = sld [smem:[%s72]]
  %s74 = scalar_lea.smem %s0, 37
  %s75 = sld [smem:[%s74]]
  %s76 = scalar_lea.smem %s0, 38
  %s77 = sld [smem:[%s76]]
  %s78 = scalar_lea.smem %s0, 39
  %s79 = sld [smem:[%s78]]
  %s80 = scalar_lea.smem %s0, 40
  %s81 = sld [smem:[%s80]]
  %s82 = scalar_lea.smem %s0, 41
  %s83 = sld [smem:[%s82]]
  %s84 = sld [smem:[#allocation0]]
  $region197: #{tpu_custom_call.1} parent=0
    _
  %s86 = ssub.s32 1, %s84
  %s87 = scalar_select 0, %s86, %s84
  $region1: #{tpu_custom_call.1} parent=0
    #allocation2 [shape = 'u8[4096]{0}', space=vmem, size = 0x1000, scoped, tag = 'output window, operand 0']
    #allocation3 [shape = 's32[2]{0}', space=sflag, size = 0x8, scoped, tag = 'scoped memory for tpu_custom_call.1']
    %88 = vsyncpa [#allocation3], 0
    %s89 = scalar_lea.sflag [#allocation3], 1
    %90 = vsyncpa %s89, 0
    loop: start=0, step=1, limit=4
    $region2: #{tpu_custom_call.1} parent=1 // loop_pre_header
      _
    $region3: #{tpu_custom_call.1} parent=1 // loop_header
      %s92 = sphi 0, %s96
      %p93 = scmp.ge.s32.totalorder %s92, 4
      %s102 = sphi 0, %s104
      %s105 = sphi 0, %s102
      %s106 = sphi 0, %s105
      %s122 = sphi 0, %s106
      %s126 = sphi 0, %s126
      %s128 = sphi 0, %s126
      %s129 = sphi 0, %s128
      %s143 = sphi 0, %s129
      %s147 = sphi 0, %s147
      %s149 = sphi 0, %s147
      %s150 = sphi 0, %s149
      %s164 = sphi 0, %s150
      %s168 = sphi 0, %s168
      %s170 = sphi 0, %s168
      %s171 = sphi 0, %s170
      %s185 = sphi 0, %s171
      %s189 = sphi 0, %s189
      %s191 = sphi 0, %s189
      %s192 = sphi 0, %s191
      %s206 = sphi 0, %s192
      %s210 = sphi 0, %s210
      %s212 = sphi 0, %s210
      %s213 = sphi 0, %s212
      %s227 = sphi 0, %s213
      %s231 = sphi 0, %s231
      %s233 = sphi 0, %s231
      %s234 = sphi 0, %s233
      %s248 = sphi 0, %s234
      %s252 = sphi 0, %s252
      %s254 = sphi 0, %s252
      %s255 = sphi 0, %s254
      %s269 = sphi 0, %s255
      %s273 = sphi 0, %s273
      %s275 = sphi 0, %s273
      %s276 = sphi 0, %s275
      %s290 = sphi 0, %s276
      %s294 = sphi 0, %s294
      %s296 = sphi 0, %s294
      %s297 = sphi 0, %s296
      %s311 = sphi 0, %s297
      %s315 = sphi 0, %s315
      %s317 = sphi 0, %s315
      %s318 = sphi 0, %s317
      %s332 = sphi 0, %s318
      %s336 = sphi 0, %s336
      %s338 = sphi 0, %s336
      %s339 = sphi 0, %s338
      %s353 = sphi 0, %s339
      %s357 = sphi 0, %s357
      %s359 = sphi 0, %s357
      %s360 = sphi 0, %s359
      %s374 = sphi 0, %s360
      %s378 = sphi 0, %s378
      %s380 = sphi 0, %s378
      %s381 = sphi 0, %s380
      %s395 = sphi 0, %s381
      %s399 = sphi 0, %s399
      %s401 = sphi 0, %s399
      %s402 = sphi 0, %s401
      %s416 = sphi 0, %s402
      %s420 = sphi 0, %s420
      %s422 = sphi 0, %s420
      %s423 = sphi 0, %s422
      %s437 = sphi 0, %s423
      %s441 = sphi 0, %s441
      %s443 = sphi 0, %s441
      %s444 = sphi 0, %s443
      %s458 = sphi 0, %s444
      %s462 = sphi 0, %s462
      %s464 = sphi 0, %s462
      %s465 = sphi 0, %s464
      %s479 = sphi 0, %s465
      %s483 = sphi 0, %s483
      %s485 = sphi 0, %s483
      %s486 = sphi 0, %s485
      %s500 = sphi 0, %s486
      %s504 = sphi 0, %s504
      %s506 = sphi 0, %s504
      %s507 = sphi 0, %s506
      %s521 = sphi 0, %s507
      %s525 = sphi 0, %s525
      %s527 = sphi 0, %s525
      %s528 = sphi 0, %s527
      %s542 = sphi 0, %s528
      %s546 = sphi 0, %s546
      %s548 = sphi 0, %s546
      %s549 = sphi 0, %s548
      %s563 = sphi 0, %s549
      %s567 = sphi 0, %s567
      %s569 = sphi 0, %s567
      %s570 = sphi 0, %s569
      %s584 = sphi 0, %s570
      %s588 = sphi 0, %s588
      %s590 = sphi 0, %s588
      %s591 = sphi 0, %s590
      %s605 = sphi 0, %s591
      %s609 = sphi 0, %s609
      %s611 = sphi 0, %s609
      %s612 = sphi 0, %s611
      %s626 = sphi 0, %s612
      %s630 = sphi 0, %s630
      %s632 = sphi 0, %s630
      %s633 = sphi 0, %s632
      %s647 = sphi 0, %s633
      %s651 = sphi 0, %s651
      %s653 = sphi 0, %s651
      %s654 = sphi 0, %s653
      %s668 = sphi 0, %s654
      %s672 = sphi 0, %s672
      %s674 = sphi 0, %s672
      %s675 = sphi 0, %s674
      %s689 = sphi 0, %s675
      %s693 = sphi 0, %s693
      %s695 = sphi 0, %s693
      %s696 = sphi 0, %s695
      %s710 = sphi 0, %s696
      %s714 = sphi 0, %s714
      %s716 = sphi 0, %s714
      %s717 = sphi 0, %s716
      %s731 = sphi 0, %s717
      %s735 = sphi 0, %s735
      %s737 = sphi 0, %s735
      %s738 = sphi 0, %s737
      %s752 = sphi 0, %s738
      %s756 = sphi 0, %s756
      %s758 = sphi 0, %s756
      %s759 = sphi 0, %s758
      %s773 = sphi 0, %s759
      %s777 = sphi 0, %s777
      %s779 = sphi 0, %s777
      %s780 = sphi 0, %s779
      %s794 = sphi 0, %s780
      %s798 = sphi 0, %s798
      %s800 = sphi 0, %s798
      %s801 = sphi 0, %s800
      %s815 = sphi 0, %s801
      %s819 = sphi 0, %s819
      %s821 = sphi 0, %s819
      %s822 = sphi 0, %s821
      %s836 = sphi 0, %s822
      %s840 = sphi 0, %s840
      %s842 = sphi 0, %s840
      %s843 = sphi 0, %s842
      %s857 = sphi 0, %s843
      %s861 = sphi 0, %s861
      %s863 = sphi 0, %s861
      %s864 = sphi 0, %s863
      %s878 = sphi 0, %s864
      %s882 = sphi 0, %s882
      %s884 = sphi 0, %s882
      %s885 = sphi 0, %s884
      %s899 = sphi 0, %s885
      %s903 = sphi 0, %s903
      %s905 = sphi 0, %s903
      %s906 = sphi 0, %s905
      %s920 = sphi 0, %s906
      %s924 = sphi 0, %s924
      %s926 = sphi 0, %s924
      %s927 = sphi 0, %s926
      %s941 = sphi 0, %s927
      %s945 = sphi 0, %s945
      %s947 = sphi 0, %s945
      %s948 = sphi 0, %s947
      %s962 = sphi 0, %s948
      %s968 = sphi 0, %s970
      %s971 = sphi 0, %s968
      %s972 = sphi 0, %s971
      %s988 = sphi 0, %s972
    $region4: #{tpu_custom_call.1} parent=1 // loop_header_branch
      %95 = sbr.rel (%p93) target = $region8
    $region5: #{tpu_custom_call.1} parent=1 // loop_body
      %s97 = ssub.s32 %s92, 1
      %s98 = ssub.s32 %s92, 2
      %s99 = sadd.s32 %s92, 1
      %s100 = ssub.s32 %s92, %s99
      %p101 = scmp.eq.s32.totalorder %s100, 0
      %s103 = sadd.s32 %s102, 1
      %s104 = scalar_select %p101, %s102, %s103
      %p107 = pneg %p101
      %p108 = scmp.eq.s32.totalorder %s92, 1
      %p109 = por %p107, %p108
      %p110 = scmp.ne.s32.totalorder %s102, %s105
      %p111 = scmp.eq.s32.totalorder %s92, 0
      %p112 = por %p110, %p111
      %p113 = scmp.ne.s32.totalorder %s102, %s105
      %p114 = scmp.eq.s32.totalorder %s97, 1
      %p115 = por %p113, %p114
      %p116 = scmp.ne.s32.totalorder %s105, %s106
      %p117 = scmp.eq.s32.totalorder %s97, 0
      %p118 = por %p116, %p117
      %p119 = scmp.ne.s32.totalorder %s105, %s106
      %p120 = scmp.eq.s32.totalorder %s98, 1
      %p121 = por %p119, %p120
      %p123 = scmp.ne.s32.totalorder %s106, %s122
      %p124 = scmp.eq.s32.totalorder %s98, 0
      %p125 = por %p123, %p124
      %s127 = sadd.s32 %s126, 1
      %p130 = scmp.eq.s32.totalorder %s92, 1
      %p131 = scmp.ne.s32.totalorder %s126, %s128
      %p132 = scmp.eq.s32.totalorder %s92, 0
      %p133 = por %p131, %p132
      %p134 = scmp.ne.s32.totalorder %s126, %s128
      %p135 = scmp.eq.s32.totalorder %s97, 1
      %p136 = por %p134, %p135
      %p137 = scmp.ne.s32.totalorder %s128, %s129
      %p138 = scmp.eq.s32.totalorder %s97, 0
      %p139 = por %p137, %p138
      %p140 = scmp.ne.s32.totalorder %s128, %s129
      %p141 = scmp.eq.s32.totalorder %s98, 1
      %p142 = por %p140, %p141
      %p144 = scmp.ne.s32.totalorder %s129, %s143
      %p145 = scmp.eq.s32.totalorder %s98, 0
      %p146 = por %p144, %p145
      %s148 = sadd.s32 %s147, 1
      %p151 = scmp.eq.s32.totalorder %s92, 1
      %p152 = scmp.ne.s32.totalorder %s147, %s149
      %p153 = scmp.eq.s32.totalorder %s92, 0
      %p154 = por %p152, %p153
      %p155 = scmp.ne.s32.totalorder %s147, %s149
      %p156 = scmp.eq.s32.totalorder %s97, 1
      %p157 = por %p155, %p156
      %p158 = scmp.ne.s32.totalorder %s149, %s150
      %p159 = scmp.eq.s32.totalorder %s97, 0
      %p160 = por %p158, %p159
      %p161 = scmp.ne.s32.totalorder %s149, %s150
      %p162 = scmp.eq.s32.totalorder %s98, 1
      %p163 = por %p161, %p162
      %p165 = scmp.ne.s32.totalorder %s150, %s164
      %p166 = scmp.eq.s32.totalorder %s98, 0
      %p167 = por %p165, %p166
      %s169 = sadd.s32 %s168, 1
      %p172 = scmp.eq.s32.totalorder %s92, 1
      %p173 = scmp.ne.s32.totalorder %s168, %s170
      %p174 = scmp.eq.s32.totalorder %s92, 0
      %p175 = por %p173, %p174
      %p176 = scmp.ne.s32.totalorder %s168, %s170
      %p177 = scmp.eq.s32.totalorder %s97, 1
      %p178 = por %p176, %p177
      %p179 = scmp.ne.s32.totalorder %s170, %s171
      %p180 = scmp.eq.s32.totalorder %s97, 0
      %p181 = por %p179, %p180
      %p182 = scmp.ne.s32.totalorder %s170, %s171
      %p183 = scmp.eq.s32.totalorder %s98, 1
      %p184 = por %p182, %p183
      %p186 = scmp.ne.s32.totalorder %s171, %s185
      %p187 = scmp.eq.s32.totalorder %s98, 0
      %p188 = por %p186, %p187
      %s190 = sadd.s32 %s189, 1
      %p193 = scmp.eq.s32.totalorder %s92, 1
      %p194 = scmp.ne.s32.totalorder %s189, %s191
      %p195 = scmp.eq.s32.totalorder %s92, 0
      %p196 = por %p194, %p195
      %p197 = scmp.ne.s32.totalorder %s189, %s191
      %p198 = scmp.eq.s32.totalorder %s97, 1
      %p199 = por %p197, %p198
      %p200 = scmp.ne.s32.totalorder %s191, %s192
      %p201 = scmp.eq.s32.totalorder %s97, 0
      %p202 = por %p200, %p201
      %p203 = scmp.ne.s32.totalorder %s191, %s192
      %p204 = scmp.eq.s32.totalorder %s98, 1
      %p205 = por %p203, %p204
      %p207 = scmp.ne.s32.totalorder %s192, %s206
      %p208 = scmp.eq.s32.totalorder %s98, 0
      %p209 = por %p207, %p208
      %s211 = sadd.s32 %s210, 1
      %p214 = scmp.eq.s32.totalorder %s92, 1
      %p215 = scmp.ne.s32.totalorder %s210, %s212
      %p216 = scmp.eq.s32.totalorder %s92, 0
      %p217 = por %p215, %p216
      %p218 = scmp.ne.s32.totalorder %s210, %s212
      %p219 = scmp.eq.s32.totalorder %s97, 1
      %p220 = por %p218, %p219
      %p221 = scmp.ne.s32.totalorder %s212, %s213
      %p222 = scmp.eq.s32.totalorder %s97, 0
      %p223 = por %p221, %p222
      %p224 = scmp.ne.s32.totalorder %s212, %s213
      %p225 = scmp.eq.s32.totalorder %s98, 1
      %p226 = por %p224, %p225
      %p228 = scmp.ne.s32.totalorder %s213, %s227
      %p229 = scmp.eq.s32.totalorder %s98, 0
      %p230 = por %p228, %p229
      %s232 = sadd.s32 %s231, 1
      %p235 = scmp.eq.s32.totalorder %s92, 1
      %p236 = scmp.ne.s32.totalorder %s231, %s233
      %p237 = scmp.eq.s32.totalorder %s92, 0
      %p238 = por %p236, %p237
      %p239 = scmp.ne.s32.totalorder %s231, %s233
      %p240 = scmp.eq.s32.totalorder %s97, 1
      %p241 = por %p239, %p240
      %p242 = scmp.ne.s32.totalorder %s233, %s234
      %p243 = scmp.eq.s32.totalorder %s97, 0
      %p244 = por %p242, %p243
      %p245 = scmp.ne.s32.totalorder %s233, %s234
      %p246 = scmp.eq.s32.totalorder %s98, 1
      %p247 = por %p245, %p246
      %p249 = scmp.ne.s32.totalorder %s234, %s248
      %p250 = scmp.eq.s32.totalorder %s98, 0
      %p251 = por %p249, %p250
      %s253 = sadd.s32 %s252, 1
      %p256 = scmp.eq.s32.totalorder %s92, 1
      %p257 = scmp.ne.s32.totalorder %s252, %s254
      %p258 = scmp.eq.s32.totalorder %s92, 0
      %p259 = por %p257, %p258
      %p260 = scmp.ne.s32.totalorder %s252, %s254
      %p261 = scmp.eq.s32.totalorder %s97, 1
      %p262 = por %p260, %p261
      %p263 = scmp.ne.s32.totalorder %s254, %s255
      %p264 = scmp.eq.s32.totalorder %s97, 0
      %p265 = por %p263, %p264
      %p266 = scmp.ne.s32.totalorder %s254, %s255
      %p267 = scmp.eq.s32.totalorder %s98, 1
      %p268 = por %p266, %p267
      %p270 = scmp.ne.s32.totalorder %s255, %s269
      %p271 = scmp.eq.s32.totalorder %s98, 0
      %p272 = por %p270, %p271
      %s274 = sadd.s32 %s273, 1
      %p277 = scmp.eq.s32.totalorder %s92, 1
      %p278 = scmp.ne.s32.totalorder %s273, %s275
      %p279 = scmp.eq.s32.totalorder %s92, 0
      %p280 = por %p278, %p279
      %p281 = scmp.ne.s32.totalorder %s273, %s275
      %p282 = scmp.eq.s32.totalorder %s97, 1
      %p283 = por %p281, %p282
      %p284 = scmp.ne.s32.totalorder %s275, %s276
      %p285 = scmp.eq.s32.totalorder %s97, 0
      %p286 = por %p284, %p285
      %p287 = scmp.ne.s32.totalorder %s275, %s276
      %p288 = scmp.eq.s32.totalorder %s98, 1
      %p289 = por %p287, %p288
      %p291 = scmp.ne.s32.totalorder %s276, %s290
      %p292 = scmp.eq.s32.totalorder %s98, 0
      %p293 = por %p291, %p292
      %s295 = sadd.s32 %s294, 1
      %p298 = scmp.eq.s32.totalorder %s92, 1
      %p299 = scmp.ne.s32.totalorder %s294, %s296
      %p300 = scmp.eq.s32.totalorder %s92, 0
      %p301 = por %p299, %p300
      %p302 = scmp.ne.s32.totalorder %s294, %s296
      %p303 = scmp.eq.s32.totalorder %s97, 1
      %p304 = por %p302, %p303
      %p305 = scmp.ne.s32.totalorder %s296, %s297
      %p306 = scmp.eq.s32.totalorder %s97, 0
      %p307 = por %p305, %p306
      %p308 = scmp.ne.s32.totalorder %s296, %s297
      %p309 = scmp.eq.s32.totalorder %s98, 1
      %p310 = por %p308, %p309
      %p312 = scmp.ne.s32.totalorder %s297, %s311
      %p313 = scmp.eq.s32.totalorder %s98, 0
      %p314 = por %p312, %p313
      %s316 = sadd.s32 %s315, 1
      %p319 = scmp.eq.s32.totalorder %s92, 1
      %p320 = scmp.ne.s32.totalorder %s315, %s317
      %p321 = scmp.eq.s32.totalorder %s92, 0
      %p322 = por %p320, %p321
      %p323 = scmp.ne.s32.totalorder %s315, %s317
      %p324 = scmp.eq.s32.totalorder %s97, 1
      %p325 = por %p323, %p324
      %p326 = scmp.ne.s32.totalorder %s317, %s318
      %p327 = scmp.eq.s32.totalorder %s97, 0
      %p328 = por %p326, %p327
      %p329 = scmp.ne.s32.totalorder %s317, %s318
      %p330 = scmp.eq.s32.totalorder %s98, 1
      %p331 = por %p329, %p330
      %p333 = scmp.ne.s32.totalorder %s318, %s332
      %p334 = scmp.eq.s32.totalorder %s98, 0
      %p335 = por %p333, %p334
      %s337 = sadd.s32 %s336, 1
      %p340 = scmp.eq.s32.totalorder %s92, 1
      %p341 = scmp.ne.s32.totalorder %s336, %s338
      %p342 = scmp.eq.s32.totalorder %s92, 0
      %p343 = por %p341, %p342
      %p344 = scmp.ne.s32.totalorder %s336, %s338
      %p345 = scmp.eq.s32.totalorder %s97, 1
      %p346 = por %p344, %p345
      %p347 = scmp.ne.s32.totalorder %s338, %s339
      %p348 = scmp.eq.s32.totalorder %s97, 0
      %p349 = por %p347, %p348
      %p350 = scmp.ne.s32.totalorder %s338, %s339
      %p351 = scmp.eq.s32.totalorder %s98, 1
      %p352 = por %p350, %p351
      %p354 = scmp.ne.s32.totalorder %s339, %s353
      %p355 = scmp.eq.s32.totalorder %s98, 0
      %p356 = por %p354, %p355
      %s358 = sadd.s32 %s357, 1
      %p361 = scmp.eq.s32.totalorder %s92, 1
      %p362 = scmp.ne.s32.totalorder %s357, %s359
      %p363 = scmp.eq.s32.totalorder %s92, 0
      %p364 = por %p362, %p363
      %p365 = scmp.ne.s32.totalorder %s357, %s359
      %p366 = scmp.eq.s32.totalorder %s97, 1
      %p367 = por %p365, %p366
      %p368 = scmp.ne.s32.totalorder %s359, %s360
      %p369 = scmp.eq.s32.totalorder %s97, 0
      %p370 = por %p368, %p369
      %p371 = scmp.ne.s32.totalorder %s359, %s360
      %p372 = scmp.eq.s32.totalorder %s98, 1
      %p373 = por %p371, %p372
      %p375 = scmp.ne.s32.totalorder %s360, %s374
      %p376 = scmp.eq.s32.totalorder %s98, 0
      %p377 = por %p375, %p376
      %s379 = sadd.s32 %s378, 1
      %p382 = scmp.eq.s32.totalorder %s92, 1
      %p383 = scmp.ne.s32.totalorder %s378, %s380
      %p384 = scmp.eq.s32.totalorder %s92, 0
      %p385 = por %p383, %p384
      %p386 = scmp.ne.s32.totalorder %s378, %s380
      %p387 = scmp.eq.s32.totalorder %s97, 1
      %p388 = por %p386, %p387
      %p389 = scmp.ne.s32.totalorder %s380, %s381
      %p390 = scmp.eq.s32.totalorder %s97, 0
      %p391 = por %p389, %p390
      %p392 = scmp.ne.s32.totalorder %s380, %s381
      %p393 = scmp.eq.s32.totalorder %s98, 1
      %p394 = por %p392, %p393
      %p396 = scmp.ne.s32.totalorder %s381, %s395
      %p397 = scmp.eq.s32.totalorder %s98, 0
      %p398 = por %p396, %p397
      %s400 = sadd.s32 %s399, 1
      %p403 = scmp.eq.s32.totalorder %s92, 1
      %p404 = scmp.ne.s32.totalorder %s399, %s401
      %p405 = scmp.eq.s32.totalorder %s92, 0
      %p406 = por %p404, %p405
      %p407 = scmp.ne.s32.totalorder %s399, %s401
      %p408 = scmp.eq.s32.totalorder %s97, 1
      %p409 = por %p407, %p408
      %p410 = scmp.ne.s32.totalorder %s401, %s402
      %p411 = scmp.eq.s32.totalorder %s97, 0
      %p412 = por %p410, %p411
      %p413 = scmp.ne.s32.totalorder %s401, %s402
      %p414 = scmp.eq.s32.totalorder %s98, 1
      %p415 = por %p413, %p414
      %p417 = scmp.ne.s32.totalorder %s402, %s416
      %p418 = scmp.eq.s32.totalorder %s98, 0
      %p419 = por %p417, %p418
      %s421 = sadd.s32 %s420, 1
      %p424 = scmp.eq.s32.totalorder %s92, 1
      %p425 = scmp.ne.s32.totalorder %s420, %s422
      %p426 = scmp.eq.s32.totalorder %s92, 0
      %p427 = por %p425, %p426
      %p428 = scmp.ne.s32.totalorder %s420, %s422
      %p429 = scmp.eq.s32.totalorder %s97, 1
      %p430 = por %p428, %p429
      %p431 = scmp.ne.s32.totalorder %s422, %s423
      %p432 = scmp.eq.s32.totalorder %s97, 0
      %p433 = por %p431, %p432
      %p434 = scmp.ne.s32.totalorder %s422, %s423
      %p435 = scmp.eq.s32.totalorder %s98, 1
      %p436 = por %p434, %p435
      %p438 = scmp.ne.s32.totalorder %s423, %s437
      %p439 = scmp.eq.s32.totalorder %s98, 0
      %p440 = por %p438, %p439
      %s442 = sadd.s32 %s441, 1
      %p445 = scmp.eq.s32.totalorder %s92, 1
      %p446 = scmp.ne.s32.totalorder %s441, %s443
      %p447 = scmp.eq.s32.totalorder %s92, 0
      %p448 = por %p446, %p447
      %p449 = scmp.ne.s32.totalorder %s441, %s443
      %p450 = scmp.eq.s32.totalorder %s97, 1
      %p451 = por %p449, %p450
      %p452 = scmp.ne.s32.totalorder %s443, %s444
      %p453 = scmp.eq.s32.totalorder %s97, 0
      %p454 = por %p452, %p453
      %p455 = scmp.ne.s32.totalorder %s443, %s444
      %p456 = scmp.eq.s32.totalorder %s98, 1
      %p457 = por %p455, %p456
      %p459 = scmp.ne.s32.totalorder %s444, %s458
      %p460 = scmp.eq.s32.totalorder %s98, 0
      %p461 = por %p459, %p460
      %s463 = sadd.s32 %s462, 1
      %p466 = scmp.eq.s32.totalorder %s92, 1
      %p467 = scmp.ne.s32.totalorder %s462, %s464
      %p468 = scmp.eq.s32.totalorder %s92, 0
      %p469 = por %p467, %p468
      %p470 = scmp.ne.s32.totalorder %s462, %s464
      %p471 = scmp.eq.s32.totalorder %s97, 1
      %p472 = por %p470, %p471
      %p473 = scmp.ne.s32.totalorder %s464, %s465
      %p474 = scmp.eq.s32.totalorder %s97, 0
      %p475 = por %p473, %p474
      %p476 = scmp.ne.s32.totalorder %s464, %s465
      %p477 = scmp.eq.s32.totalorder %s98, 1
      %p478 = por %p476, %p477
      %p480 = scmp.ne.s32.totalorder %s465, %s479
      %p481 = scmp.eq.s32.totalorder %s98, 0
      %p482 = por %p480, %p481
      %s484 = sadd.s32 %s483, 1
      %p487 = scmp.eq.s32.totalorder %s92, 1
      %p488 = scmp.ne.s32.totalorder %s483, %s485
      %p489 = scmp.eq.s32.totalorder %s92, 0
      %p490 = por %p488, %p489
      %p491 = scmp.ne.s32.totalorder %s483, %s485
      %p492 = scmp.eq.s32.totalorder %s97, 1
      %p493 = por %p491, %p492
      %p494 = scmp.ne.s32.totalorder %s485, %s486
      %p495 = scmp.eq.s32.totalorder %s97, 0
      %p496 = por %p494, %p495
      %p497 = scmp.ne.s32.totalorder %s485, %s486
      %p498 = scmp.eq.s32.totalorder %s98, 1
      %p499 = por %p497, %p498
      %p501 = scmp.ne.s32.totalorder %s486, %s500
      %p502 = scmp.eq.s32.totalorder %s98, 0
      %p503 = por %p501, %p502
      %s505 = sadd.s32 %s504, 1
      %p508 = scmp.eq.s32.totalorder %s92, 1
      %p509 = scmp.ne.s32.totalorder %s504, %s506
      %p510 = scmp.eq.s32.totalorder %s92, 0
      %p511 = por %p509, %p510
      %p512 = scmp.ne.s32.totalorder %s504, %s506
      %p513 = scmp.eq.s32.totalorder %s97, 1
      %p514 = por %p512, %p513
      %p515 = scmp.ne.s32.totalorder %s506, %s507
      %p516 = scmp.eq.s32.totalorder %s97, 0
      %p517 = por %p515, %p516
      %p518 = scmp.ne.s32.totalorder %s506, %s507
      %p519 = scmp.eq.s32.totalorder %s98, 1
      %p520 = por %p518, %p519
      %p522 = scmp.ne.s32.totalorder %s507, %s521
      %p523 = scmp.eq.s32.totalorder %s98, 0
      %p524 = por %p522, %p523
      %s526 = sadd.s32 %s525, 1
      %p529 = scmp.eq.s32.totalorder %s92, 1
      %p530 = scmp.ne.s32.totalorder %s525, %s527
      %p531 = scmp.eq.s32.totalorder %s92, 0
      %p532 = por %p530, %p531
      %p533 = scmp.ne.s32.totalorder %s525, %s527
      %p534 = scmp.eq.s32.totalorder %s97, 1
      %p535 = por %p533, %p534
      %p536 = scmp.ne.s32.totalorder %s527, %s528
      %p537 = scmp.eq.s32.totalorder %s97, 0
      %p538 = por %p536, %p537
      %p539 = scmp.ne.s32.totalorder %s527, %s528
      %p540 = scmp.eq.s32.totalorder %s98, 1
      %p541 = por %p539, %p540
      %p543 = scmp.ne.s32.totalorder %s528, %s542
      %p544 = scmp.eq.s32.totalorder %s98, 0
      %p545 = por %p543, %p544
      %s547 = sadd.s32 %s546, 1
      %p550 = scmp.eq.s32.totalorder %s92, 1
      %p551 = scmp.ne.s32.totalorder %s546, %s548
      %p552 = scmp.eq.s32.totalorder %s92, 0
      %p553 = por %p551, %p552
      %p554 = scmp.ne.s32.totalorder %s546, %s548
      %p555 = scmp.eq.s32.totalorder %s97, 1
      %p556 = por %p554, %p555
      %p557 = scmp.ne.s32.totalorder %s548, %s549
      %p558 = scmp.eq.s32.totalorder %s97, 0
      %p559 = por %p557, %p558
      %p560 = scmp.ne.s32.totalorder %s548, %s549
      %p561 = scmp.eq.s32.totalorder %s98, 1
      %p562 = por %p560, %p561
      %p564 = scmp.ne.s32.totalorder %s549, %s563
      %p565 = scmp.eq.s32.totalorder %s98, 0
      %p566 = por %p564, %p565
      %s568 = sadd.s32 %s567, 1
      %p571 = scmp.eq.s32.totalorder %s92, 1
      %p572 = scmp.ne.s32.totalorder %s567, %s569
      %p573 = scmp.eq.s32.totalorder %s92, 0
      %p574 = por %p572, %p573
      %p575 = scmp.ne.s32.totalorder %s567, %s569
      %p576 = scmp.eq.s32.totalorder %s97, 1
      %p577 = por %p575, %p576
      %p578 = scmp.ne.s32.totalorder %s569, %s570
      %p579 = scmp.eq.s32.totalorder %s97, 0
      %p580 = por %p578, %p579
      %p581 = scmp.ne.s32.totalorder %s569, %s570
      %p582 = scmp.eq.s32.totalorder %s98, 1
      %p583 = por %p581, %p582
      %p585 = scmp.ne.s32.totalorder %s570, %s584
      %p586 = scmp.eq.s32.totalorder %s98, 0
      %p587 = por %p585, %p586
      %s589 = sadd.s32 %s588, 1
      %p592 = scmp.eq.s32.totalorder %s92, 1
      %p593 = scmp.ne.s32.totalorder %s588, %s590
      %p594 = scmp.eq.s32.totalorder %s92, 0
      %p595 = por %p593, %p594
      %p596 = scmp.ne.s32.totalorder %s588, %s590
      %p597 = scmp.eq.s32.totalorder %s97, 1
      %p598 = por %p596, %p597
      %p599 = scmp.ne.s32.totalorder %s590, %s591
      %p600 = scmp.eq.s32.totalorder %s97, 0
      %p601 = por %p599, %p600
      %p602 = scmp.ne.s32.totalorder %s590, %s591
      %p603 = scmp.eq.s32.totalorder %s98, 1
      %p604 = por %p602, %p603
      %p606 = scmp.ne.s32.totalorder %s591, %s605
      %p607 = scmp.eq.s32.totalorder %s98, 0
      %p608 = por %p606, %p607
      %s610 = sadd.s32 %s609, 1
      %p613 = scmp.eq.s32.totalorder %s92, 1
      %p614 = scmp.ne.s32.totalorder %s609, %s611
      %p615 = scmp.eq.s32.totalorder %s92, 0
      %p616 = por %p614, %p615
      %p617 = scmp.ne.s32.totalorder %s609, %s611
      %p618 = scmp.eq.s32.totalorder %s97, 1
      %p619 = por %p617, %p618
      %p620 = scmp.ne.s32.totalorder %s611, %s612
      %p621 = scmp.eq.s32.totalorder %s97, 0
      %p622 = por %p620, %p621
      %p623 = scmp.ne.s32.totalorder %s611, %s612
      %p624 = scmp.eq.s32.totalorder %s98, 1
      %p625 = por %p623, %p624
      %p627 = scmp.ne.s32.totalorder %s612, %s626
      %p628 = scmp.eq.s32.totalorder %s98, 0
      %p629 = por %p627, %p628
      %s631 = sadd.s32 %s630, 1
      %p634 = scmp.eq.s32.totalorder %s92, 1
      %p635 = scmp.ne.s32.totalorder %s630, %s632
      %p636 = scmp.eq.s32.totalorder %s92, 0
      %p637 = por %p635, %p636
      %p638 = scmp.ne.s32.totalorder %s630, %s632
      %p639 = scmp.eq.s32.totalorder %s97, 1
      %p640 = por %p638, %p639
      %p641 = scmp.ne.s32.totalorder %s632, %s633
      %p642 = scmp.eq.s32.totalorder %s97, 0
      %p643 = por %p641, %p642
      %p644 = scmp.ne.s32.totalorder %s632, %s633
      %p645 = scmp.eq.s32.totalorder %s98, 1
      %p646 = por %p644, %p645
      %p648 = scmp.ne.s32.totalorder %s633, %s647
      %p649 = scmp.eq.s32.totalorder %s98, 0
      %p650 = por %p648, %p649
      %s652 = sadd.s32 %s651, 1
      %p655 = scmp.eq.s32.totalorder %s92, 1
      %p656 = scmp.ne.s32.totalorder %s651, %s653
      %p657 = scmp.eq.s32.totalorder %s92, 0
      %p658 = por %p656, %p657
      %p659 = scmp.ne.s32.totalorder %s651, %s653
      %p660 = scmp.eq.s32.totalorder %s97, 1
      %p661 = por %p659, %p660
      %p662 = scmp.ne.s32.totalorder %s653, %s654
      %p663 = scmp.eq.s32.totalorder %s97, 0
      %p664 = por %p662, %p663
      %p665 = scmp.ne.s32.totalorder %s653, %s654
      %p666 = scmp.eq.s32.totalorder %s98, 1
      %p667 = por %p665, %p666
      %p669 = scmp.ne.s32.totalorder %s654, %s668
      %p670 = scmp.eq.s32.totalorder %s98, 0
      %p671 = por %p669, %p670
      %s673 = sadd.s32 %s672, 1
      %p676 = scmp.eq.s32.totalorder %s92, 1
      %p677 = scmp.ne.s32.totalorder %s672, %s674
      %p678 = scmp.eq.s32.totalorder %s92, 0
      %p679 = por %p677, %p678
      %p680 = scmp.ne.s32.totalorder %s672, %s674
      %p681 = scmp.eq.s32.totalorder %s97, 1
      %p682 = por %p680, %p681
      %p683 = scmp.ne.s32.totalorder %s674, %s675
      %p684 = scmp.eq.s32.totalorder %s97, 0
      %p685 = por %p683, %p684
      %p686 = scmp.ne.s32.totalorder %s674, %s675
      %p687 = scmp.eq.s32.totalorder %s98, 1
      %p688 = por %p686, %p687
      %p690 = scmp.ne.s32.totalorder %s675, %s689
      %p691 = scmp.eq.s32.totalorder %s98, 0
      %p692 = por %p690, %p691
      %s694 = sadd.s32 %s693, 1
      %p697 = scmp.eq.s32.totalorder %s92, 1
      %p698 = scmp.ne.s32.totalorder %s693, %s695
      %p699 = scmp.eq.s32.totalorder %s92, 0
      %p700 = por %p698, %p699
      %p701 = scmp.ne.s32.totalorder %s693, %s695
      %p702 = scmp.eq.s32.totalorder %s97, 1
      %p703 = por %p701, %p702
      %p704 = scmp.ne.s32.totalorder %s695, %s696
      %p705 = scmp.eq.s32.totalorder %s97, 0
      %p706 = por %p704, %p705
      %p707 = scmp.ne.s32.totalorder %s695, %s696
      %p708 = scmp.eq.s32.totalorder %s98, 1
      %p709 = por %p707, %p708
      %p711 = scmp.ne.s32.totalorder %s696, %s710
      %p712 = scmp.eq.s32.totalorder %s98, 0
      %p713 = por %p711, %p712
      %s715 = sadd.s32 %s714, 1
      %p718 = scmp.eq.s32.totalorder %s92, 1
      %p719 = scmp.ne.s32.totalorder %s714, %s716
      %p720 = scmp.eq.s32.totalorder %s92, 0
      %p721 = por %p719, %p720
      %p722 = scmp.ne.s32.totalorder %s714, %s716
      %p723 = scmp.eq.s32.totalorder %s97, 1
      %p724 = por %p722, %p723
      %p725 = scmp.ne.s32.totalorder %s716, %s717
      %p726 = scmp.eq.s32.totalorder %s97, 0
      %p727 = por %p725, %p726
      %p728 = scmp.ne.s32.totalorder %s716, %s717
      %p729 = scmp.eq.s32.totalorder %s98, 1
      %p730 = por %p728, %p729
      %p732 = scmp.ne.s32.totalorder %s717, %s731
      %p733 = scmp.eq.s32.totalorder %s98, 0
      %p734 = por %p732, %p733
      %s736 = sadd.s32 %s735, 1
      %p739 = scmp.eq.s32.totalorder %s92, 1
      %p740 = scmp.ne.s32.totalorder %s735, %s737
      %p741 = scmp.eq.s32.totalorder %s92, 0
      %p742 = por %p740, %p741
      %p743 = scmp.ne.s32.totalorder %s735, %s737
      %p744 = scmp.eq.s32.totalorder %s97, 1
      %p745 = por %p743, %p744
      %p746 = scmp.ne.s32.totalorder %s737, %s738
      %p747 = scmp.eq.s32.totalorder %s97, 0
      %p748 = por %p746, %p747
      %p749 = scmp.ne.s32.totalorder %s737, %s738
      %p750 = scmp.eq.s32.totalorder %s98, 1
      %p751 = por %p749, %p750
      %p753 = scmp.ne.s32.totalorder %s738, %s752
      %p754 = scmp.eq.s32.totalorder %s98, 0
      %p755 = por %p753, %p754
      %s757 = sadd.s32 %s756, 1
      %p760 = scmp.eq.s32.totalorder %s92, 1
      %p761 = scmp.ne.s32.totalorder %s756, %s758
      %p762 = scmp.eq.s32.totalorder %s92, 0
      %p763 = por %p761, %p762
      %p764 = scmp.ne.s32.totalorder %s756, %s758
      %p765 = scmp.eq.s32.totalorder %s97, 1
      %p766 = por %p764, %p765
      %p767 = scmp.ne.s32.totalorder %s758, %s759
      %p768 = scmp.eq.s32.totalorder %s97, 0
      %p769 = por %p767, %p768
      %p770 = scmp.ne.s32.totalorder %s758, %s759
      %p771 = scmp.eq.s32.totalorder %s98, 1
      %p772 = por %p770, %p771
      %p774 = scmp.ne.s32.totalorder %s759, %s773
      %p775 = scmp.eq.s32.totalorder %s98, 0
      %p776 = por %p774, %p775
      %s778 = sadd.s32 %s777, 1
      %p781 = scmp.eq.s32.totalorder %s92, 1
      %p782 = scmp.ne.s32.totalorder %s777, %s779
      %p783 = scmp.eq.s32.totalorder %s92, 0
      %p784 = por %p782, %p783
      %p785 = scmp.ne.s32.totalorder %s777, %s779
      %p786 = scmp.eq.s32.totalorder %s97, 1
      %p787 = por %p785, %p786
      %p788 = scmp.ne.s32.totalorder %s779, %s780
      %p789 = scmp.eq.s32.totalorder %s97, 0
      %p790 = por %p788, %p789
      %p791 = scmp.ne.s32.totalorder %s779, %s780
      %p792 = scmp.eq.s32.totalorder %s98, 1
      %p793 = por %p791, %p792
      %p795 = scmp.ne.s32.totalorder %s780, %s794
      %p796 = scmp.eq.s32.totalorder %s98, 0
      %p797 = por %p795, %p796
      %s799 = sadd.s32 %s798, 1
      %p802 = scmp.eq.s32.totalorder %s92, 1
      %p803 = scmp.ne.s32.totalorder %s798, %s800
      %p804 = scmp.eq.s32.totalorder %s92, 0
      %p805 = por %p803, %p804
      %p806 = scmp.ne.s32.totalorder %s798, %s800
      %p807 = scmp.eq.s32.totalorder %s97, 1
      %p808 = por %p806, %p807
      %p809 = scmp.ne.s32.totalorder %s800, %s801
      %p810 = scmp.eq.s32.totalorder %s97, 0
      %p811 = por %p809, %p810
      %p812 = scmp.ne.s32.totalorder %s800, %s801
      %p813 = scmp.eq.s32.totalorder %s98, 1
      %p814 = por %p812, %p813
      %p816 = scmp.ne.s32.totalorder %s801, %s815
      %p817 = scmp.eq.s32.totalorder %s98, 0
      %p818 = por %p816, %p817
      %s820 = sadd.s32 %s819, 1
      %p823 = scmp.eq.s32.totalorder %s92, 1
      %p824 = scmp.ne.s32.totalorder %s819, %s821
      %p825 = scmp.eq.s32.totalorder %s92, 0
      %p826 = por %p824, %p825
      %p827 = scmp.ne.s32.totalorder %s819, %s821
      %p828 = scmp.eq.s32.totalorder %s97, 1
      %p829 = por %p827, %p828
      %p830 = scmp.ne.s32.totalorder %s821, %s822
      %p831 = scmp.eq.s32.totalorder %s97, 0
      %p832 = por %p830, %p831
      %p833 = scmp.ne.s32.totalorder %s821, %s822
      %p834 = scmp.eq.s32.totalorder %s98, 1
      %p835 = por %p833, %p834
      %p837 = scmp.ne.s32.totalorder %s822, %s836
      %p838 = scmp.eq.s32.totalorder %s98, 0
      %p839 = por %p837, %p838
      %s841 = sadd.s32 %s840, 1
      %p844 = scmp.eq.s32.totalorder %s92, 1
      %p845 = scmp.ne.s32.totalorder %s840, %s842
      %p846 = scmp.eq.s32.totalorder %s92, 0
      %p847 = por %p845, %p846
      %p848 = scmp.ne.s32.totalorder %s840, %s842
      %p849 = scmp.eq.s32.totalorder %s97, 1
      %p850 = por %p848, %p849
      %p851 = scmp.ne.s32.totalorder %s842, %s843
      %p852 = scmp.eq.s32.totalorder %s97, 0
      %p853 = por %p851, %p852
      %p854 = scmp.ne.s32.totalorder %s842, %s843
      %p855 = scmp.eq.s32.totalorder %s98, 1
      %p856 = por %p854, %p855
      %p858 = scmp.ne.s32.totalorder %s843, %s857
      %p859 = scmp.eq.s32.totalorder %s98, 0
      %p860 = por %p858, %p859
      %s862 = sadd.s32 %s861, 1
      %p865 = scmp.eq.s32.totalorder %s92, 1
      %p866 = scmp.ne.s32.totalorder %s861, %s863
      %p867 = scmp.eq.s32.totalorder %s92, 0
      %p868 = por %p866, %p867
      %p869 = scmp.ne.s32.totalorder %s861, %s863
      %p870 = scmp.eq.s32.totalorder %s97, 1
      %p871 = por %p869, %p870
      %p872 = scmp.ne.s32.totalorder %s863, %s864
      %p873 = scmp.eq.s32.totalorder %s97, 0
      %p874 = por %p872, %p873
      %p875 = scmp.ne.s32.totalorder %s863, %s864
      %p876 = scmp.eq.s32.totalorder %s98, 1
      %p877 = por %p875, %p876
      %p879 = scmp.ne.s32.totalorder %s864, %s878
      %p880 = scmp.eq.s32.totalorder %s98, 0
      %p881 = por %p879, %p880
      %s883 = sadd.s32 %s882, 1
      %p886 = scmp.eq.s32.totalorder %s92, 1
      %p887 = scmp.ne.s32.totalorder %s882, %s884
      %p888 = scmp.eq.s32.totalorder %s92, 0
      %p889 = por %p887, %p888
      %p890 = scmp.ne.s32.totalorder %s882, %s884
      %p891 = scmp.eq.s32.totalorder %s97, 1
      %p892 = por %p890, %p891
      %p893 = scmp.ne.s32.totalorder %s884, %s885
      %p894 = scmp.eq.s32.totalorder %s97, 0
      %p895 = por %p893, %p894
      %p896 = scmp.ne.s32.totalorder %s884, %s885
      %p897 = scmp.eq.s32.totalorder %s98, 1
      %p898 = por %p896, %p897
      %p900 = scmp.ne.s32.totalorder %s885, %s899
      %p901 = scmp.eq.s32.totalorder %s98, 0
      %p902 = por %p900, %p901
      %s904 = sadd.s32 %s903, 1
      %p907 = scmp.eq.s32.totalorder %s92, 1
      %p908 = scmp.ne.s32.totalorder %s903, %s905
      %p909 = scmp.eq.s32.totalorder %s92, 0
      %p910 = por %p908, %p909
      %p911 = scmp.ne.s32.totalorder %s903, %s905
      %p912 = scmp.eq.s32.totalorder %s97, 1
      %p913 = por %p911, %p912
      %p914 = scmp.ne.s32.totalorder %s905, %s906
      %p915 = scmp.eq.s32.totalorder %s97, 0
      %p916 = por %p914, %p915
      %p917 = scmp.ne.s32.totalorder %s905, %s906
      %p918 = scmp.eq.s32.totalorder %s98, 1
      %p919 = por %p917, %p918
      %p921 = scmp.ne.s32.totalorder %s906, %s920
      %p922 = scmp.eq.s32.totalorder %s98, 0
      %p923 = por %p921, %p922
      %s925 = sadd.s32 %s924, 1
      %p928 = scmp.eq.s32.totalorder %s92, 1
      %p929 = scmp.ne.s32.totalorder %s924, %s926
      %p930 = scmp.eq.s32.totalorder %s92, 0
      %p931 = por %p929, %p930
      %p932 = scmp.ne.s32.totalorder %s924, %s926
      %p933 = scmp.eq.s32.totalorder %s97, 1
      %p934 = por %p932, %p933
      %p935 = scmp.ne.s32.totalorder %s926, %s927
      %p936 = scmp.eq.s32.totalorder %s97, 0
      %p937 = por %p935, %p936
      %p938 = scmp.ne.s32.totalorder %s926, %s927
      %p939 = scmp.eq.s32.totalorder %s98, 1
      %p940 = por %p938, %p939
      %p942 = scmp.ne.s32.totalorder %s927, %s941
      %p943 = scmp.eq.s32.totalorder %s98, 0
      %p944 = por %p942, %p943
      %s946 = sadd.s32 %s945, 1
      %p949 = scmp.eq.s32.totalorder %s92, 1
      %p950 = scmp.ne.s32.totalorder %s945, %s947
      %p951 = scmp.eq.s32.totalorder %s92, 0
      %p952 = por %p950, %p951
      %p953 = scmp.ne.s32.totalorder %s945, %s947
      %p954 = scmp.eq.s32.totalorder %s97, 1
      %p955 = por %p953, %p954
      %p956 = scmp.ne.s32.totalorder %s947, %s948
      %p957 = scmp.eq.s32.totalorder %s97, 0
      %p958 = por %p956, %p957
      %p959 = scmp.ne.s32.totalorder %s947, %s948
      %p960 = scmp.eq.s32.totalorder %s98, 1
      %p961 = por %p959, %p960
      %p963 = scmp.ne.s32.totalorder %s948, %s962
      %p964 = scmp.eq.s32.totalorder %s98, 0
      %p965 = por %p963, %p964
      %s966 = ssub.s32 %s92, %s99
      %p967 = scmp.eq.s32.totalorder %s966, 0
      %s969 = sadd.s32 %s968, 1
      %s970 = scalar_select %p967, %s968, %s969
      %p973 = pneg %p967
      %p974 = scmp.eq.s32.totalorder %s92, 1
      %p975 = por %p973, %p974
      %p976 = scmp.ne.s32.totalorder %s968, %s971
      %p977 = scmp.eq.s32.totalorder %s92, 0
      %p978 = por %p976, %p977
      %p979 = scmp.ne.s32.totalorder %s968, %s971
      %p980 = scmp.eq.s32.totalorder %s97, 1
      %p981 = por %p979, %p980
      %p982 = scmp.ne.s32.totalorder %s971, %s972
      %p983 = scmp.eq.s32.totalorder %s97, 0
      %p984 = por %p982, %p983
      %p985 = scmp.ne.s32.totalorder %s971, %s972
      %p986 = scmp.eq.s32.totalorder %s98, 1
      %p987 = por %p985, %p986
      %p989 = scmp.ne.s32.totalorder %s972, %s988
      %p990 = scmp.eq.s32.totalorder %s98, 0
      %p991 = por %p989, %p990
      %p992 = scmp.le.s32.totalorder 1, %s92
      %p993 = scmp.lt.s32.totalorder %s92, 3
      %p994 = pnand %p992, %p993
      %p995 = pneg %p994
      // Predicated region
      $region9: #{tpu_custom_call.1} parent=5 // pred_check
        _
      $region10: #{tpu_custom_call.1} parent=5 // pred_check_branch
        %997 = sbr.rel (%p994) target = $region12
      $region11: #{tpu_custom_call.1} parent=5 // pred_region
        %s998 = ssub.s32 %s92, 1
        // Predicated region
        $region13: #{tpu_custom_call.1} parent=11 // pred_check
          %p999 = pneg %p139
        $region14: #{tpu_custom_call.1} parent=11 // pred_check_branch
          %1001 = sbr.rel (%p999) target = $region16
        $region15: #{tpu_custom_call.1} parent=11 // pred_region
          _
        $region16: #{tpu_custom_call.1} parent=11 // pred_fallthru
          _
        // Predicated region
        $region17: #{tpu_custom_call.1} parent=11 // pred_check
          %p1002 = pneg %p160
        $region18: #{tpu_custom_call.1} parent=11 // pred_check_branch
          %1004 = sbr.rel (%p1002) target = $region20
        $region19: #{tpu_custom_call.1} parent=11 // pred_region
          _
        $region20: #{tpu_custom_call.1} parent=11 // pred_fallthru
          _
        // Predicated region
        $region21: #{tpu_custom_call.1} parent=11 // pred_check
          %p1005 = pneg %p181
        $region22: #{tpu_custom_call.1} parent=11 // pred_check_branch
          %1007 = sbr.rel (%p1005) target = $region24
        $region23: #{tpu_custom_call.1} parent=11 // pred_region
          _
        $region24: #{tpu_custom_call.1} parent=11 // pred_fallthru
          _
        // Predicated region
        $region25: #{tpu_custom_call.1} parent=11 // pred_check
          %p1008 = pneg %p202
        $region26: #{tpu_custom_call.1} parent=11 // pred_check_branch
          %1010 = sbr.rel (%p1008) target = $region28
        $region27: #{tpu_custom_call.1} parent=11 // pred_region
          _
        $region28: #{tpu_custom_call.1} parent=11 // pred_fallthru
          _
        // Predicated region
        $region29: #{tpu_custom_call.1} parent=11 // pred_check
          %p1011 = pneg %p223
        $region30: #{tpu_custom_call.1} parent=11 // pred_check_branch
          %1013 = sbr.rel (%p1011) target = $region32
        $region31: #{tpu_custom_call.1} parent=11 // pred_region
          _
        $region32: #{tpu_custom_call.1} parent=11 // pred_fallthru
          _
        // Predicated region
        $region33: #{tpu_custom_call.1} parent=11 // pred_check
          %p1014 = pneg %p244
        $region34: #{tpu_custom_call.1} parent=11 // pred_check_branch
          %1016 = sbr.rel (%p1014) target = $region36
        $region35: #{tpu_custom_call.1} parent=11 // pred_region
          _
        $region36: #{tpu_custom_call.1} parent=11 // pred_fallthru
          _
        // Predicated region
        $region37: #{tpu_custom_call.1} parent=11 // pred_check
          %p1017 = pneg %p265
        $region38: #{tpu_custom_call.1} parent=11 // pred_check_branch
          %1019 = sbr.rel (%p1017) target = $region40
        $region39: #{tpu_custom_call.1} parent=11 // pred_region
          _
        $region40: #{tpu_custom_call.1} parent=11 // pred_fallthru
          _
        // Predicated region
        $region41: #{tpu_custom_call.1} parent=11 // pred_check
          %p1020 = pneg %p286
        $region42: #{tpu_custom_call.1} parent=11 // pred_check_branch
          %1022 = sbr.rel (%p1020) target = $region44
        $region43: #{tpu_custom_call.1} parent=11 // pred_region
          _
        $region44: #{tpu_custom_call.1} parent=11 // pred_fallthru
          _
        // Predicated region
        $region45: #{tpu_custom_call.1} parent=11 // pred_check
          %p1023 = pneg %p307
        $region46: #{tpu_custom_call.1} parent=11 // pred_check_branch
          %1025 = sbr.rel (%p1023) target = $region48
        $region47: #{tpu_custom_call.1} parent=11 // pred_region
          _
        $region48: #{tpu_custom_call.1} parent=11 // pred_fallthru
          _
        // Predicated region
        $region49: #{tpu_custom_call.1} parent=11 // pred_check
          %p1026 = pneg %p328
        $region50: #{tpu_custom_call.1} parent=11 // pred_check_branch
          %1028 = sbr.rel (%p1026) target = $region52
        $region51: #{tpu_custom_call.1} parent=11 // pred_region
          _
        $region52: #{tpu_custom_call.1} parent=11 // pred_fallthru
          _
        // Predicated region
        $region53: #{tpu_custom_call.1} parent=11 // pred_check
          %p1029 = pneg %p349
        $region54: #{tpu_custom_call.1} parent=11 // pred_check_branch
          %1031 = sbr.rel (%p1029) target = $region56
        $region55: #{tpu_custom_call.1} parent=11 // pred_region
          _
        $region56: #{tpu_custom_call.1} parent=11 // pred_fallthru
          _
        // Predicated region
        $region57: #{tpu_custom_call.1} parent=11 // pred_check
          %p1032 = pneg %p370
        $region58: #{tpu_custom_call.1} parent=11 // pred_check_branch
          %1034 = sbr.rel (%p1032) target = $region60
        $region59: #{tpu_custom_call.1} parent=11 // pred_region
          _
        $region60: #{tpu_custom_call.1} parent=11 // pred_fallthru
          _
        // Predicated region
        $region61: #{tpu_custom_call.1} parent=11 // pred_check
          %p1035 = pneg %p391
        $region62: #{tpu_custom_call.1} parent=11 // pred_check_branch
          %1037 = sbr.rel (%p1035) target = $region64
        $region63: #{tpu_custom_call.1} parent=11 // pred_region
          _
        $region64: #{tpu_custom_call.1} parent=11 // pred_fallthru
          _
        // Predicated region
        $region65: #{tpu_custom_call.1} parent=11 // pred_check
          %p1038 = pneg %p412
        $region66: #{tpu_custom_call.1} parent=11 // pred_check_branch
          %1040 = sbr.rel (%p1038) target = $region68
        $region67: #{tpu_custom_call.1} parent=11 // pred_region
          _
        $region68: #{tpu_custom_call.1} parent=11 // pred_fallthru
          _
        // Predicated region
        $region69: #{tpu_custom_call.1} parent=11 // pred_check
          %p1041 = pneg %p433
        $region70: #{tpu_custom_call.1} parent=11 // pred_check_branch
          %1043 = sbr.rel (%p1041) target = $region72
        $region71: #{tpu_custom_call.1} parent=11 // pred_region
          _
        $region72: #{tpu_custom_call.1} parent=11 // pred_fallthru
          _
        // Predicated region
        $region73: #{tpu_custom_call.1} parent=11 // pred_check
          %p1044 = pneg %p454
        $region74: #{tpu_custom_call.1} parent=11 // pred_check_branch
          %1046 = sbr.rel (%p1044) target = $region76
        $region75: #{tpu_custom_call.1} parent=11 // pred_region
          _
        $region76: #{tpu_custom_call.1} parent=11 // pred_fallthru
          _
        // Predicated region
        $region77: #{tpu_custom_call.1} parent=11 // pred_check
          %p1047 = pneg %p475
        $region78: #{tpu_custom_call.1} parent=11 // pred_check_branch
          %1049 = sbr.rel (%p1047) target = $region80
        $region79: #{tpu_custom_call.1} parent=11 // pred_region
          _
        $region80: #{tpu_custom_call.1} parent=11 // pred_fallthru
          _
        // Predicated region
        $region81: #{tpu_custom_call.1} parent=11 // pred_check
          %p1050 = pneg %p496
        $region82: #{tpu_custom_call.1} parent=11 // pred_check_branch
          %1052 = sbr.rel (%p1050) target = $region84
        $region83: #{tpu_custom_call.1} parent=11 // pred_region
          _
        $region84: #{tpu_custom_call.1} parent=11 // pred_fallthru
          _
        // Predicated region
        $region85: #{tpu_custom_call.1} parent=11 // pred_check
          %p1053 = pneg %p517
        $region86: #{tpu_custom_call.1} parent=11 // pred_check_branch
          %1055 = sbr.rel (%p1053) target = $region88
        $region87: #{tpu_custom_call.1} parent=11 // pred_region
          _
        $region88: #{tpu_custom_call.1} parent=11 // pred_fallthru
          _
        // Predicated region
        $region89: #{tpu_custom_call.1} parent=11 // pred_check
          %p1056 = pneg %p538
        $region90: #{tpu_custom_call.1} parent=11 // pred_check_branch
          %1058 = sbr.rel (%p1056) target = $region92
        $region91: #{tpu_custom_call.1} parent=11 // pred_region
          _
        $region92: #{tpu_custom_call.1} parent=11 // pred_fallthru
          _
        // Predicated region
        $region93: #{tpu_custom_call.1} parent=11 // pred_check
          %p1059 = pneg %p559
        $region94: #{tpu_custom_call.1} parent=11 // pred_check_branch
          %1061 = sbr.rel (%p1059) target = $region96
        $region95: #{tpu_custom_call.1} parent=11 // pred_region
          _
        $region96: #{tpu_custom_call.1} parent=11 // pred_fallthru
          _
        // Predicated region
        $region97: #{tpu_custom_call.1} parent=11 // pred_check
          %p1062 = pneg %p580
        $region98: #{tpu_custom_call.1} parent=11 // pred_check_branch
          %1064 = sbr.rel (%p1062) target = $region100
        $region99: #{tpu_custom_call.1} parent=11 // pred_region
          _
        $region100: #{tpu_custom_call.1} parent=11 // pred_fallthru
          _
        // Predicated region
        $region101: #{tpu_custom_call.1} parent=11 // pred_check
          %p1065 = pneg %p601
        $region102: #{tpu_custom_call.1} parent=11 // pred_check_branch
          %1067 = sbr.rel (%p1065) target = $region104
        $region103: #{tpu_custom_call.1} parent=11 // pred_region
          _
        $region104: #{tpu_custom_call.1} parent=11 // pred_fallthru
          _
        // Predicated region
        $region105: #{tpu_custom_call.1} parent=11 // pred_check
          %p1068 = pneg %p622
        $region106: #{tpu_custom_call.1} parent=11 // pred_check_branch
          %1070 = sbr.rel (%p1068) target = $region108
        $region107: #{tpu_custom_call.1} parent=11 // pred_region
          _
        $region108: #{tpu_custom_call.1} parent=11 // pred_fallthru
          _
        // Predicated region
        $region109: #{tpu_custom_call.1} parent=11 // pred_check
          %p1071 = pneg %p643
        $region110: #{tpu_custom_call.1} parent=11 // pred_check_branch
          %1073 = sbr.rel (%p1071) target = $region112
        $region111: #{tpu_custom_call.1} parent=11 // pred_region
          _
        $region112: #{tpu_custom_call.1} parent=11 // pred_fallthru
          _
        // Predicated region
        $region113: #{tpu_custom_call.1} parent=11 // pred_check
          %p1074 = pneg %p664
        $region114: #{tpu_custom_call.1} parent=11 // pred_check_branch
          %1076 = sbr.rel (%p1074) target = $region116
        $region115: #{tpu_custom_call.1} parent=11 // pred_region
          _
        $region116: #{tpu_custom_call.1} parent=11 // pred_fallthru
          _
        // Predicated region
        $region117: #{tpu_custom_call.1} parent=11 // pred_check
          %p1077 = pneg %p685
        $region118: #{tpu_custom_call.1} parent=11 // pred_check_branch
          %1079 = sbr.rel (%p1077) target = $region120
        $region119: #{tpu_custom_call.1} parent=11 // pred_region
          _
        $region120: #{tpu_custom_call.1} parent=11 // pred_fallthru
          _
        // Predicated region
        $region121: #{tpu_custom_call.1} parent=11 // pred_check
          %p1080 = pneg %p706
        $region122: #{tpu_custom_call.1} parent=11 // pred_check_branch
          %1082 = sbr.rel (%p1080) target = $region124
        $region123: #{tpu_custom_call.1} parent=11 // pred_region
          _
        $region124: #{tpu_custom_call.1} parent=11 // pred_fallthru
          _
        // Predicated region
        $region125: #{tpu_custom_call.1} parent=11 // pred_check
          %p1083 = pneg %p727
        $region126: #{tpu_custom_call.1} parent=11 // pred_check_branch
          %1085 = sbr.rel (%p1083) target = $region128
        $region127: #{tpu_custom_call.1} parent=11 // pred_region
          _
        $region128: #{tpu_custom_call.1} parent=11 // pred_fallthru
          _
        // Predicated region
        $region129: #{tpu_custom_call.1} parent=11 // pred_check
          %p1086 = pneg %p748
        $region130: #{tpu_custom_call.1} parent=11 // pred_check_branch
          %1088 = sbr.rel (%p1086) target = $region132
        $region131: #{tpu_custom_call.1} parent=11 // pred_region
          _
        $region132: #{tpu_custom_call.1} parent=11 // pred_fallthru
          _
        // Predicated region
        $region133: #{tpu_custom_call.1} parent=11 // pred_check
          %p1089 = pneg %p769
        $region134: #{tpu_custom_call.1} parent=11 // pred_check_branch
          %1091 = sbr.rel (%p1089) target = $region136
        $region135: #{tpu_custom_call.1} parent=11 // pred_region
          _
        $region136: #{tpu_custom_call.1} parent=11 // pred_fallthru
          _
        // Predicated region
        $region137: #{tpu_custom_call.1} parent=11 // pred_check
          %p1092 = pneg %p790
        $region138: #{tpu_custom_call.1} parent=11 // pred_check_branch
          %1094 = sbr.rel (%p1092) target = $region140
        $region139: #{tpu_custom_call.1} parent=11 // pred_region
          _
        $region140: #{tpu_custom_call.1} parent=11 // pred_fallthru
          _
        // Predicated region
        $region141: #{tpu_custom_call.1} parent=11 // pred_check
          %p1095 = pneg %p811
        $region142: #{tpu_custom_call.1} parent=11 // pred_check_branch
          %1097 = sbr.rel (%p1095) target = $region144
        $region143: #{tpu_custom_call.1} parent=11 // pred_region
          _
        $region144: #{tpu_custom_call.1} parent=11 // pred_fallthru
          _
        // Predicated region
        $region145: #{tpu_custom_call.1} parent=11 // pred_check
          %p1098 = pneg %p832
        $region146: #{tpu_custom_call.1} parent=11 // pred_check_branch
          %1100 = sbr.rel (%p1098) target = $region148
        $region147: #{tpu_custom_call.1} parent=11 // pred_region
          _
        $region148: #{tpu_custom_call.1} parent=11 // pred_fallthru
          _
        // Predicated region
        $region149: #{tpu_custom_call.1} parent=11 // pred_check
          %p1101 = pneg %p853
        $region150: #{tpu_custom_call.1} parent=11 // pred_check_branch
          %1103 = sbr.rel (%p1101) target = $region152
        $region151: #{tpu_custom_call.1} parent=11 // pred_region
          _
        $region152: #{tpu_custom_call.1} parent=11 // pred_fallthru
          _
        // Predicated region
        $region153: #{tpu_custom_call.1} parent=11 // pred_check
          %p1104 = pneg %p874
        $region154: #{tpu_custom_call.1} parent=11 // pred_check_branch
          %1106 = sbr.rel (%p1104) target = $region156
        $region155: #{tpu_custom_call.1} parent=11 // pred_region
          _
        $region156: #{tpu_custom_call.1} parent=11 // pred_fallthru
          _
        // Predicated region
        $region157: #{tpu_custom_call.1} parent=11 // pred_check
          %p1107 = pneg %p895
        $region158: #{tpu_custom_call.1} parent=11 // pred_check_branch
          %1109 = sbr.rel (%p1107) target = $region160
        $region159: #{tpu_custom_call.1} parent=11 // pred_region
          _
        $region160: #{tpu_custom_call.1} parent=11 // pred_fallthru
          _
        // Predicated region
        $region161: #{tpu_custom_call.1} parent=11 // pred_check
          %p1110 = pneg %p916
        $region162: #{tpu_custom_call.1} parent=11 // pred_check_branch
          %1112 = sbr.rel (%p1110) target = $region164
        $region163: #{tpu_custom_call.1} parent=11 // pred_region
          _
        $region164: #{tpu_custom_call.1} parent=11 // pred_fallthru
          _
        // Predicated region
        $region165: #{tpu_custom_call.1} parent=11 // pred_check
          %p1113 = pneg %p937
        $region166: #{tpu_custom_call.1} parent=11 // pred_check_branch
          %1115 = sbr.rel (%p1113) target = $region168
        $region167: #{tpu_custom_call.1} parent=11 // pred_region
          _
        $region168: #{tpu_custom_call.1} parent=11 // pred_fallthru
          _
        // Predicated region
        $region169: #{tpu_custom_call.1} parent=11 // pred_check
          %p1116 = pneg %p958
        $region170: #{tpu_custom_call.1} parent=11 // pred_check_branch
          %1118 = sbr.rel (%p1116) target = $region172
        $region171: #{tpu_custom_call.1} parent=11 // pred_region
          _
        $region172: #{tpu_custom_call.1} parent=11 // pred_fallthru
          _
      $region12: #{tpu_custom_call.1} parent=5 // pred_fallthru
        _
      %p1119 = scmp.lt.s32.totalorder %s92, 2
      // Predicated region
      $region173: #{tpu_custom_call.1} parent=5 // pred_check
        %p1120 = pneg %p1119
      $region174: #{tpu_custom_call.1} parent=5 // pred_check_branch
        %1122 = sbr.rel (%p1120) target = $region176
      $region175: #{tpu_custom_call.1} parent=5 // pred_region
        // Predicated region
        $region177: #{tpu_custom_call.1} parent=175 // pred_check
          %p1123 = pneg %p112
        $region178: #{tpu_custom_call.1} parent=175 // pred_check_branch
          %1125 = sbr.rel (%p1123) target = $region180
        $region179: #{tpu_custom_call.1} parent=175 // pred_region
          %p1126 = scmp.lt.s32.totalorder %s92, 1
          %s1127 = scalar_select %p1126, %s92, 1
          %s1128 = smul.addr %s1127, 2
          %s1129 = smul.addr %s1128, 8
          %s1130 = scalar_lea.vmem %s1, %s1129
        $region180: #{tpu_custom_call.1} parent=175 // pred_fallthru
          _
      $region176: #{tpu_custom_call.1} parent=5 // pred_fallthru
        _
      %p1131 = scmp.le.s32.totalorder 1, %s92
      %p1132 = scmp.lt.s32.totalorder %s92, 3
      %p1133 = pnand %p1131, %p1132
      %p1134 = pneg %p1133
      // Predicated region
      $region181: #{tpu_custom_call.1} parent=5 // pred_check
        _
      $region182: #{tpu_custom_call.1} parent=5 // pred_check_branch
        %1136 = sbr.rel (%p1133) target = $region184
      $region183: #{tpu_custom_call.1} parent=5 // pred_region
        %s1137 = ssub.s32 %s92, 1
        %p1138 = scmp.lt.s32.totalorder %s97, 1
        %s1139 = scalar_select %p1138, %s97, 1
        %s1140 = smul.addr %s1139, 2
        %s1141 = smul.addr %s1140, 8
        %s1142 = scalar_lea.vmem %s1, %s1141
        %p1143 = pneg %p118
        %p1144 = pneg %p115
        %p1145 = pneg %p139
        %p1146 = pneg %p136
        %p1147 = pneg %p160
        %p1148 = pneg %p157
        %p1149 = pneg %p181
        %p1150 = pneg %p178
        %p1151 = pneg %p202
        %p1152 = pneg %p199
        %p1153 = pneg %p223
        %p1154 = pneg %p220
        %p1155 = pneg %p244
        %p1156 = pneg %p241
        %p1157 = pneg %p265
        %p1158 = pneg %p262
        %p1159 = pneg %p286
        %p1160 = pneg %p283
        %p1161 = pneg %p307
        %p1162 = pneg %p304
        %p1163 = pneg %p328
        %p1164 = pneg %p325
        %p1165 = pneg %p349
        %p1166 = pneg %p346
        %p1167 = pneg %p370
        %p1168 = pneg %p367
        %p1169 = pneg %p391
        %p1170 = pneg %p388
        %p1171 = pneg %p412
        %p1172 = pneg %p409
        %p1173 = pneg %p433
        %p1174 = pneg %p430
        %p1175 = pneg %p454
        %p1176 = pneg %p451
        %p1177 = pneg %p475
        %p1178 = pneg %p472
        %p1179 = pneg %p496
        %p1180 = pneg %p493
        %p1181 = pneg %p517
        %p1182 = pneg %p514
        %p1183 = pneg %p538
        %p1184 = pneg %p535
        %p1185 = pneg %p559
        %p1186 = pneg %p556
        %p1187 = pneg %p580
        %p1188 = pneg %p577
        %p1189 = pneg %p601
        %p1190 = pneg %p598
        %p1191 = pneg %p622
        %p1192 = pneg %p619
        %p1193 = pneg %p643
        %p1194 = pneg %p640
        %p1195 = pneg %p664
        %p1196 = pneg %p661
        %p1197 = pneg %p685
        %p1198 = pneg %p682
        %p1199 = pneg %p706
        %p1200 = pneg %p703
        %p1201 = pneg %p727
        %p1202 = pneg %p724
        %p1203 = pneg %p748
        %p1204 = pneg %p745
        %p1205 = pneg %p769
        %p1206 = pneg %p766
        %p1207 = pneg %p790
        %p1208 = pneg %p787
        %p1209 = pneg %p811
        %p1210 = pneg %p808
        %p1211 = pneg %p832
        %p1212 = pneg %p829
        %p1213 = pneg %p853
        %p1214 = pneg %p850
        %p1215 = pneg %p874
        %p1216 = pneg %p871
        %p1217 = pneg %p895
        %p1218 = pneg %p892
        %p1219 = pneg %p916
        %p1220 = pneg %p913
        %p1221 = pneg %p937
        %p1222 = pneg %p934
        %p1223 = pneg %p958
        %p1224 = pneg %p955
        %p1225 = pneg %p984
        %p1226 = pneg %p981
        %s1227 = sand.u32 %s971, 1
        %s1228 = scalar_lea.sflag [#allocation3], %s1227
        %s1229 = sand.u32 %s971, 1
        %s1230 = smul.addr %s1229, 4
        %s1231 = scalar_lea.vmem [#allocation2], %s1230
        %p1232 = scmp.lt.s32.totalorder %s97, 1
        %s1233 = scalar_select %p1232, %s97, 1
        %s1234 = smul.addr %s1233, 2
        %s1235 = smul.addr %s1234, 8
        %s1236 = scalar_lea.vmem %s1, %s1235
        %v1237 = vld [vmem:[%s1236] sm:$0xff]
        %v1238 = vld [vmem:[%s1236 + $0x8] sm:$0xff]
        %1241 = vrot.lane.b32.xlu0 %v1237, 120
        %v1242 = vpop.permute.xlu0 %1241
        %1243 = vrot.lane.b32.xlu0 %v1238, 120
        %v1244 = vpop.permute.xlu0 %1243
        %v1247 = vld [vmem:[%s3] sm:$0xff]
        %v1248 = vld [vmem:[%s3 + $0x8] sm:$0xff]
        %vm1249 = vcmask 261120
        %v1251 = vsel %vm1249, %v1247, 0
        %v1254 = vsel %vm1249, %v1248, 0
        %1256 = vmatpush.msra.mxu0 0.0
        %1257 = vmatpush.msra.mxu0 0.0
        %1258 = vmatpush.msra.mxu0 0.0
        %1259 = vmatpush.msra.mxu0 0.0
        %1260 = vmatpush.msra.mxu0 0.0
        %1261 = vmatpush.msra.mxu0 0.0
        %1262 = vmatpush.msra.mxu0 0.0
        %1263 = vmatpush.msra.mxu0 0.0
        %1264 = vmatpush.msra.mxu0 0.0
        %1265 = vmatpush.msra.mxu0 0.0
        %1266 = vmatpush.msra.mxu0 0.0
        %1267 = vmatpush.msra.mxu0 0.0
        %1268 = vmatpush.msra.mxu0 %v1244
        %1269 = vmatpush.msra.mxu0 %v1242
        %1270 = vmatpush.msra.mxu0 %v1238
        %1271 = vmatpush.msra.mxu0 %v1237
        %1272 = vmatmul.f32.gmra.mxu0 %v1251
        %v1273 = vpop.f32.mrf.mxu0
        %v1274 = vadd.f32 0.0, %v1273
        %1275 = vmatmul.f32.gmra.mxu0 %v1254
        %v1276 = vpop.f32.mrf.mxu0
        %v1277 = vadd.f32 0.0, %v1276
        %1278 = vdwg.mxu0
        %v1279 = vld [vmem:[%s5] sm:$0xff]
        %v1280 = vld [vmem:[%s5 + $0x8] sm:$0xff]
        %vm1281 = vcmask 130048
        %v1282 = vsel %vm1281, %v1237, 0
        %v1284 = vsel %vm1281, %v1238, 0
        %1286 = vmatpush.msra.mxu0 0.0
        %1287 = vmatpush.msra.mxu0 0.0
        %1288 = vmatpush.msra.mxu0 0.0
        %1289 = vmatpush.msra.mxu0 0.0
        %1290 = vmatpush.msra.mxu0 0.0
        %1291 = vmatpush.msra.mxu0 0.0
        %1292 = vmatpush.msra.mxu0 0.0
        %1293 = vmatpush.msra.mxu0 0.0
        %1294 = vmatpush.msra.mxu0 0.0
        %1295 = vmatpush.msra.mxu0 0.0
        %1296 = vmatpush.msra.mxu0 0.0
        %1297 = vmatpush.msra.mxu0 0.0
        %1298 = vmatpush.msra.mxu0 0.0
        %1299 = vmatpush.msra.mxu0 0.0
        %1300 = vmatpush.msra.mxu0 %v1280
        %1301 = vmatpush.msra.mxu0 %v1279
        %1302 = vmatmul.f32.gmra.mxu0 %v1282
        %v1303 = vpop.f32.mrf.mxu0
        %v1304 = vadd.f32 0.0, %v1303
        %1305 = vmatmul.f32.gmra.mxu0 %v1284
        %v1306 = vpop.f32.mrf.mxu0
        %v1307 = vadd.f32 0.0, %v1306
        %1308 = vdwg.mxu0
        %v1309 = vld [vmem:[%s7] sm:$0xff]
        %v1310 = vld [vmem:[%s9] sm:$0xff]
        %1311 = vxpose.xlu0.b32.start [1/16] %v1274, 128
        %1312 = vxpose.xlu0.b32.cont [2/16] %v1277, 128
        %1313 = vxpose.xlu0.b32.cont [3/16] 0.0, 128
        %1314 = vxpose.xlu0.b32.cont [4/16] 0.0, 128
        %1315 = vxpose.xlu0.b32.cont [5/16] 0.0, 128
        %1316 = vxpose.xlu0.b32.cont [6/16] 0.0, 128
        %1317 = vxpose.xlu0.b32.cont [7/16] 0.0, 128
        %1318 = vxpose.xlu0.b32.cont [8/16] 0.0, 128
        %1319 = vxpose.xlu0.b32.cont [9/16] 0.0, 128
        %1320 = vxpose.xlu0.b32.cont [10/16] 0.0, 128
        %1321 = vxpose.xlu0.b32.cont [11/16] 0.0, 128
        %1322 = vxpose.xlu0.b32.cont [12/16] 0.0, 128
        %1323 = vxpose.xlu0.b32.cont [13/16] 0.0, 128
        %1324 = vxpose.xlu0.b32.cont [14/16] 0.0, 128
        %1325 = vxpose.xlu0.b32.cont [15/16] 0.0, 128
        %1326 = vxpose.xlu0.b32.end [16/16] 0.0, 128
        %v1327 = vpop.trf.xlu0
        %v1328 = vpop.trf.xlu0
        %v1329 = vpop.trf.xlu0
        %v1330 = vpop.trf.xlu0
        %v1331 = vpop.trf.xlu0
        %v1332 = vpop.trf.xlu0
        %v1333 = vpop.trf.xlu0
        %v1334 = vpop.trf.xlu0
        %v1335 = vpop.trf.xlu0
        %v1336 = vpop.trf.xlu0
        %v1337 = vpop.trf.xlu0
        %v1338 = vpop.trf.xlu0
        %v1339 = vpop.trf.xlu0
        %v1340 = vpop.trf.xlu0
        %v1341 = vpop.trf.xlu0
        %v1342 = vpop.trf.xlu0
        %v1344 = vsel %vm1281, %v1327, 0
        %1346 = vmatpush.msra.mxu0 0.0
        %1347 = vmatpush.msra.mxu0 0.0
        %1348 = vmatpush.msra.mxu0 0.0
        %1349 = vmatpush.msra.mxu0 0.0
        %1350 = vmatpush.msra.mxu0 0.0
        %1351 = vmatpush.msra.mxu0 0.0
        %1352 = vmatpush.msra.mxu0 0.0
        %1353 = vmatpush.msra.mxu0 0.0
        %1354 = vmatpush.msra.mxu0 0.0
        %1355 = vmatpush.msra.mxu0 0.0
        %1356 = vmatpush.msra.mxu0 0.0
        %1357 = vmatpush.msra.mxu0 0.0
        %1358 = vmatpush.msra.mxu0 0.0
        %1359 = vmatpush.msra.mxu0 0.0
        %1360 = vmatpush.msra.mxu0 %v1307
        %1361 = vmatpush.msra.mxu0 %v1304
        %1362 = vmatmul.f32.gmra.mxu0 %v1344
        %v1363 = vpop.f32.mrf.mxu0
        %v1364 = vadd.f32 %v1310, %v1363
        %1365 = vdwg.mxu0
        %v1366 = vsub.f32 0.0, %v1364
        %v1367 = vmul.f32 %v1366, 1.442695
        %v1368 = vpow.pop %v1367
        %v1369 = vadd.f32 %v1368, 1.0
        %v1370 = vrcp.pop %v1369
        %v1371 = vmul.f32 %v1369, %v1370
        %v1372 = vsub.f32 1.0, %v1371
        %v1373 = vmul.f32 %v1370, %v1372
        %v1374 = vadd.f32 %v1370, %v1373
        %vm1375 = vweird.f32 %v1369
        %vm1376 = vweird.f32 %v1370
        %vm1377 = vmor %vm1375, %vm1376
        %v1378 = vsel %vm1377, %v1370, %v1374
        %v1379 = vand.u32 2147483647, %v1369
        %vm1380 = vcmp.eq.f32.partialorder %v1379, 8.507059e+37
        %v1381 = vand.u32 %v1369, 2147483648
        %v1382 = vor.u32 1.1754944e-38, %v1381
        %v1383 = vsel %vm1380, %v1382, %v1378
        %v1384 = vmul.f32 1.0, %v1383
        %vm1385 = vcmask 64512
        %v1387 = vsel %vm1385, %v1309, 0
        %1389 = vmatpush.msra.mxu0 0.0
        %1390 = vmatpush.msra.mxu0 0.0
        %1391 = vmatpush.msra.mxu0 0.0
        %1392 = vmatpush.msra.mxu0 0.0
        %1393 = vmatpush.msra.mxu0 0.0
        %1394 = vmatpush.msra.mxu0 0.0
        %1395 = vmatpush.msra.mxu0 0.0
        %1396 = vmatpush.msra.mxu0 0.0
        %1397 = vmatpush.msra.mxu0 0.0
        %1398 = vmatpush.msra.mxu0 0.0
        %1399 = vmatpush.msra.mxu0 0.0
        %1400 = vmatpush.msra.mxu0 0.0
        %1401 = vmatpush.msra.mxu0 0.0
        %1402 = vmatpush.msra.mxu0 0.0
        %1403 = vmatpush.msra.mxu0 0.0
        %1404 = vmatpush.msra.mxu0 %v1384
        %1405 = vmatmul.f32.gmra.mxu0 %v1387
        %v1406 = vpop.f32.mrf.mxu0
        %v1407 = vadd.f32 0.0, %v1406
        %1408 = vdwg.mxu0
        %v1409 = vsel %vm1385, %v1407, -inf
        %v1410 = vrot.slane %v1409, 4
        %v1411 = vmax.f32 %v1409, %v1410
        %v1412 = vrot.slane %v1411, 2
        %v1413 = vmax.f32 %v1411, %v1412
        %v1414 = vrot.slane %v1413, 1
        %v1415 = vmax.f32 %v1413, %v1414
        %v1416 = vsub.f32 %v1407, %v1415
        %v1417 = vmul.f32 %v1416, 1.442695
        %v1418 = vpow.pop %v1417
        %v1419 = vsel %vm1385, %v1418, 0.0
        %v1420 = vrot.slane %v1419, 4
        %v1421 = vadd.f32 %v1419, %v1420
        %v1422 = vrot.slane %v1421, 2
        %v1423 = vadd.f32 %v1421, %v1422
        %v1424 = vrot.slane %v1423, 1
        %v1425 = vadd.f32 %v1423, %v1424
        %v1426 = vrcp.pop %v1425
        %v1427 = vmul.f32 %v1425, %v1426
        %v1428 = vsub.f32 1.0, %v1427
        %v1429 = vmul.f32 %v1426, %v1428
        %v1430 = vadd.f32 %v1426, %v1429
        %vm1431 = vweird.f32 %v1425
        %vm1432 = vweird.f32 %v1426
        %vm1433 = vmor %vm1431, %vm1432
        %v1434 = vsel %vm1433, %v1426, %v1430
        %v1435 = vand.u32 2147483647, %v1425
        %vm1436 = vcmp.eq.f32.partialorder %v1435, 8.507059e+37
        %v1437 = vand.u32 %v1425, 2147483648
        %v1438 = vor.u32 1.1754944e-38, %v1437
        %v1439 = vsel %vm1436, %v1438, %v1434
        %v1440 = vmul.f32 %v1418, %v1439
        %v1441 = vld [vmem:[%s17] sm:$0xff]
        %v1442 = vld [vmem:[%s17 + $0x8] sm:$0xff]
        %v1444 = vsel %vm1385, %v1441, 0
        %v1447 = vsel %vm1385, %v1442, 0
        %1449 = vmatpush.msra.mxu0 0.0
        %1450 = vmatpush.msra.mxu0 0.0
        %1451 = vmatpush.msra.mxu0 0.0
        %1452 = vmatpush.msra.mxu0 0.0
        %1453 = vmatpush.msra.mxu0 0.0
        %1454 = vmatpush.msra.mxu0 0.0
        %1455 = vmatpush.msra.mxu0 0.0
        %1456 = vmatpush.msra.mxu0 0.0
        %1457 = vmatpush.msra.mxu0 0.0
        %1458 = vmatpush.msra.mxu0 0.0
        %1459 = vmatpush.msra.mxu0 0.0
        %1460 = vmatpush.msra.mxu0 0.0
        %1461 = vmatpush.msra.mxu0 0.0
        %1462 = vmatpush.msra.mxu0 0.0
        %1463 = vmatpush.msra.mxu0 0.0
        %1464 = vmatpush.msra.mxu0 %v1440
        %1465 = vmatmul.f32.gmra.mxu0 %v1444
        %v1466 = vpop.f32.mrf.mxu0
        %v1467 = vadd.f32 0.0, %v1466
        %1468 = vmatmul.f32.gmra.mxu0 %v1447
        %v1469 = vpop.f32.mrf.mxu0
        %v1470 = vadd.f32 0.0, %v1469
        %1471 = vdwg.mxu0
        %v1472 = vld [vmem:[%s11] sm:$0x1]
        %v1474 = vperm.slane %v1472, 0
        %v1476 = vmul.f32 %v1467, %v1474
        %v1477 = vmul.f32 %v1470, %v1474
        %v1478 = vsel %vm1385, %v1476, 0.0
        %1479 = vadd.xlane.f32.xlu0 %v1478
        %v1480 = vpop.xlane.xlu0 %1479
        %v1481 = vsel %vm1385, %v1477, 0.0
        %1482 = vadd.xlane.f32.xlu0 %v1481
        %v1483 = vpop.xlane.xlu0 %1482
        %v1484 = vld [vmem:[%s13] sm:$0xff]
        %v1485 = vld [vmem:[%s13 + $0x8] sm:$0xff]
        %v1486 = vmul.f32 %v1484, %v1480
        %v1487 = vmul.f32 %v1485, %v1483
        %1488 = vmatpush.msra.mxu0 0.0
        %1489 = vmatpush.msra.mxu0 0.0
        %1490 = vmatpush.msra.mxu0 0.0
        %1491 = vmatpush.msra.mxu0 0.0
        %1492 = vmatpush.msra.mxu0 0.0
        %1493 = vmatpush.msra.mxu0 0.0
        %1494 = vmatpush.msra.mxu0 0.0
        %1495 = vmatpush.msra.mxu0 0.0
        %1496 = vmatpush.msra.mxu0 0.0
        %1497 = vmatpush.msra.mxu0 0.0
        %1498 = vmatpush.msra.mxu0 0.0
        %1499 = vmatpush.msra.mxu0 0.0
        %1500 = vmatpush.msra.mxu0 0.0
        %1501 = vmatpush.msra.mxu0 0.0
        %1502 = vmatpush.msra.mxu0 %v1487
        %1503 = vmatpush.msra.mxu0 %v1486
        %1504 = vmatmul.f32.gmra.mxu0 %v1282
        %v1505 = vpop.f32.mrf.mxu0
        %v1506 = vadd.f32 0.0, %v1505
        %1507 = vmatmul.f32.gmra.mxu0 %v1284
        %v1508 = vpop.f32.mrf.mxu0
        %v1509 = vadd.f32 0.0, %v1508
        %1510 = vdwg.mxu0
        %v1511 = vld [vmem:[%s15] sm:$0xff]
        %v1512 = vld [vmem:[%s15 + $0x8] sm:$0xff]
        %1513 = vmatpush.msra.mxu0 0.0
        %1514 = vmatpush.msra.mxu0 0.0
        %1515 = vmatpush.msra.mxu0 0.0
        %1516 = vmatpush.msra.mxu0 0.0
        %1517 = vmatpush.msra.mxu0 0.0
        %1518 = vmatpush.msra.mxu0 0.0
        %1519 = vmatpush.msra.mxu0 0.0
        %1520 = vmatpush.msra.mxu0 0.0
        %1521 = vmatpush.msra.mxu0 0.0
        %1522 = vmatpush.msra.mxu0 0.0
        %1523 = vmatpush.msra.mxu0 0.0
        %1524 = vmatpush.msra.mxu0 0.0
        %1525 = vmatpush.msra.mxu0 0.0
        %1526 = vmatpush.msra.mxu0 0.0
        %1527 = vmatpush.msra.mxu0 %v1512
        %1528 = vmatpush.msra.mxu0 %v1511
        %1529 = vmatmul.f32.gmra.mxu0 %v1282
        %v1530 = vpop.f32.mrf.mxu0
        %v1531 = vadd.f32 0.0, %v1530
        %1532 = vmatmul.f32.gmra.mxu0 %v1284
        %v1533 = vpop.f32.mrf.mxu0
        %v1534 = vadd.f32 0.0, %v1533
        %1535 = vdwg.mxu0
        %v1537 = vsel %vm1385, %v1531, 0
        %v1540 = vsel %vm1385, %v1534, 0
        %1542 = vmatpush.msra.mxu0 0.0
        %1543 = vmatpush.msra.mxu0 0.0
        %1544 = vmatpush.msra.mxu0 0.0
        %1545 = vmatpush.msra.mxu0 0.0
        %1546 = vmatpush.msra.mxu0 0.0
        %1547 = vmatpush.msra.mxu0 0.0
        %1548 = vmatpush.msra.mxu0 0.0
        %1549 = vmatpush.msra.mxu0 0.0
        %1550 = vmatpush.msra.mxu0 0.0
        %1551 = vmatpush.msra.mxu0 0.0
        %1552 = vmatpush.msra.mxu0 0.0
        %1553 = vmatpush.msra.mxu0 0.0
        %1554 = vmatpush.msra.mxu0 0.0
        %1555 = vmatpush.msra.mxu0 0.0
        %1556 = vmatpush.msra.mxu0 0.0
        %1557 = vmatpush.msra.mxu0 %v1440
        %1558 = vmatmul.f32.gmra.mxu0 %v1537
        %v1559 = vpop.f32.mrf.mxu0
        %v1560 = vadd.f32 0.0, %v1559
        %1561 = vmatmul.f32.gmra.mxu0 %v1540
        %v1562 = vpop.f32.mrf.mxu0
        %v1563 = vadd.f32 0.0, %v1562
        %1564 = vdwg.mxu0
        %v1565 = vld [vmem:[%s19] sm:$0xff]
        %v1566 = vld [vmem:[%s19 + $0x8] sm:$0xff]
        %v1568 = vsel %vm1385, %v1560, 0
        %v1571 = vsel %vm1385, %v1563, 0
        %v1574 = vsel %vm1385, %v1506, 0
        %v1577 = vsel %vm1385, %v1509, 0
        %1579 = vmatpush.xpose.msra.mxu0 0.0
        %1580 = vmatpush.xpose.msra.mxu0 0.0
        %1581 = vmatpush.xpose.msra.mxu0 0.0
        %1582 = vmatpush.xpose.msra.mxu0 0.0
        %1583 = vmatpush.xpose.msra.mxu0 0.0
        %1584 = vmatpush.xpose.msra.mxu0 0.0
        %1585 = vmatpush.xpose.msra.mxu0 0.0
        %1586 = vmatpush.xpose.msra.mxu0 0.0
        %1587 = vmatpush.xpose.msra.mxu0 0.0
        %1588 = vmatpush.xpose.msra.mxu0 0.0
        %1589 = vmatpush.xpose.msra.mxu0 0.0
        %1590 = vmatpush.xpose.msra.mxu0 0.0
        %1591 = vmatpush.xpose.msra.mxu0 0.0
        %1592 = vmatpush.xpose.msra.mxu0 0.0
        %1593 = vmatpush.xpose.msra.mxu0 %v1577
        %1594 = vmatpush.xpose.msra.mxu0 %v1574
        %1595 = vmatmul.f32.gmra.mxu0 %v1568
        %v1596 = vpop.f32.mrf.mxu0
        %v1597 = vadd.f32 %v1565, %v1596
        %1598 = vmatmul.f32.gmra.mxu0 %v1571
        %v1599 = vpop.f32.mrf.mxu0
        %v1600 = vadd.f32 %v1566, %v1599
        %1601 = vdwg.mxu0
        %v1602 = vsub.f32 0.0, %v1597
        %v1603 = vsub.f32 0.0, %v1600
        %v1604 = vmul.f32 %v1602, 1.442695
        %v1605 = vpow.pop %v1604
        %v1606 = vmul.f32 %v1603, 1.442695
        %v1607 = vpow.pop %v1606
        %v1608 = vadd.f32 %v1605, 1.0
        %v1609 = vadd.f32 %v1607, 1.0
        %v1610 = vrcp.pop %v1608
        %v1611 = vmul.f32 %v1608, %v1610
        %v1612 = vsub.f32 1.0, %v1611
        %v1613 = vmul.f32 %v1610, %v1612
        %v1614 = vadd.f32 %v1610, %v1613
        %vm1615 = vweird.f32 %v1608
        %vm1616 = vweird.f32 %v1610
        %vm1617 = vmor %vm1615, %vm1616
        %v1618 = vsel %vm1617, %v1610, %v1614
        %v1619 = vand.u32 2147483647, %v1608
        %vm1620 = vcmp.eq.f32.partialorder %v1619, 8.507059e+37
        %v1621 = vand.u32 %v1608, 2147483648
        %v1622 = vor.u32 1.1754944e-38, %v1621
        %v1623 = vsel %vm1620, %v1622, %v1618
        %v1624 = vmul.f32 1.0, %v1623
        %v1625 = vrcp.pop %v1609
        %v1626 = vmul.f32 %v1609, %v1625
        %v1627 = vsub.f32 1.0, %v1626
        %v1628 = vmul.f32 %v1625, %v1627
        %v1629 = vadd.f32 %v1625, %v1628
        %vm1630 = vweird.f32 %v1609
        %vm1631 = vweird.f32 %v1625
        %vm1632 = vmor %vm1630, %vm1631
        %v1633 = vsel %vm1632, %v1625, %v1629
        %v1634 = vand.u32 2147483647, %v1609
        %vm1635 = vcmp.eq.f32.partialorder %v1634, 8.507059e+37
        %v1636 = vand.u32 %v1609, 2147483648
        %v1637 = vor.u32 1.1754944e-38, %v1636
        %v1638 = vsel %vm1635, %v1637, %v1633
        %v1639 = vmul.f32 1.0, %v1638
        %v1640 = vld [vmem:[%s21] sm:$0xff]
        %v1641 = vld [vmem:[%s21 + $0x8] sm:$0xff]
        %v1643 = vsel %vm1281, %v1624, 0
        %v1646 = vsel %vm1281, %v1639, 0
        %1648 = vmatpush.msra.mxu0 0.0
        %1649 = vmatpush.msra.mxu0 0.0
        %1650 = vmatpush.msra.mxu0 0.0
        %1651 = vmatpush.msra.mxu0 0.0
        %1652 = vmatpush.msra.mxu0 0.0
        %1653 = vmatpush.msra.mxu0 0.0
        %1654 = vmatpush.msra.mxu0 0.0
        %1655 = vmatpush.msra.mxu0 0.0
        %1656 = vmatpush.msra.mxu0 0.0
        %1657 = vmatpush.msra.mxu0 0.0
        %1658 = vmatpush.msra.mxu0 0.0
        %1659 = vmatpush.msra.mxu0 0.0
        %1660 = vmatpush.msra.mxu0 0.0
        %1661 = vmatpush.msra.mxu0 0.0
        %1662 = vmatpush.msra.mxu0 %v1641
        %1663 = vmatpush.msra.mxu0 %v1640
        %1664 = vmatmul.f32.gmra.mxu0 %v1643
        %v1665 = vpop.f32.mrf.mxu0
        %v1666 = vadd.f32 0.0, %v1665
        %1667 = vmatmul.f32.gmra.mxu0 %v1646
        %v1668 = vpop.f32.mrf.mxu0
        %v1669 = vadd.f32 0.0, %v1668
        %1670 = vdwg.mxu0
        %v1671 = vsel %vm1281, %v1666, -inf
        %1672 = vmax.xlane.f32.xlu0 %v1671
        %v1673 = vpop.xlane.xlu0 %1672
        %v1674 = vsel %vm1281, %v1669, -inf
        %1675 = vmax.xlane.f32.xlu0 %v1674
        %v1676 = vpop.xlane.xlu0 %1675
        %v1677 = vsub.f32 %v1666, %v1673
        %v1678 = vsub.f32 %v1669, %v1676
        %v1679 = vmul.f32 %v1677, 1.442695
        %v1680 = vpow.pop %v1679
        %v1681 = vmul.f32 %v1678, 1.442695
        %v1682 = vpow.pop %v1681
        %v1683 = vsel %vm1281, %v1680, 0.0
        %1684 = vadd.xlane.f32.xlu0 %v1683
        %v1685 = vpop.xlane.xlu0 %1684
        %v1686 = vsel %vm1281, %v1682, 0.0
        %1687 = vadd.xlane.f32.xlu0 %v1686
        %v1688 = vpop.xlane.xlu0 %1687
        %v1689 = vrcp.pop %v1685
        %v1690 = vmul.f32 %v1685, %v1689
        %v1691 = vsub.f32 1.0, %v1690
        %v1692 = vmul.f32 %v1689, %v1691
        %v1693 = vadd.f32 %v1689, %v1692
        %vm1694 = vweird.f32 %v1685
        %vm1695 = vweird.f32 %v1689
        %vm1696 = vmor %vm1694, %vm1695
        %v1697 = vsel %vm1696, %v1689, %v1693
        %v1698 = vand.u32 2147483647, %v1685
        %vm1699 = vcmp.eq.f32.partialorder %v1698, 8.507059e+37
        %v1700 = vand.u32 %v1685, 2147483648
        %v1701 = vor.u32 1.1754944e-38, %v1700
        %v1702 = vsel %vm1699, %v1701, %v1697
        %v1703 = vmul.f32 %v1680, %v1702
        %v1704 = vrcp.pop %v1688
        %v1705 = vmul.f32 %v1688, %v1704
        %v1706 = vsub.f32 1.0, %v1705
        %v1707 = vmul.f32 %v1704, %v1706
        %v1708 = vadd.f32 %v1704, %v1707
        %vm1709 = vweird.f32 %v1688
        %vm1710 = vweird.f32 %v1704
        %vm1711 = vmor %vm1709, %vm1710
        %v1712 = vsel %vm1711, %v1704, %v1708
        %v1713 = vand.u32 2147483647, %v1688
        %vm1714 = vcmp.eq.f32.partialorder %v1713, 8.507059e+37
        %v1715 = vand.u32 %v1688, 2147483648
        %v1716 = vor.u32 1.1754944e-38, %v1715
        %v1717 = vsel %vm1714, %v1716, %v1712
        %v1718 = vmul.f32 %v1682, %v1717
        %v1719 = vld [vmem:[%s25] sm:$0xff]
        %v1720 = vld [vmem:[%s25 + $0x8] sm:$0xff]
        %v1721 = vld [vmem:[%s25 + $0x10] sm:$0xff]
        %v1722 = vld [vmem:[%s25 + $0x18] sm:$0xff]
        %1723 = vmatpush.msra.mxu0 0.0
        %1724 = vmatpush.msra.mxu0 0.0
        %1725 = vmatpush.msra.mxu0 0.0
        %1726 = vmatpush.msra.mxu0 0.0
        %1727 = vmatpush.msra.mxu0 0.0
        %1728 = vmatpush.msra.mxu0 0.0
        %1729 = vmatpush.msra.mxu0 0.0
        %1730 = vmatpush.msra.mxu0 0.0
        %1731 = vmatpush.msra.mxu0 0.0
        %1732 = vmatpush.msra.mxu0 0.0
        %1733 = vmatpush.msra.mxu0 0.0
        %1734 = vmatpush.msra.mxu0 0.0
        %1735 = vmatpush.msra.mxu0 0.0
        %1736 = vmatpush.msra.mxu0 0.0
        %1737 = vmatpush.msra.mxu0 %v1721
        %1738 = vmatpush.msra.mxu0 %v1719
        %1739 = vmatmul.f32.gmra.mxu0 %v1282
        %v1740 = vpop.f32.mrf.mxu0
        %v1741 = vadd.f32 0.0, %v1740
        %1742 = vmatmul.f32.gmra.mxu0 %v1284
        %v1743 = vpop.f32.mrf.mxu0
        %v1744 = vadd.f32 0.0, %v1743
        %1745 = vdwg.mxu0
        %1746 = vmatpush.msra.mxu0 0.0
        %1747 = vmatpush.msra.mxu0 0.0
        %1748 = vmatpush.msra.mxu0 0.0
        %1749 = vmatpush.msra.mxu0 0.0
        %1750 = vmatpush.msra.mxu0 0.0
        %1751 = vmatpush.msra.mxu0 0.0
        %1752 = vmatpush.msra.mxu0 0.0
        %1753 = vmatpush.msra.mxu0 0.0
        %1754 = vmatpush.msra.mxu0 0.0
        %1755 = vmatpush.msra.mxu0 0.0
        %1756 = vmatpush.msra.mxu0 0.0
        %1757 = vmatpush.msra.mxu0 0.0
        %1758 = vmatpush.msra.mxu0 0.0
        %1759 = vmatpush.msra.mxu0 0.0
        %1760 = vmatpush.msra.mxu0 %v1722
        %1761 = vmatpush.msra.mxu0 %v1720
        %1762 = vmatmul.f32.gmra.mxu0 %v1282
        %v1763 = vpop.f32.mrf.mxu0
        %v1764 = vadd.f32 0.0, %v1763
        %1765 = vmatmul.f32.gmra.mxu0 %v1284
        %v1766 = vpop.f32.mrf.mxu0
        %v1767 = vadd.f32 0.0, %v1766
        %1768 = vdwg.mxu0
        %1771 = vrot.lane.b32.xlu0 %v1741, 64
        %v1772 = vpop.permute.xlu0 %1771
        %1773 = vrot.lane.b32.xlu0 %v1744, 64
        %v1774 = vpop.permute.xlu0 %1773
        %v1777 = vld [vmem:[%s23] sm:$0xff]
        %v1778 = vld [vmem:[%s23 + $0x8] sm:$0xff]
        %1781 = vrot.lane.b32.xlu0 %v1703, 16
        %v1782 = vpop.permute.xlu0 %1781
        %1783 = vrot.lane.b32.xlu0 %v1718, 16
        %v1784 = vpop.permute.xlu0 %1783
        %1787 = vrot.lane.b32.xlu0 %v1703, 32
        %v1788 = vpop.permute.xlu0 %1787
        %1789 = vrot.lane.b32.xlu0 %v1718, 32
        %v1790 = vpop.permute.xlu0 %1789
        %v1793 = vsel %vm1281, %v1703, %v1782
        %v1794 = vsel %vm1281, %v1718, %v1784
        %v1795 = vsel %vm1249, %v1793, %v1788
        %v1796 = vsel %vm1249, %v1794, %v1790
        %v1797 = vmul.f32 %v1777, %v1795
        %v1798 = vmul.f32 %v1778, %v1796
        %vm1799 = vcmask 392192
        %v1801 = vsel %vm1799, %v1797, 0
        %v1804 = vsel %vm1799, %v1798, 0
        %1806 = vmatpush.msra.mxu0 0.0
        %1807 = vmatpush.msra.mxu0 0.0
        %1808 = vmatpush.msra.mxu0 0.0
        %1809 = vmatpush.msra.mxu0 0.0
        %1810 = vmatpush.msra.mxu0 0.0
        %1811 = vmatpush.msra.mxu0 0.0
        %1812 = vmatpush.msra.mxu0 0.0
        %1813 = vmatpush.msra.mxu0 0.0
        %1814 = vmatpush.msra.mxu0 0.0
        %1815 = vmatpush.msra.mxu0 0.0
        %1816 = vmatpush.msra.mxu0 %v1767
        %1817 = vmatpush.msra.mxu0 %v1764
        %1818 = vmatpush.msra.mxu0 %v1774
        %1819 = vmatpush.msra.mxu0 %v1772
        %1820 = vmatpush.msra.mxu0 %v1744
        %1821 = vmatpush.msra.mxu0 %v1741
        %1822 = vmatmul.f32.gmra.mxu0 %v1801
        %v1823 = vpop.f32.mrf.mxu0
        %v1824 = vadd.f32 0.0, %v1823
        %1825 = vmatmul.f32.gmra.mxu0 %v1804
        %v1826 = vpop.f32.mrf.mxu0
        %v1827 = vadd.f32 0.0, %v1826
        %1828 = vdwg.mxu0
        %v1829 = vmax.f32 %v1824, 0.0
        %v1830 = vmax.f32 %v1827, 0.0
        %v1831 = vld [vmem:[%s27] sm:$0xff]
        %v1832 = vld [vmem:[%s27 + $0x8] sm:$0xff]
        %v1833 = vld [vmem:[%s27 + $0x10] sm:$0xff]
        %v1834 = vld [vmem:[%s27 + $0x18] sm:$0xff]
        %v1835 = vld [vmem:[%s27 + $0x20] sm:$0xff]
        %v1836 = vld [vmem:[%s27 + $0x28] sm:$0xff]
        %v1837 = vld [vmem:[%s27 + $0x30] sm:$0xff]
        %v1838 = vld [vmem:[%s27 + $0x38] sm:$0xff]
        %v1839 = vld [vmem:[%s29] sm:$0xff]
        %v1840 = vld [vmem:[%s29 + $0x8] sm:$0xff]
        %1841 = vmatpush.msra.mxu0 0.0
        %1842 = vmatpush.msra.mxu0 0.0
        %1843 = vmatpush.msra.mxu0 0.0
        %1844 = vmatpush.msra.mxu0 0.0
        %1845 = vmatpush.msra.mxu0 0.0
        %1846 = vmatpush.msra.mxu0 0.0
        %1847 = vmatpush.msra.mxu0 0.0
        %1848 = vmatpush.msra.mxu0 0.0
        %1849 = vmatpush.msra.mxu0 0.0
        %1850 = vmatpush.msra.mxu0 0.0
        %1851 = vmatpush.msra.mxu0 0.0
        %1852 = vmatpush.msra.mxu0 0.0
        %1853 = vmatpush.msra.mxu0 0.0
        %1854 = vmatpush.msra.mxu0 0.0
        %1855 = vmatpush.msra.mxu0 %v1840
        %1856 = vmatpush.msra.mxu0 %v1839
        %1857 = vmatmul.f32.gmra.mxu0 %v1282
        %v1858 = vpop.f32.mrf.mxu0
        %v1859 = vadd.f32 0.0, %v1858
        %1860 = vmatmul.f32.gmra.mxu0 %v1284
        %v1861 = vpop.f32.mrf.mxu0
        %v1862 = vadd.f32 0.0, %v1861
        %1863 = vdwg.mxu0
        %vm1864 = vcmask 523264
        %v1866 = vsel %vm1864, %v1829, 0
        %v1869 = vsel %vm1864, %v1830, 0
        %1871 = vmatpush.msra.mxu0 0.0
        %1872 = vmatpush.msra.mxu0 0.0
        %1873 = vmatpush.msra.mxu0 0.0
        %1874 = vmatpush.msra.mxu0 0.0
        %1875 = vmatpush.msra.mxu0 0.0
        %1876 = vmatpush.msra.mxu0 0.0
        %1877 = vmatpush.msra.mxu0 0.0
        %1878 = vmatpush.msra.mxu0 0.0
        %1879 = vmatpush.msra.mxu0 %v1838
        %1880 = vmatpush.msra.mxu0 %v1837
        %1881 = vmatpush.msra.mxu0 %v1836
        %1882 = vmatpush.msra.mxu0 %v1835
        %1883 = vmatpush.msra.mxu0 %v1834
        %1884 = vmatpush.msra.mxu0 %v1833
        %1885 = vmatpush.msra.mxu0 %v1832
        %1886 = vmatpush.msra.mxu0 %v1831
        %1887 = vmatmul.f32.gmra.mxu0 %v1866
        %v1888 = vpop.f32.mrf.mxu0
        %v1889 = vadd.f32 %v1859, %v1888
        %1890 = vmatmul.f32.gmra.mxu0 %v1869
        %v1891 = vpop.f32.mrf.mxu0
        %v1892 = vadd.f32 %v1862, %v1891
        %1893 = vdwg.mxu0
        %v1894 = vld [vmem:[%s31] sm:$0x1]
        %v1896 = vperm.slane %v1894, 0
        %v1898 = vadd.f32 %v1889, %v1896
        %v1899 = vadd.f32 %v1892, %v1896
        %v1900 = vmax.f32 %v1898, 0.0
        %v1901 = vmax.f32 %v1899, 0.0
        %v1902 = vld [vmem:[%s37] sm:$0xff]
        %v1903 = vld [vmem:[%s37 + $0x8] sm:$0xff]
        %v1904 = vld [vmem:[%s37 + $0x10] sm:$0xff]
        %v1905 = vld [vmem:[%s37 + $0x18] sm:$0xff]
        %v1907 = vsel %vm1249, %v1900, 0
        %v1910 = vsel %vm1249, %v1901, 0
        %1912 = vmatpush.msra.mxu0 0.0
        %1913 = vmatpush.msra.mxu0 0.0
        %1914 = vmatpush.msra.mxu0 0.0
        %1915 = vmatpush.msra.mxu0 0.0
        %1916 = vmatpush.msra.mxu0 0.0
        %1917 = vmatpush.msra.mxu0 0.0
        %1918 = vmatpush.msra.mxu0 0.0
        %1919 = vmatpush.msra.mxu0 0.0
        %1920 = vmatpush.msra.mxu0 0.0
        %1921 = vmatpush.msra.mxu0 0.0
        %1922 = vmatpush.msra.mxu0 0.0
        %1923 = vmatpush.msra.mxu0 0.0
        %1924 = vmatpush.msra.mxu0 %v1905
        %1925 = vmatpush.msra.mxu0 %v1904
        %1926 = vmatpush.msra.mxu0 %v1903
        %1927 = vmatpush.msra.mxu0 %v1902
        %1928 = vmatmul.f32.gmra.mxu0 %v1907
        %v1929 = vpop.f32.mrf.mxu0
        %v1930 = vadd.f32 0.0, %v1929
        %1931 = vmatmul.f32.gmra.mxu0 %v1910
        %v1932 = vpop.f32.mrf.mxu0
        %v1933 = vadd.f32 0.0, %v1932
        %1934 = vdwg.mxu0
        %v1935 = vld [vmem:[%s39] sm:$0xf]
        %vm1936 = vcmask 31744
        %v1938 = vsel %vm1936, %v1930, 0
        %v1941 = vsel %vm1936, %v1933, 0
        %vm1943 = vcmask 1043456
        %v1945 = vsel %vm1943, %v1935, 0
        %1947 = vmatpush.msra.mxu0 0.0
        %1948 = vmatpush.msra.mxu0 0.0
        %1949 = vmatpush.msra.mxu0 0.0
        %1950 = vmatpush.msra.mxu0 0.0
        %1951 = vmatpush.msra.mxu0 0.0
        %1952 = vmatpush.msra.mxu0 0.0
        %1953 = vmatpush.msra.mxu0 0.0
        %1954 = vmatpush.msra.mxu0 0.0
        %1955 = vmatpush.msra.mxu0 0.0
        %1956 = vmatpush.msra.mxu0 0.0
        %1957 = vmatpush.msra.mxu0 0.0
        %1958 = vmatpush.msra.mxu0 0.0
        %1959 = vmatpush.msra.mxu0 0.0
        %1960 = vmatpush.msra.mxu0 0.0
        %1961 = vmatpush.msra.mxu0 0.0
        %1962 = vmatpush.msra.mxu0 %v1945
        %1963 = vmatmul.f32.gmra.mxu0 %v1938
        %v1964 = vpop.f32.mrf.mxu0
        %v1965 = vadd.f32 0.0, %v1964
        %1966 = vmatmul.f32.gmra.mxu0 %v1941
        %v1967 = vpop.f32.mrf.mxu0
        %v1968 = vadd.f32 0.0, %v1967
        %1969 = vdwg.mxu0
        %v1970 = vsub.f32 %v1900, %v1965
        %v1971 = vsub.f32 %v1901, %v1968
        %v1972 = vmul.f32 %v1970, %v1970
        %v1973 = vmul.f32 %v1971, %v1971
        %v1975 = vsel %vm1249, %v1972, 0
        %v1978 = vsel %vm1249, %v1973, 0
        %1980 = vmatpush.msra.mxu0 0.0
        %1981 = vmatpush.msra.mxu0 0.0
        %1982 = vmatpush.msra.mxu0 0.0
        %1983 = vmatpush.msra.mxu0 0.0
        %1984 = vmatpush.msra.mxu0 0.0
        %1985 = vmatpush.msra.mxu0 0.0
        %1986 = vmatpush.msra.mxu0 0.0
        %1987 = vmatpush.msra.mxu0 0.0
        %1988 = vmatpush.msra.mxu0 0.0
        %1989 = vmatpush.msra.mxu0 0.0
        %1990 = vmatpush.msra.mxu0 0.0
        %1991 = vmatpush.msra.mxu0 0.0
        %1992 = vmatpush.msra.mxu0 %v1905
        %1993 = vmatpush.msra.mxu0 %v1904
        %1994 = vmatpush.msra.mxu0 %v1903
        %1995 = vmatpush.msra.mxu0 %v1902
        %1996 = vmatmul.f32.gmra.mxu0 %v1975
        %v1997 = vpop.f32.mrf.mxu0
        %v1998 = vadd.f32 1e-05, %v1997
        %1999 = vmatmul.f32.gmra.mxu0 %v1978
        %v2000 = vpop.f32.mrf.mxu0
        %v2001 = vadd.f32 1e-05, %v2000
        %2002 = vdwg.mxu0
        %v2003 = vrsqrt.pop %v1998
        %v2004 = vmul.f32 %v2003, %v1998
        %v2005 = vmul.f32 %v2004, %v2003
        %v2006 = vmul.f32 0.5, %v2005
        %v2007 = vsub.f32 1.5, %v2006
        %v2008 = vmul.f32 %v2003, %v2007
        %vm2009 = vweird.f32 %v1998
        %vm2010 = vweird.f32 %v2003
        %vm2011 = vmor %vm2009, %vm2010
        %v2012 = vsel %vm2011, %v2003, %v2008
        %v2013 = vrsqrt.pop %v2001
        %v2014 = vmul.f32 %v2013, %v2001
        %v2015 = vmul.f32 %v2014, %v2013
        %v2016 = vmul.f32 0.5, %v2015
        %v2017 = vsub.f32 1.5, %v2016
        %v2018 = vmul.f32 %v2013, %v2017
        %vm2019 = vweird.f32 %v2001
        %vm2020 = vweird.f32 %v2013
        %vm2021 = vmor %vm2019, %vm2020
        %v2022 = vsel %vm2021, %v2013, %v2018
        %v2024 = vsel %vm1936, %v2012, 0
        %v2027 = vsel %vm1936, %v2022, 0
        %2029 = vmatpush.msra.mxu0 0.0
        %2030 = vmatpush.msra.mxu0 0.0
        %2031 = vmatpush.msra.mxu0 0.0
        %2032 = vmatpush.msra.mxu0 0.0
        %2033 = vmatpush.msra.mxu0 0.0
        %2034 = vmatpush.msra.mxu0 0.0
        %2035 = vmatpush.msra.mxu0 0.0
        %2036 = vmatpush.msra.mxu0 0.0
        %2037 = vmatpush.msra.mxu0 0.0
        %2038 = vmatpush.msra.mxu0 0.0
        %2039 = vmatpush.msra.mxu0 0.0
        %2040 = vmatpush.msra.mxu0 0.0
        %2041 = vmatpush.msra.mxu0 0.0
        %2042 = vmatpush.msra.mxu0 0.0
        %2043 = vmatpush.msra.mxu0 0.0
        %2044 = vmatpush.msra.mxu0 %v1945
        %2045 = vmatmul.f32.gmra.mxu0 %v2024
        %v2046 = vpop.f32.mrf.mxu0
        %v2047 = vadd.f32 0.0, %v2046
        %2048 = vmatmul.f32.gmra.mxu0 %v2027
        %v2049 = vpop.f32.mrf.mxu0
        %v2050 = vadd.f32 0.0, %v2049
        %2051 = vdwg.mxu0
        %v2052 = vmul.f32 %v1970, %v2047
        %v2053 = vmul.f32 %v1971, %v2050
        %v2054 = vld [vmem:[%s33] sm:$0x1]
        %v2056 = vperm.slane %v2054, 0
        %v2058 = vmul.f32 %v2052, %v2056
        %v2059 = vmul.f32 %v2053, %v2056
        %v2060 = vld [vmem:[%s35] sm:$0x1]
        %v2062 = vperm.slane %v2060, 0
        %v2064 = vadd.f32 %v2058, %v2062
        %v2065 = vadd.f32 %v2059, %v2062
        %2068 = vrot.lane.b32.xlu0 %v2064, 124
        %v2069 = vpop.permute.xlu0 %2068
        %2070 = vrot.lane.b32.xlu0 %v2065, 124
        %v2071 = vpop.permute.xlu0 %2070
        %2074 = vrot.lane.b32.xlu0 %v2064, 120
        %v2075 = vpop.permute.xlu0 %2074
        %2076 = vrot.lane.b32.xlu0 %v2065, 120
        %v2077 = vpop.permute.xlu0 %2076
        %2080 = vrot.lane.b32.xlu0 %v2064, 116
        %v2081 = vpop.permute.xlu0 %2080
        %2082 = vrot.lane.b32.xlu0 %v2065, 116
        %v2083 = vpop.permute.xlu0 %2082
        %2086 = vrot.lane.b32.xlu0 %v2064, 112
        %v2087 = vpop.permute.xlu0 %2086
        %2088 = vrot.lane.b32.xlu0 %v2065, 112
        %v2089 = vpop.permute.xlu0 %2088
        %2092 = vrot.lane.b32.xlu0 %v2064, 108
        %v2093 = vpop.permute.xlu0 %2092
        %2094 = vrot.lane.b32.xlu0 %v2065, 108
        %v2095 = vpop.permute.xlu0 %2094
        %2098 = vrot.lane.b32.xlu0 %v2064, 104
        %v2099 = vpop.permute.xlu0 %2098
        %2100 = vrot.lane.b32.xlu0 %v2065, 104
        %v2101 = vpop.permute.xlu0 %2100
        %2104 = vrot.lane.b32.xlu0 %v2064, 100
        %v2105 = vpop.permute.xlu0 %2104
        %2106 = vrot.lane.b32.xlu0 %v2065, 100
        %v2107 = vpop.permute.xlu0 %2106
        %v2110 = vld [vmem:[%s41] sm:$0xff]
        %v2111 = vld [vmem:[%s41 + $0x8] sm:$0xff]
        %2112 = vmatpush.msra.mxu0 %v2107
        %2113 = vmatpush.msra.mxu0 %v2105
        %2114 = vmatpush.msra.mxu0 %v2101
        %2115 = vmatpush.msra.mxu0 %v2099
        %2116 = vmatpush.msra.mxu0 %v2095
        %2117 = vmatpush.msra.mxu0 %v2093
        %2118 = vmatpush.msra.mxu0 %v2089
        %2119 = vmatpush.msra.mxu0 %v2087
        %2120 = vmatpush.msra.mxu0 %v2083
        %2121 = vmatpush.msra.mxu0 %v2081
        %2122 = vmatpush.msra.mxu0 %v2077
        %2123 = vmatpush.msra.mxu0 %v2075
        %2124 = vmatpush.msra.mxu0 %v2071
        %2125 = vmatpush.msra.mxu0 %v2069
        %2126 = vmatpush.msra.mxu0 %v2065
        %2127 = vmatpush.msra.mxu0 %v2064
        %2128 = vmatmul.f32.gmra.mxu0 %v2110
        %v2129 = vpop.f32.mrf.mxu0
        %v2130 = vadd.f32 0.0, %v2129
        %2131 = vmatmul.f32.gmra.mxu0 %v2111
        %v2132 = vpop.f32.mrf.mxu0
        %v2133 = vadd.f32 0.0, %v2132
        %2134 = vdwg.mxu0
        %v2135 = vld [vmem:[%s43] sm:$0xff]
        %v2136 = vld [vmem:[%s43 + $0x8] sm:$0xff]
        %v2137 = vld [vmem:[%s43 + $0x10] sm:$0xff]
        %v2138 = vld [vmem:[%s43 + $0x18] sm:$0xff]
        %v2139 = vsel %vm1249, %v2064, 0
        %v2141 = vsel %vm1249, %v2065, 0
        %2143 = vmatpush.msra.mxu0 0.0
        %2144 = vmatpush.msra.mxu0 0.0
        %2145 = vmatpush.msra.mxu0 0.0
        %2146 = vmatpush.msra.mxu0 0.0
        %2147 = vmatpush.msra.mxu0 0.0
        %2148 = vmatpush.msra.mxu0 0.0
        %2149 = vmatpush.msra.mxu0 0.0
        %2150 = vmatpush.msra.mxu0 0.0
        %2151 = vmatpush.msra.mxu0 0.0
        %2152 = vmatpush.msra.mxu0 0.0
        %2153 = vmatpush.msra.mxu0 0.0
        %2154 = vmatpush.msra.mxu0 0.0
        %2155 = vmatpush.msra.mxu0 %v2138
        %2156 = vmatpush.msra.mxu0 %v2137
        %2157 = vmatpush.msra.mxu0 %v2136
        %2158 = vmatpush.msra.mxu0 %v2135
        %2159 = vmatmul.f32.gmra.mxu0 %v2139
        %v2160 = vpop.f32.mrf.mxu0
        %v2161 = vadd.f32 0.0, %v2160
        %2162 = vmatmul.f32.gmra.mxu0 %v2141
        %v2163 = vpop.f32.mrf.mxu0
        %v2164 = vadd.f32 0.0, %v2163
        %2165 = vdwg.mxu0
        %v2166 = vld [vmem:[%s45] sm:$0xf]
        %v2167 = vld [vmem:[%s47] sm:$0xf]
        %2168 = vxpose.xlu0.b32.start [1/16] %v2130, 128
        %2169 = vxpose.xlu0.b32.cont [2/16] %v2133, 128
        %2170 = vxpose.xlu0.b32.cont [3/16] 0.0, 128
        %2171 = vxpose.xlu0.b32.cont [4/16] 0.0, 128
        %2172 = vxpose.xlu0.b32.cont [5/16] 0.0, 128
        %2173 = vxpose.xlu0.b32.cont [6/16] 0.0, 128
        %2174 = vxpose.xlu0.b32.cont [7/16] 0.0, 128
        %2175 = vxpose.xlu0.b32.cont [8/16] 0.0, 128
        %2176 = vxpose.xlu0.b32.cont [9/16] 0.0, 128
        %2177 = vxpose.xlu0.b32.cont [10/16] 0.0, 128
        %2178 = vxpose.xlu0.b32.cont [11/16] 0.0, 128
        %2179 = vxpose.xlu0.b32.cont [12/16] 0.0, 128
        %2180 = vxpose.xlu0.b32.cont [13/16] 0.0, 128
        %2181 = vxpose.xlu0.b32.cont [14/16] 0.0, 128
        %2182 = vxpose.xlu0.b32.cont [15/16] 0.0, 128
        %2183 = vxpose.xlu0.b32.end [16/16] 0.0, 128
        %v2184 = vpop.trf.xlu0
        %v2185 = vpop.trf.xlu0
        %v2186 = vpop.trf.xlu0
        %v2187 = vpop.trf.xlu0
        %v2188 = vpop.trf.xlu0
        %v2189 = vpop.trf.xlu0
        %v2190 = vpop.trf.xlu0
        %v2191 = vpop.trf.xlu0
        %v2192 = vpop.trf.xlu0
        %v2193 = vpop.trf.xlu0
        %v2194 = vpop.trf.xlu0
        %v2195 = vpop.trf.xlu0
        %v2196 = vpop.trf.xlu0
        %v2197 = vpop.trf.xlu0
        %v2198 = vpop.trf.xlu0
        %v2199 = vpop.trf.xlu0
        %v2201 = vsel %vm1281, %v2184, 0
        %2203 = vmatpush.msra.mxu0 0.0
        %2204 = vmatpush.msra.mxu0 0.0
        %2205 = vmatpush.msra.mxu0 0.0
        %2206 = vmatpush.msra.mxu0 0.0
        %2207 = vmatpush.msra.mxu0 0.0
        %2208 = vmatpush.msra.mxu0 0.0
        %2209 = vmatpush.msra.mxu0 0.0
        %2210 = vmatpush.msra.mxu0 0.0
        %2211 = vmatpush.msra.mxu0 0.0
        %2212 = vmatpush.msra.mxu0 0.0
        %2213 = vmatpush.msra.mxu0 0.0
        %2214 = vmatpush.msra.mxu0 0.0
        %2215 = vmatpush.msra.mxu0 0.0
        %2216 = vmatpush.msra.mxu0 0.0
        %2217 = vmatpush.msra.mxu0 %v2164
        %2218 = vmatpush.msra.mxu0 %v2161
        %2219 = vmatmul.f32.gmra.mxu0 %v2201
        %v2220 = vpop.f32.mrf.mxu0
        %v2221 = vadd.f32 %v2167, %v2220
        %2222 = vdwg.mxu0
        %v2223 = vsub.f32 0.0, %v2221
        %v2224 = vmul.f32 %v2223, 1.442695
        %v2225 = vpow.pop %v2224
        %v2226 = vadd.f32 %v2225, 1.0
        %v2227 = vrcp.pop %v2226
        %v2228 = vmul.f32 %v2226, %v2227
        %v2229 = vsub.f32 1.0, %v2228
        %v2230 = vmul.f32 %v2227, %v2229
        %v2231 = vadd.f32 %v2227, %v2230
        %vm2232 = vweird.f32 %v2226
        %vm2233 = vweird.f32 %v2227
        %vm2234 = vmor %vm2232, %vm2233
        %v2235 = vsel %vm2234, %v2227, %v2231
        %v2236 = vand.u32 2147483647, %v2226
        %vm2237 = vcmp.eq.f32.partialorder %v2236, 8.507059e+37
        %v2238 = vand.u32 %v2226, 2147483648
        %v2239 = vor.u32 1.1754944e-38, %v2238
        %v2240 = vsel %vm2237, %v2239, %v2235
        %v2241 = vmul.f32 1.0, %v2240
        %v2243 = vsel %vm1936, %v2166, 0
        %v2246 = vsel %vm1943, %v2241, 0
        %2248 = vmatpush.msra.mxu0 0.0
        %2249 = vmatpush.msra.mxu0 0.0
        %2250 = vmatpush.msra.mxu0 0.0
        %2251 = vmatpush.msra.mxu0 0.0
        %2252 = vmatpush.msra.mxu0 0.0
        %2253 = vmatpush.msra.mxu0 0.0
        %2254 = vmatpush.msra.mxu0 0.0
        %2255 = vmatpush.msra.mxu0 0.0
        %2256 = vmatpush.msra.mxu0 0.0
        %2257 = vmatpush.msra.mxu0 0.0
        %2258 = vmatpush.msra.mxu0 0.0
        %2259 = vmatpush.msra.mxu0 0.0
        %2260 = vmatpush.msra.mxu0 0.0
        %2261 = vmatpush.msra.mxu0 0.0
        %2262 = vmatpush.msra.mxu0 0.0
        %2263 = vmatpush.msra.mxu0 %v2246
        %2264 = vmatmul.f32.gmra.mxu0 %v2243
        %v2265 = vpop.f32.mrf.mxu0
        %v2266 = vadd.f32 0.0, %v2265
        %2267 = vdwg.mxu0
        %vm2268 = vcmask 27648
        %v2269 = vsel %vm2268, %v2266, -inf
        %v2270 = vrot.slane %v2269, 4
        %v2271 = vmax.f32 %v2269, %v2270
        %v2272 = vrot.slane %v2271, 2
        %v2273 = vmax.f32 %v2271, %v2272
        %v2274 = vrot.slane %v2273, 1
        %v2275 = vmax.f32 %v2273, %v2274
        %v2276 = vsub.f32 %v2266, %v2275
        %v2277 = vmul.f32 %v2276, 1.442695
        %v2278 = vpow.pop %v2277
        %v2279 = vsel %vm2268, %v2278, 0.0
        %v2280 = vrot.slane %v2279, 4
        %v2281 = vadd.f32 %v2279, %v2280
        %v2282 = vrot.slane %v2281, 2
        %v2283 = vadd.f32 %v2281, %v2282
        %v2284 = vrot.slane %v2283, 1
        %v2285 = vadd.f32 %v2283, %v2284
        %v2286 = vrcp.pop %v2285
        %v2287 = vmul.f32 %v2285, %v2286
        %v2288 = vsub.f32 1.0, %v2287
        %v2289 = vmul.f32 %v2286, %v2288
        %v2290 = vadd.f32 %v2286, %v2289
        %vm2291 = vweird.f32 %v2285
        %vm2292 = vweird.f32 %v2286
        %vm2293 = vmor %vm2291, %vm2292
        %v2294 = vsel %vm2293, %v2286, %v2290
        %v2295 = vand.u32 2147483647, %v2285
        %vm2296 = vcmp.eq.f32.partialorder %v2295, 8.507059e+37
        %v2297 = vand.u32 %v2285, 2147483648
        %v2298 = vor.u32 1.1754944e-38, %v2297
        %v2299 = vsel %vm2296, %v2298, %v2294
        %v2300 = vmul.f32 %v2278, %v2299
        %v2301 = vld [vmem:[%s55] sm:$0xff]
        %v2302 = vld [vmem:[%s55 + $0x8] sm:$0xff]
        %v2303 = vld [vmem:[%s55 + $0x10] sm:$0xff]
        %v2304 = vld [vmem:[%s55 + $0x18] sm:$0xff]
        %v2306 = vsel %vm1936, %v2301, 0
        %v2309 = vsel %vm1936, %v2302, 0
        %v2312 = vsel %vm1936, %v2303, 0
        %v2315 = vsel %vm1936, %v2304, 0
        %v2318 = vsel %vm1943, %v2300, 0
        %2320 = vmatpush.msra.mxu0 0.0
        %2321 = vmatpush.msra.mxu0 0.0
        %2322 = vmatpush.msra.mxu0 0.0
        %2323 = vmatpush.msra.mxu0 0.0
        %2324 = vmatpush.msra.mxu0 0.0
        %2325 = vmatpush.msra.mxu0 0.0
        %2326 = vmatpush.msra.mxu0 0.0
        %2327 = vmatpush.msra.mxu0 0.0
        %2328 = vmatpush.msra.mxu0 0.0
        %2329 = vmatpush.msra.mxu0 0.0
        %2330 = vmatpush.msra.mxu0 0.0
        %2331 = vmatpush.msra.mxu0 0.0
        %2332 = vmatpush.msra.mxu0 0.0
        %2333 = vmatpush.msra.mxu0 0.0
        %2334 = vmatpush.msra.mxu0 0.0
        %2335 = vmatpush.msra.mxu0 %v2318
        %2336 = vmatmul.f32.gmra.mxu0 %v2306
        %v2337 = vpop.f32.mrf.mxu0
        %v2338 = vadd.f32 0.0, %v2337
        %2339 = vmatmul.f32.gmra.mxu0 %v2309
        %v2340 = vpop.f32.mrf.mxu0
        %v2341 = vadd.f32 0.0, %v2340
        %2342 = vmatmul.f32.gmra.mxu0 %v2312
        %v2343 = vpop.f32.mrf.mxu0
        %v2344 = vadd.f32 0.0, %v2343
        %2345 = vmatmul.f32.gmra.mxu0 %v2315
        %v2346 = vpop.f32.mrf.mxu0
        %v2347 = vadd.f32 0.0, %v2346
        %2348 = vdwg.mxu0
        %v2349 = vld [vmem:[%s49] sm:$0x1]
        %v2351 = vperm.slane %v2349, 0
        %v2353 = vmul.f32 %v2338, %v2351
        %v2354 = vmul.f32 %v2341, %v2351
        %v2355 = vmul.f32 %v2344, %v2351
        %v2356 = vmul.f32 %v2347, %v2351
        %v2357 = vsel %vm1936, %v2353, 0.0
        %2358 = vadd.xlane.f32.xlu0 %v2357
        %v2359 = vpop.xlane.xlu0 %2358
        %v2360 = vsel %vm1936, %v2354, 0.0
        %2361 = vadd.xlane.f32.xlu0 %v2360
        %v2362 = vpop.xlane.xlu0 %2361
        %v2363 = vsel %vm1936, %v2355, 0.0
        %2364 = vadd.xlane.f32.xlu0 %v2363
        %v2365 = vpop.xlane.xlu0 %2364
        %v2366 = vsel %vm1936, %v2356, 0.0
        %2367 = vadd.xlane.f32.xlu0 %v2366
        %v2368 = vpop.xlane.xlu0 %2367
        %v2369 = vld [vmem:[%s51] sm:$0xff]
        %v2370 = vld [vmem:[%s51 + $0x8] sm:$0xff]
        %v2371 = vld [vmem:[%s51 + $0x10] sm:$0xff]
        %v2372 = vld [vmem:[%s51 + $0x18] sm:$0xff]
        %v2373 = vmul.f32 %v2369, %v2359
        %v2374 = vmul.f32 %v2370, %v2362
        %v2375 = vmul.f32 %v2371, %v2365
        %v2376 = vmul.f32 %v2372, %v2368
        %2377 = vmatpush.msra.mxu0 0.0
        %2378 = vmatpush.msra.mxu0 0.0
        %2379 = vmatpush.msra.mxu0 0.0
        %2380 = vmatpush.msra.mxu0 0.0
        %2381 = vmatpush.msra.mxu0 0.0
        %2382 = vmatpush.msra.mxu0 0.0
        %2383 = vmatpush.msra.mxu0 0.0
        %2384 = vmatpush.msra.mxu0 0.0
        %2385 = vmatpush.msra.mxu0 0.0
        %2386 = vmatpush.msra.mxu0 0.0
        %2387 = vmatpush.msra.mxu0 0.0
        %2388 = vmatpush.msra.mxu0 0.0
        %2389 = vmatpush.msra.mxu0 %v2376
        %2390 = vmatpush.msra.mxu0 %v2375
        %2391 = vmatpush.msra.mxu0 %v2374
        %2392 = vmatpush.msra.mxu0 %v2373
        %2393 = vmatmul.f32.gmra.mxu0 %v2139
        %v2394 = vpop.f32.mrf.mxu0
        %v2395 = vadd.f32 0.0, %v2394
        %2396 = vmatmul.f32.gmra.mxu0 %v2141
        %v2397 = vpop.f32.mrf.mxu0
        %v2398 = vadd.f32 0.0, %v2397
        %2399 = vdwg.mxu0
        %v2400 = vld [vmem:[%s53] sm:$0xff]
        %v2401 = vld [vmem:[%s53 + $0x8] sm:$0xff]
        %v2402 = vld [vmem:[%s53 + $0x10] sm:$0xff]
        %v2403 = vld [vmem:[%s53 + $0x18] sm:$0xff]
        %2404 = vmatpush.msra.mxu0 0.0
        %2405 = vmatpush.msra.mxu0 0.0
        %2406 = vmatpush.msra.mxu0 0.0
        %2407 = vmatpush.msra.mxu0 0.0
        %2408 = vmatpush.msra.mxu0 0.0
        %2409 = vmatpush.msra.mxu0 0.0
        %2410 = vmatpush.msra.mxu0 0.0
        %2411 = vmatpush.msra.mxu0 0.0
        %2412 = vmatpush.msra.mxu0 0.0
        %2413 = vmatpush.msra.mxu0 0.0
        %2414 = vmatpush.msra.mxu0 0.0
        %2415 = vmatpush.msra.mxu0 0.0
        %2416 = vmatpush.msra.mxu0 %v2403
        %2417 = vmatpush.msra.mxu0 %v2402
        %2418 = vmatpush.msra.mxu0 %v2401
        %2419 = vmatpush.msra.mxu0 %v2400
        %2420 = vmatmul.f32.gmra.mxu0 %v2139
        %v2421 = vpop.f32.mrf.mxu0
        %v2422 = vadd.f32 0.0, %v2421
        %2423 = vmatmul.f32.gmra.mxu0 %v2141
        %v2424 = vpop.f32.mrf.mxu0
        %v2425 = vadd.f32 0.0, %v2424
        %2426 = vdwg.mxu0
        %v2428 = vsel %vm1936, %v2422, 0
        %v2431 = vsel %vm1936, %v2425, 0
        %2433 = vmatpush.msra.mxu0 0.0
        %2434 = vmatpush.msra.mxu0 0.0
        %2435 = vmatpush.msra.mxu0 0.0
        %2436 = vmatpush.msra.mxu0 0.0
        %2437 = vmatpush.msra.mxu0 0.0
        %2438 = vmatpush.msra.mxu0 0.0
        %2439 = vmatpush.msra.mxu0 0.0
        %2440 = vmatpush.msra.mxu0 0.0
        %2441 = vmatpush.msra.mxu0 0.0
        %2442 = vmatpush.msra.mxu0 0.0
        %2443 = vmatpush.msra.mxu0 0.0
        %2444 = vmatpush.msra.mxu0 0.0
        %2445 = vmatpush.msra.mxu0 0.0
        %2446 = vmatpush.msra.mxu0 0.0
        %2447 = vmatpush.msra.mxu0 0.0
        %2448 = vmatpush.msra.mxu0 %v2318
        %2449 = vmatmul.f32.gmra.mxu0 %v2428
        %v2450 = vpop.f32.mrf.mxu0
        %v2451 = vadd.f32 0.0, %v2450
        %2452 = vmatmul.f32.gmra.mxu0 %v2431
        %v2453 = vpop.f32.mrf.mxu0
        %v2454 = vadd.f32 0.0, %v2453
        %2455 = vdwg.mxu0
        %v2456 = vld [vmem:[%s57] sm:$0xff]
        %v2457 = vld [vmem:[%s57 + $0x8] sm:$0xff]
        %v2459 = vsel %vm1936, %v2451, 0
        %v2462 = vsel %vm1936, %v2454, 0
        %v2465 = vsel %vm1936, %v2395, 0
        %v2468 = vsel %vm1936, %v2398, 0
        %2470 = vmatpush.xpose.msra.mxu0 0.0
        %2471 = vmatpush.xpose.msra.mxu0 0.0
        %2472 = vmatpush.xpose.msra.mxu0 0.0
        %2473 = vmatpush.xpose.msra.mxu0 0.0
        %2474 = vmatpush.xpose.msra.mxu0 0.0
        %2475 = vmatpush.xpose.msra.mxu0 0.0
        %2476 = vmatpush.xpose.msra.mxu0 0.0
        %2477 = vmatpush.xpose.msra.mxu0 0.0
        %2478 = vmatpush.xpose.msra.mxu0 0.0
        %2479 = vmatpush.xpose.msra.mxu0 0.0
        %2480 = vmatpush.xpose.msra.mxu0 0.0
        %2481 = vmatpush.xpose.msra.mxu0 0.0
        %2482 = vmatpush.xpose.msra.mxu0 0.0
        %2483 = vmatpush.xpose.msra.mxu0 0.0
        %2484 = vmatpush.xpose.msra.mxu0 %v2468
        %2485 = vmatpush.xpose.msra.mxu0 %v2465
        %2486 = vmatmul.f32.gmra.mxu0 %v2459
        %v2487 = vpop.f32.mrf.mxu0
        %v2488 = vadd.f32 %v2456, %v2487
        %2489 = vmatmul.f32.gmra.mxu0 %v2462
        %v2490 = vpop.f32.mrf.mxu0
        %v2491 = vadd.f32 %v2457, %v2490
        %2492 = vdwg.mxu0
        %v2493 = vsub.f32 0.0, %v2488
        %v2494 = vsub.f32 0.0, %v2491
        %v2495 = vmul.f32 %v2493, 1.442695
        %v2496 = vpow.pop %v2495
        %v2497 = vmul.f32 %v2494, 1.442695
        %v2498 = vpow.pop %v2497
        %v2499 = vadd.f32 %v2496, 1.0
        %v2500 = vadd.f32 %v2498, 1.0
        %v2501 = vrcp.pop %v2499
        %v2502 = vmul.f32 %v2499, %v2501
        %v2503 = vsub.f32 1.0, %v2502
        %v2504 = vmul.f32 %v2501, %v2503
        %v2505 = vadd.f32 %v2501, %v2504
        %vm2506 = vweird.f32 %v2499
        %vm2507 = vweird.f32 %v2501
        %vm2508 = vmor %vm2506, %vm2507
        %v2509 = vsel %vm2508, %v2501, %v2505
        %v2510 = vand.u32 2147483647, %v2499
        %vm2511 = vcmp.eq.f32.partialorder %v2510, 8.507059e+37
        %v2512 = vand.u32 %v2499, 2147483648
        %v2513 = vor.u32 1.1754944e-38, %v2512
        %v2514 = vsel %vm2511, %v2513, %v2509
        %v2515 = vmul.f32 1.0, %v2514
        %v2516 = vrcp.pop %v2500
        %v2517 = vmul.f32 %v2500, %v2516
        %v2518 = vsub.f32 1.0, %v2517
        %v2519 = vmul.f32 %v2516, %v2518
        %v2520 = vadd.f32 %v2516, %v2519
        %vm2521 = vweird.f32 %v2500
        %vm2522 = vweird.f32 %v2516
        %vm2523 = vmor %vm2521, %vm2522
        %v2524 = vsel %vm2523, %v2516, %v2520
        %v2525 = vand.u32 2147483647, %v2500
        %vm2526 = vcmp.eq.f32.partialorder %v2525, 8.507059e+37
        %v2527 = vand.u32 %v2500, 2147483648
        %v2528 = vor.u32 1.1754944e-38, %v2527
        %v2529 = vsel %vm2526, %v2528, %v2524
        %v2530 = vmul.f32 1.0, %v2529
        %v2531 = vld [vmem:[%s59] sm:$0xff]
        %v2532 = vld [vmem:[%s59 + $0x8] sm:$0xff]
        %v2534 = vsel %vm1281, %v2515, 0
        %v2537 = vsel %vm1281, %v2530, 0
        %2539 = vmatpush.msra.mxu0 0.0
        %2540 = vmatpush.msra.mxu0 0.0
        %2541 = vmatpush.msra.mxu0 0.0
        %2542 = vmatpush.msra.mxu0 0.0
        %2543 = vmatpush.msra.mxu0 0.0
        %2544 = vmatpush.msra.mxu0 0.0
        %2545 = vmatpush.msra.mxu0 0.0
        %2546 = vmatpush.msra.mxu0 0.0
        %2547 = vmatpush.msra.mxu0 0.0
        %2548 = vmatpush.msra.mxu0 0.0
        %2549 = vmatpush.msra.mxu0 0.0
        %2550 = vmatpush.msra.mxu0 0.0
        %2551 = vmatpush.msra.mxu0 0.0
        %2552 = vmatpush.msra.mxu0 0.0
        %2553 = vmatpush.msra.mxu0 %v2532
        %2554 = vmatpush.msra.mxu0 %v2531
        %2555 = vmatmul.f32.gmra.mxu0 %v2534
        %v2556 = vpop.f32.mrf.mxu0
        %v2557 = vadd.f32 0.0, %v2556
        %2558 = vmatmul.f32.gmra.mxu0 %v2537
        %v2559 = vpop.f32.mrf.mxu0
        %v2560 = vadd.f32 0.0, %v2559
        %2561 = vdwg.mxu0
        %v2562 = vsel %vm1281, %v2557, -inf
        %2563 = vmax.xlane.f32.xlu0 %v2562
        %v2564 = vpop.xlane.xlu0 %2563
        %v2565 = vsel %vm1281, %v2560, -inf
        %2566 = vmax.xlane.f32.xlu0 %v2565
        %v2567 = vpop.xlane.xlu0 %2566
        %v2568 = vsub.f32 %v2557, %v2564
        %v2569 = vsub.f32 %v2560, %v2567
        %v2570 = vmul.f32 %v2568, 1.442695
        %v2571 = vpow.pop %v2570
        %v2572 = vmul.f32 %v2569, 1.442695
        %v2573 = vpow.pop %v2572
        %v2574 = vsel %vm1281, %v2571, 0.0
        %2575 = vadd.xlane.f32.xlu0 %v2574
        %v2576 = vpop.xlane.xlu0 %2575
        %v2577 = vsel %vm1281, %v2573, 0.0
        %2578 = vadd.xlane.f32.xlu0 %v2577
        %v2579 = vpop.xlane.xlu0 %2578
        %v2580 = vrcp.pop %v2576
        %v2581 = vmul.f32 %v2576, %v2580
        %v2582 = vsub.f32 1.0, %v2581
        %v2583 = vmul.f32 %v2580, %v2582
        %v2584 = vadd.f32 %v2580, %v2583
        %vm2585 = vweird.f32 %v2576
        %vm2586 = vweird.f32 %v2580
        %vm2587 = vmor %vm2585, %vm2586
        %v2588 = vsel %vm2587, %v2580, %v2584
        %v2589 = vand.u32 2147483647, %v2576
        %vm2590 = vcmp.eq.f32.partialorder %v2589, 8.507059e+37
        %v2591 = vand.u32 %v2576, 2147483648
        %v2592 = vor.u32 1.1754944e-38, %v2591
        %v2593 = vsel %vm2590, %v2592, %v2588
        %v2594 = vmul.f32 %v2571, %v2593
        %v2595 = vrcp.pop %v2579
        %v2596 = vmul.f32 %v2579, %v2595
        %v2597 = vsub.f32 1.0, %v2596
        %v2598 = vmul.f32 %v2595, %v2597
        %v2599 = vadd.f32 %v2595, %v2598
        %vm2600 = vweird.f32 %v2579
        %vm2601 = vweird.f32 %v2595
        %vm2602 = vmor %vm2600, %vm2601
        %v2603 = vsel %vm2602, %v2595, %v2599
        %v2604 = vand.u32 2147483647, %v2579
        %vm2605 = vcmp.eq.f32.partialorder %v2604, 8.507059e+37
        %v2606 = vand.u32 %v2579, 2147483648
        %v2607 = vor.u32 1.1754944e-38, %v2606
        %v2608 = vsel %vm2605, %v2607, %v2603
        %v2609 = vmul.f32 %v2573, %v2608
        %v2610 = vld [vmem:[%s63] sm:$0xff]
        %v2611 = vld [vmem:[%s63 + $0x8] sm:$0xff]
        %v2612 = vld [vmem:[%s63 + $0x10] sm:$0xff]
        %v2613 = vld [vmem:[%s63 + $0x18] sm:$0xff]
        %2614 = vmatpush.msra.mxu0 0.0
        %2615 = vmatpush.msra.mxu0 0.0
        %2616 = vmatpush.msra.mxu0 0.0
        %2617 = vmatpush.msra.mxu0 0.0
        %2618 = vmatpush.msra.mxu0 0.0
        %2619 = vmatpush.msra.mxu0 0.0
        %2620 = vmatpush.msra.mxu0 0.0
        %2621 = vmatpush.msra.mxu0 0.0
        %2622 = vmatpush.msra.mxu0 0.0
        %2623 = vmatpush.msra.mxu0 0.0
        %2624 = vmatpush.msra.mxu0 0.0
        %2625 = vmatpush.msra.mxu0 0.0
        %2626 = vmatpush.msra.mxu0 %v2613
        %2627 = vmatpush.msra.mxu0 %v2612
        %2628 = vmatpush.msra.mxu0 %v2611
        %2629 = vmatpush.msra.mxu0 %v2610
        %2630 = vmatmul.f32.gmra.mxu0 %v2139
        %v2631 = vpop.f32.mrf.mxu0
        %v2632 = vadd.f32 0.0, %v2631
        %2633 = vmatmul.f32.gmra.mxu0 %v2141
        %v2634 = vpop.f32.mrf.mxu0
        %v2635 = vadd.f32 0.0, %v2634
        %2636 = vdwg.mxu0
        %2639 = vrot.lane.b32.xlu0 %v2632, 96
        %v2640 = vpop.permute.xlu0 %2639
        %2641 = vrot.lane.b32.xlu0 %v2635, 96
        %v2642 = vpop.permute.xlu0 %2641
        %2645 = vrot.lane.b32.xlu0 %v2632, 64
        %v2646 = vpop.permute.xlu0 %2645
        %2647 = vrot.lane.b32.xlu0 %v2635, 64
        %v2648 = vpop.permute.xlu0 %2647
        %v2651 = vld [vmem:[%s61] sm:$0xff]
        %v2652 = vld [vmem:[%s61 + $0x8] sm:$0xff]
        %2655 = vrot.lane.b32.xlu0 %v2594, 16
        %v2656 = vpop.permute.xlu0 %2655
        %2657 = vrot.lane.b32.xlu0 %v2609, 16
        %v2658 = vpop.permute.xlu0 %2657
        %2661 = vrot.lane.b32.xlu0 %v2594, 32
        %v2662 = vpop.permute.xlu0 %2661
        %2663 = vrot.lane.b32.xlu0 %v2609, 32
        %v2664 = vpop.permute.xlu0 %2663
        %v2667 = vsel %vm1281, %v2594, %v2656
        %v2668 = vsel %vm1281, %v2609, %v2658
        %v2669 = vsel %vm1249, %v2667, %v2662
        %v2670 = vsel %vm1249, %v2668, %v2664
        %v2671 = vmul.f32 %v2651, %v2669
        %v2672 = vmul.f32 %v2652, %v2670
        %v2674 = vsel %vm1799, %v2671, 0
        %v2677 = vsel %vm1799, %v2672, 0
        %2679 = vmatpush.msra.mxu0 0.0
        %2680 = vmatpush.msra.mxu0 0.0
        %2681 = vmatpush.msra.mxu0 0.0
        %2682 = vmatpush.msra.mxu0 0.0
        %2683 = vmatpush.msra.mxu0 0.0
        %2684 = vmatpush.msra.mxu0 0.0
        %2685 = vmatpush.msra.mxu0 0.0
        %2686 = vmatpush.msra.mxu0 0.0
        %2687 = vmatpush.msra.mxu0 0.0
        %2688 = vmatpush.msra.mxu0 0.0
        %2689 = vmatpush.msra.mxu0 %v2648
        %2690 = vmatpush.msra.mxu0 %v2646
        %2691 = vmatpush.msra.mxu0 %v2642
        %2692 = vmatpush.msra.mxu0 %v2640
        %2693 = vmatpush.msra.mxu0 %v2635
        %2694 = vmatpush.msra.mxu0 %v2632
        %2695 = vmatmul.f32.gmra.mxu0 %v2674
        %v2696 = vpop.f32.mrf.mxu0
        %v2697 = vadd.f32 0.0, %v2696
        %2698 = vmatmul.f32.gmra.mxu0 %v2677
        %v2699 = vpop.f32.mrf.mxu0
        %v2700 = vadd.f32 0.0, %v2699
        %2701 = vdwg.mxu0
        %v2702 = vmax.f32 %v2697, 0.0
        %v2703 = vmax.f32 %v2700, 0.0
        %v2704 = vld [vmem:[%s65] sm:$0xff]
        %v2705 = vld [vmem:[%s65 + $0x8] sm:$0xff]
        %v2706 = vld [vmem:[%s65 + $0x10] sm:$0xff]
        %v2707 = vld [vmem:[%s65 + $0x18] sm:$0xff]
        %v2708 = vld [vmem:[%s67] sm:$0xff]
        %v2709 = vld [vmem:[%s67 + $0x8] sm:$0xff]
        %v2710 = vld [vmem:[%s67 + $0x10] sm:$0xff]
        %v2711 = vld [vmem:[%s67 + $0x18] sm:$0xff]
        %2712 = vmatpush.msra.mxu0 0.0
        %2713 = vmatpush.msra.mxu0 0.0
        %2714 = vmatpush.msra.mxu0 0.0
        %2715 = vmatpush.msra.mxu0 0.0
        %2716 = vmatpush.msra.mxu0 0.0
        %2717 = vmatpush.msra.mxu0 0.0
        %2718 = vmatpush.msra.mxu0 0.0
        %2719 = vmatpush.msra.mxu0 0.0
        %2720 = vmatpush.msra.mxu0 0.0
        %2721 = vmatpush.msra.mxu0 0.0
        %2722 = vmatpush.msra.mxu0 0.0
        %2723 = vmatpush.msra.mxu0 0.0
        %2724 = vmatpush.msra.mxu0 %v2711
        %2725 = vmatpush.msra.mxu0 %v2710
        %2726 = vmatpush.msra.mxu0 %v2709
        %2727 = vmatpush.msra.mxu0 %v2708
        %2728 = vmatmul.f32.gmra.mxu0 %v2139
        %v2729 = vpop.f32.mrf.mxu0
        %v2730 = vadd.f32 0.0, %v2729
        %2731 = vmatmul.f32.gmra.mxu0 %v2141
        %v2732 = vpop.f32.mrf.mxu0
        %v2733 = vadd.f32 0.0, %v2732
        %2734 = vdwg.mxu0
        %v2736 = vsel %vm1249, %v2702, 0
        %v2739 = vsel %vm1249, %v2703, 0
        %2741 = vmatpush.msra.mxu0 0.0
        %2742 = vmatpush.msra.mxu0 0.0
        %2743 = vmatpush.msra.mxu0 0.0
        %2744 = vmatpush.msra.mxu0 0.0
        %2745 = vmatpush.msra.mxu0 0.0
        %2746 = vmatpush.msra.mxu0 0.0
        %2747 = vmatpush.msra.mxu0 0.0
        %2748 = vmatpush.msra.mxu0 0.0
        %2749 = vmatpush.msra.mxu0 0.0
        %2750 = vmatpush.msra.mxu0 0.0
        %2751 = vmatpush.msra.mxu0 0.0
        %2752 = vmatpush.msra.mxu0 0.0
        %2753 = vmatpush.msra.mxu0 %v2707
        %2754 = vmatpush.msra.mxu0 %v2706
        %2755 = vmatpush.msra.mxu0 %v2705
        %2756 = vmatpush.msra.mxu0 %v2704
        %2757 = vmatmul.f32.gmra.mxu0 %v2736
        %v2758 = vpop.f32.mrf.mxu0
        %v2759 = vadd.f32 %v2730, %v2758
        %2760 = vmatmul.f32.gmra.mxu0 %v2739
        %v2761 = vpop.f32.mrf.mxu0
        %v2762 = vadd.f32 %v2733, %v2761
        %2763 = vdwg.mxu0
        %v2764 = vld [vmem:[%s69] sm:$0x1]
        %v2766 = vperm.slane %v2764, 0
        %v2768 = vadd.f32 %v2759, %v2766
        %v2769 = vadd.f32 %v2762, %v2766
        %v2770 = vmax.f32 %v2768, 0.0
        %v2771 = vmax.f32 %v2769, 0.0
        %v2772 = vld [vmem:[%s75] sm:$0xff]
        %v2773 = vld [vmem:[%s75 + $0x8] sm:$0xff]
        %v2774 = vld [vmem:[%s75 + $0x10] sm:$0xff]
        %v2775 = vld [vmem:[%s75 + $0x18] sm:$0xff]
        %v2777 = vsel %vm1249, %v2770, 0
        %v2780 = vsel %vm1249, %v2771, 0
        %2782 = vmatpush.msra.mxu0 0.0
        %2783 = vmatpush.msra.mxu0 0.0
        %2784 = vmatpush.msra.mxu0 0.0
        %2785 = vmatpush.msra.mxu0 0.0
        %2786 = vmatpush.msra.mxu0 0.0
        %2787 = vmatpush.msra.mxu0 0.0
        %2788 = vmatpush.msra.mxu0 0.0
        %2789 = vmatpush.msra.mxu0 0.0
        %2790 = vmatpush.msra.mxu0 0.0
        %2791 = vmatpush.msra.mxu0 0.0
        %2792 = vmatpush.msra.mxu0 0.0
        %2793 = vmatpush.msra.mxu0 0.0
        %2794 = vmatpush.msra.mxu0 %v2775
        %2795 = vmatpush.msra.mxu0 %v2774
        %2796 = vmatpush.msra.mxu0 %v2773
        %2797 = vmatpush.msra.mxu0 %v2772
        %2798 = vmatmul.f32.gmra.mxu0 %v2777
        %v2799 = vpop.f32.mrf.mxu0
        %v2800 = vadd.f32 0.0, %v2799
        %2801 = vmatmul.f32.gmra.mxu0 %v2780
        %v2802 = vpop.f32.mrf.mxu0
        %v2803 = vadd.f32 0.0, %v2802
        %2804 = vdwg.mxu0
        %v2805 = vld [vmem:[%s77] sm:$0xf]
        %v2807 = vsel %vm1936, %v2800, 0
        %v2810 = vsel %vm1936, %v2803, 0
        %v2813 = vsel %vm1943, %v2805, 0
        %2815 = vmatpush.msra.mxu0 0.0
        %2816 = vmatpush.msra.mxu0 0.0
        %2817 = vmatpush.msra.mxu0 0.0
        %2818 = vmatpush.msra.mxu0 0.0
        %2819 = vmatpush.msra.mxu0 0.0
        %2820 = vmatpush.msra.mxu0 0.0
        %2821 = vmatpush.msra.mxu0 0.0
        %2822 = vmatpush.msra.mxu0 0.0
        %2823 = vmatpush.msra.mxu0 0.0
        %2824 = vmatpush.msra.mxu0 0.0
        %2825 = vmatpush.msra.mxu0 0.0
        %2826 = vmatpush.msra.mxu0 0.0
        %2827 = vmatpush.msra.mxu0 0.0
        %2828 = vmatpush.msra.mxu0 0.0
        %2829 = vmatpush.msra.mxu0 0.0
        %2830 = vmatpush.msra.mxu0 %v2813
        %2831 = vmatmul.f32.gmra.mxu0 %v2807
        %v2832 = vpop.f32.mrf.mxu0
        %v2833 = vadd.f32 0.0, %v2832
        %2834 = vmatmul.f32.gmra.mxu0 %v2810
        %v2835 = vpop.f32.mrf.mxu0
        %v2836 = vadd.f32 0.0, %v2835
        %2837 = vdwg.mxu0
        %v2838 = vsub.f32 %v2770, %v2833
        %v2839 = vsub.f32 %v2771, %v2836
        %v2840 = vmul.f32 %v2838, %v2838
        %v2841 = vmul.f32 %v2839, %v2839
        %v2843 = vsel %vm1249, %v2840, 0
        %v2846 = vsel %vm1249, %v2841, 0
        %2848 = vmatpush.msra.mxu0 0.0
        %2849 = vmatpush.msra.mxu0 0.0
        %2850 = vmatpush.msra.mxu0 0.0
        %2851 = vmatpush.msra.mxu0 0.0
        %2852 = vmatpush.msra.mxu0 0.0
        %2853 = vmatpush.msra.mxu0 0.0
        %2854 = vmatpush.msra.mxu0 0.0
        %2855 = vmatpush.msra.mxu0 0.0
        %2856 = vmatpush.msra.mxu0 0.0
        %2857 = vmatpush.msra.mxu0 0.0
        %2858 = vmatpush.msra.mxu0 0.0
        %2859 = vmatpush.msra.mxu0 0.0
        %2860 = vmatpush.msra.mxu0 %v2775
        %2861 = vmatpush.msra.mxu0 %v2774
        %2862 = vmatpush.msra.mxu0 %v2773
        %2863 = vmatpush.msra.mxu0 %v2772
        %2864 = vmatmul.f32.gmra.mxu0 %v2843
        %v2865 = vpop.f32.mrf.mxu0
        %v2866 = vadd.f32 1e-05, %v2865
        %2867 = vmatmul.f32.gmra.mxu0 %v2846
        %v2868 = vpop.f32.mrf.mxu0
        %v2869 = vadd.f32 1e-05, %v2868
        %2870 = vdwg.mxu0
        %v2871 = vrsqrt.pop %v2866
        %v2872 = vmul.f32 %v2871, %v2866
        %v2873 = vmul.f32 %v2872, %v2871
        %v2874 = vmul.f32 0.5, %v2873
        %v2875 = vsub.f32 1.5, %v2874
        %v2876 = vmul.f32 %v2871, %v2875
        %vm2877 = vweird.f32 %v2866
        %vm2878 = vweird.f32 %v2871
        %vm2879 = vmor %vm2877, %vm2878
        %v2880 = vsel %vm2879, %v2871, %v2876
        %v2881 = vrsqrt.pop %v2869
        %v2882 = vmul.f32 %v2881, %v2869
        %v2883 = vmul.f32 %v2882, %v2881
        %v2884 = vmul.f32 0.5, %v2883
        %v2885 = vsub.f32 1.5, %v2884
        %v2886 = vmul.f32 %v2881, %v2885
        %vm2887 = vweird.f32 %v2869
        %vm2888 = vweird.f32 %v2881
        %vm2889 = vmor %vm2887, %vm2888
        %v2890 = vsel %vm2889, %v2881, %v2886
        %v2892 = vsel %vm1936, %v2880, 0
        %v2895 = vsel %vm1936, %v2890, 0
        %2897 = vmatpush.msra.mxu0 0.0
        %2898 = vmatpush.msra.mxu0 0.0
        %2899 = vmatpush.msra.mxu0 0.0
        %2900 = vmatpush.msra.mxu0 0.0
        %2901 = vmatpush.msra.mxu0 0.0
        %2902 = vmatpush.msra.mxu0 0.0
        %2903 = vmatpush.msra.mxu0 0.0
        %2904 = vmatpush.msra.mxu0 0.0
        %2905 = vmatpush.msra.mxu0 0.0
        %2906 = vmatpush.msra.mxu0 0.0
        %2907 = vmatpush.msra.mxu0 0.0
        %2908 = vmatpush.msra.mxu0 0.0
        %2909 = vmatpush.msra.mxu0 0.0
        %2910 = vmatpush.msra.mxu0 0.0
        %2911 = vmatpush.msra.mxu0 0.0
        %2912 = vmatpush.msra.mxu0 %v2813
        %2913 = vmatmul.f32.gmra.mxu0 %v2892
        %v2914 = vpop.f32.mrf.mxu0
        %v2915 = vadd.f32 0.0, %v2914
        %2916 = vmatmul.f32.gmra.mxu0 %v2895
        %v2917 = vpop.f32.mrf.mxu0
        %v2918 = vadd.f32 0.0, %v2917
        %2919 = vdwg.mxu0
        %v2920 = vmul.f32 %v2838, %v2915
        %v2921 = vmul.f32 %v2839, %v2918
        %v2922 = vld [vmem:[%s71] sm:$0x1]
        %v2924 = vperm.slane %v2922, 0
        %v2926 = vmul.f32 %v2920, %v2924
        %v2927 = vmul.f32 %v2921, %v2924
        %v2928 = vld [vmem:[%s73] sm:$0x1]
        %v2930 = vperm.slane %v2928, 0
        %v2932 = vadd.f32 %v2926, %v2930
        %v2933 = vadd.f32 %v2927, %v2930
        %v2934 = vld [vmem:[%s79] sm:$0xf]
        %v2935 = vld [vmem:[%s81] sm:$0xf]
        %2937 = vset.pattern.permute.xlu0 0
        %2938 = vperm.xlu0 %2937, %v2935
        %v2939 = vpop.permute.xlu0 %2938
        %v2942 = vsel %vm1249, %v2934, 0
        %v2945 = vsel %vm1249, %v2932, 0
        %v2948 = vsel %vm1249, %v2933, 0
        %2950 = vmatpush.xpose.msra.mxu0 0.0
        %2951 = vmatpush.xpose.msra.mxu0 0.0
        %2952 = vmatpush.xpose.msra.mxu0 0.0
        %2953 = vmatpush.xpose.msra.mxu0 0.0
        %2954 = vmatpush.xpose.msra.mxu0 0.0
        %2955 = vmatpush.xpose.msra.mxu0 0.0
        %2956 = vmatpush.xpose.msra.mxu0 0.0
        %2957 = vmatpush.xpose.msra.mxu0 0.0
        %2958 = vmatpush.xpose.msra.mxu0 0.0
        %2959 = vmatpush.xpose.msra.mxu0 0.0
        %2960 = vmatpush.xpose.msra.mxu0 0.0
        %2961 = vmatpush.xpose.msra.mxu0 0.0
        %2962 = vmatpush.xpose.msra.mxu0 0.0
        %2963 = vmatpush.xpose.msra.mxu0 0.0
        %2964 = vmatpush.xpose.msra.mxu0 %v2948
        %2965 = vmatpush.xpose.msra.mxu0 %v2945
        %2966 = vmatmul.f32.gmra.mxu0 %v2942
        %v2967 = vpop.f32.mrf.mxu0
        %v2968 = vadd.f32 %v2939, %v2967
        %2969 = vdwg.mxu0
        %vm2970 = vcmask 125952
        %2971 = vst.msk [vmem:[%s1231] sm:$0xf] %vm2970, %v2968
        %s2972 = sand.u32 %s971, 1
        %s2973 = scalar_lea.sflag [#allocation3], %s2972
        %s2974 = sand.u32 %s971, 1
        %s2975 = smul.addr %s2974, 4
        %s2976 = scalar_lea.vmem [#allocation2], %s2975
        // Predicated region
        $region185: #{tpu_custom_call.1} parent=183 // pred_check
          %p2977 = pneg %p981
        $region186: #{tpu_custom_call.1} parent=183 // pred_check_branch
          %2979 = sbr.rel (%p2977) target = $region188
        $region187: #{tpu_custom_call.1} parent=183 // pred_region
          %2981 = vsyncadd %s2973, 0
          %s2982 = smul.addr %s97, 4
          %s2983 = scalar_lea.hbm %s83, %s2982
          %s2985 = sshll.u32 %s2976, 4
          %s2986 = int_to_ptr.vmem [resolvable:$true] %s2985
          %s2987 = sshll.u32 %s2983, 4
          %s2988 = int_to_ptr.hbm [resolvable:$true] %s2987
          %2990 = dma.vmem_to_hbm [thread:$0]  %s2986, 64, %s2988, %s2973
        $region188: #{tpu_custom_call.1} parent=183 // pred_fallthru
          _
      $region184: #{tpu_custom_call.1} parent=5 // pred_fallthru
        _
      %p2991 = scmp.le.s32.totalorder 2, %s92
      // Predicated region
      $region189: #{tpu_custom_call.1} parent=5 // pred_check
        %p2992 = pneg %p2991
      $region190: #{tpu_custom_call.1} parent=5 // pred_check_branch
        %2994 = sbr.rel (%p2992) target = $region192
      $region191: #{tpu_custom_call.1} parent=5 // pred_region
        %s2995 = ssub.s32 %s92, 2
        // Predicated region
        $region193: #{tpu_custom_call.1} parent=191 // pred_check
          %p2996 = pneg %p987
        $region194: #{tpu_custom_call.1} parent=191 // pred_check_branch
          %2998 = sbr.rel (%p2996) target = $region196
        $region195: #{tpu_custom_call.1} parent=191 // pred_region
          %s2999 = sand.u32 %s972, 1
          %s3000 = scalar_lea.sflag [#allocation3], %s2999
          %s3001 = sand.u32 %s972, 1
          %s3002 = smul.addr %s3001, 4
          %s3003 = scalar_lea.vmem [#allocation2], %s3002
          %3005 = dma.done %s3000, 64
        $region196: #{tpu_custom_call.1} parent=191 // pred_fallthru
          _
      $region192: #{tpu_custom_call.1} parent=5 // pred_fallthru
        _
    $region6: #{tpu_custom_call.1} parent=1 // loop_footer
      %s96 = sadd.s32 1, %s92
    $region7: #{tpu_custom_call.1} parent=1 // loop_footer_branch
      %91 = sbr.rel target = $region3
    $region8: #{tpu_custom_call.1} parent=1 // loop_exit
      _
    %3006 = vsyncpa [#allocation3], 1
    %s3007 = scalar_lea.sflag [#allocation3], 1
    %3008 = vsyncpa %s3007, 1

</llo_original>
